<compile_context>
chip_gen: v6e
topology: v6e:2x2x1
jax: 0.10.0
libtpu: 0.0.40
codegen_flags: <defaults>
</compile_context>

<pallas_src>
from functools import partial

import jax
import jax.numpy as jnp
from jax.experimental import pallas as pl
from jax.experimental.pallas import tpu as pltpu

ALPHA_L = 2.0          # sce_loss exponent (int power -> plain multiplies)
EPS = 1e-12            # F.normalize eps
EPS2 = EPS * EPS
PRELU_INIT = 0.25      # nn.PReLU() default single parameter
LANE = 128             # hidden dim padded to full lane width (weights only)


def _round_up(a, m):
    return ((a + m - 1) // m) * m


def premodel_kernel(n_rows, x_ref, m_ref, tok_ref, prelu_ref,
                    w1_ref, b1_ref, wmid_ref, bmid_ref, wd2_ref, bd2_ref,
                    recon_ref, loss_ref):
    f32, bf16 = jnp.float32, jnp.bfloat16
    tile_n = x_ref.shape[0]

    # Row-tail validity mask: handles the last partial tile without any
    # wrapper-side row padding (n_rows is a trace-time Python int).
    row0 = pl.program_id(0) * tile_n
    rows = row0 + jax.lax.broadcasted_iota(jnp.int32, (tile_n, 1), 0)
    valid = rows < n_rows

    x = jnp.where(valid, x_ref[...], 0.0)      # (TN, D) f32, tail rows zeroed
    m = jnp.where(valid, m_ref[...], 0.0)      # (TN, 1) f32, 1.0 == masked node

    a_enc = prelu_ref[0]                       # PReLU slopes (SMEM scalars)
    a_dec = prelu_ref[1]

    # encoding_mask_noise (replace_rate == 0 -> token_nodes == mask_nodes)
    use_x = jnp.where(m != 0.0, tok_ref[...], x).astype(bf16)

    # --- encoder: Linear(D,H) -> PReLU (Dropout = identity in eval) ---
    h = jnp.dot(use_x, w1_ref[...], preferred_element_type=f32) + b1_ref[...]
    h = jnp.where(h > 0, h, a_enc * h)

    # --- fused middle: encoder Linear(H,H) @ encoder_to_decoder @ decoder Linear(H,H) ---
    # (decoder_type is 'mlp' -> the `rep[mask_nodes] = 0` branch is skipped)
    d = jnp.dot(h.astype(bf16), wmid_ref[...], preferred_element_type=f32) + bmid_ref[...]
    d = jnp.where(d > 0, d, a_dec * d)

    # --- decoder output Linear(H,D) ---
    recon = jnp.dot(d.astype(bf16), wd2_ref[...], preferred_element_type=f32) + bd2_ref[...]
    recon_ref[...] = recon.astype(recon_ref.dtype)

    # --- sce_loss partial sum:  m * (1 - cos(recon_i, x_i))^2  ---
    # 1/max(||v||, eps) == rsqrt(max(||v||^2, eps^2)) -> EUP rsqrt, no divides.
    r2 = jnp.sum(recon * recon, axis=-1, keepdims=True)
    x2 = jnp.sum(x * x, axis=-1, keepdims=True)
    inv = jax.lax.rsqrt(jnp.maximum(r2, EPS2)) * jax.lax.rsqrt(jnp.maximum(x2, EPS2))
    cos = jnp.sum(recon * x, axis=-1, keepdims=True) * inv
    t = 1.0 - cos

    @pl.when(pl.program_id(0) == 0)
    def _init():
        loss_ref[0, 0] = 0.0
    loss_ref[0, 0] += jnp.sum(m * (t * t))     # alpha_l == 2


def prepare_params(params):
    """One-time weight prep: fuse W2@We2d@Wd1 (f32), pad hidden dim to 128 lanes,
    cast matmul operands to bf16.  Call once; reuse across forward calls."""
    f32, bf16 = jnp.float32, jnp.bfloat16
    D, H = params["w1"].shape
    H_pad = _round_up(H, LANE)

    def pad(a, r, c, dtype):
        a = jnp.asarray(a, f32)
        return jnp.zeros((r, c), dtype).at[:a.shape[0], :a.shape[1]].set(a.astype(dtype))

    # fuse the three bias-free-in-between linears in f32, then cast
    wmid = params["w2"] @ params["we2d"] @ params["wd1"]
    bmid = params["b2"] @ params["we2d"] @ params["wd1"] + params["bd1"]

    return {
        "tok":   jnp.asarray(params["tok"], f32),                        # (1, D)
        "prelu": jnp.asarray([params["a1"], params["ad"]], f32),         # SMEM scalars
        "w1":    pad(params["w1"], D, H_pad, bf16),
        "b1":    pad(params["b1"], 1, H_pad, f32),
        "wmid":  pad(wmid, H_pad, H_pad, bf16),
        "bmid":  pad(bmid, 1, H_pad, f32),
        "wd2":   pad(params["wd2"], H_pad, D, bf16),
        "bd2":   jnp.asarray(params["bd2"], f32),                        # (1, D)
    }


def premodel_forward(x, edge_index, mask, prepped, *, tile_n=512):
    """Returns (loss, recon). mask is (N,1) float32, 1.0 where node is masked."""
    del edge_index                      # unused by the MLP encoder/decoder path
    N, D = x.shape
    H_pad = prepped["w1"].shape[1]
    assert N >= 8, "need at least 8 nodes"

    # row tile: multiple of 8, never larger than the (8-truncated) row count
    tile = max(8, (min(tile_n, (N // 8) * 8) // 8) * 8)
    num_tiles = pl.cdiv(N, tile)

    row = lambda i: (i, 0)
    rep = lambda i: (0, 0)

    recon, loss_sum = pl.pallas_call(
        partial(premodel_kernel, N),
        out_shape=(jax.ShapeDtypeStruct((N, D), jnp.float32),
                   jax.ShapeDtypeStruct((1, 1), jnp.float32)),
        grid_spec=pltpu.PrefetchScalarGridSpec(
            num_scalar_prefetch=0,
            grid=(num_tiles,),
            in_specs=[
                pl.BlockSpec((tile, D), row),                        # x (unpadded)
                pl.BlockSpec((tile, 1), row),                        # mask indicator
                pl.BlockSpec((1, D), rep),                           # enc_mask_token
                pl.BlockSpec(memory_space=pltpu.MemorySpace.SMEM),   # PReLU slopes
                pl.BlockSpec((D, H_pad), rep),                       # encoder W1 (bf16)
                pl.BlockSpec((1, H_pad), rep),                       # encoder b1
                pl.BlockSpec((H_pad, H_pad), rep),                   # fused W2@We2d@Wd1 (bf16)
                pl.BlockSpec((1, H_pad), rep),                       # fused bias
                pl.BlockSpec((H_pad, D), rep),                       # decoder Wd2 (bf16)
                pl.BlockSpec((1, D), rep),                           # decoder bd2
            ],
            out_specs=[
                pl.BlockSpec((tile, D), row),                        # recon (unpadded)
                pl.BlockSpec(memory_space=pltpu.MemorySpace.SMEM),   # scalar loss sum
            ],
        ),
        compiler_params=pltpu.CompilerParams(
            dimension_semantics=("arbitrary",)),   # SMEM loss accumulates across steps
    )(x, mask, prepped["tok"], prepped["prelu"],
      prepped["w1"], prepped["b1"], prepped["wmid"], prepped["bmid"],
      prepped["wd2"], prepped["bd2"])

    num_mask = jnp.maximum(jnp.sum(mask), 1.0)     # PyTorch would NaN at 0 masked
    loss = loss_sum[0, 0] / num_mask               # mean over masked nodes
    return loss, recon


def _reference_forward(x, mask, params):
    """Pure-JAX reference mirroring the kernel's fused / bf16-MXU / f32-epilogue math."""
    f32, bf16 = jnp.float32, jnp.bfloat16
    wmid = params["w2"] @ params["we2d"] @ params["wd1"]
    bmid = params["b2"] @ params["we2d"] @ params["wd1"] + params["bd1"]
    use_x = jnp.where(mask != 0.0, params["tok"], x).astype(bf16)
    h = jnp.dot(use_x, params["w1"].astype(bf16), preferred_element_type=f32) + params["b1"]
    h = jnp.where(h > 0, h, params["a1"] * h)
    d = jnp.dot(h.astype(bf16), wmid.astype(bf16), preferred_element_type=f32) + bmid
    d = jnp.where(d > 0, d, params["ad"] * d)
    recon = jnp.dot(d.astype(bf16), params["wd2"].astype(bf16),
                    preferred_element_type=f32) + params["bd2"]
    r2 = jnp.sum(recon * recon, axis=-1, keepdims=True)
    x2 = jnp.sum(x * x, axis=-1, keepdims=True)
    cos = (jnp.sum(recon * x, axis=-1, keepdims=True)
           * jax.lax.rsqrt(jnp.maximum(r2, EPS2))
           * jax.lax.rsqrt(jnp.maximum(x2, EPS2)))
    t = 1.0 - cos
    loss = jnp.sum(mask * (t * t)) / jnp.maximum(jnp.sum(mask), 1.0)
    return loss, recon


if __name__ == "__main__":
    # Small shapes consistent with the module; N=300 is not a multiple of the
    # tile so the in-kernel row-tail mask path is exercised.
    N, IN_DIM, NUM_HIDDEN = 300, 32, 64
    MASK_RATE = 0.3
    TILE_N = 512   # clamped to 296 internally -> 2 grid steps, ragged tail

    key = jax.random.PRNGKey(0)
    keys = jax.random.split(key, 12)

    x = jax.random.normal(keys[0], (N, IN_DIM), dtype=jnp.float32)
    # edge_index (unused by the MLP encoder/decoder path)
    edge_index = jnp.stack([jnp.arange(N, dtype=jnp.int32),
                            jnp.roll(jnp.arange(N, dtype=jnp.int32), 1)])

    # encoding_mask_noise: random permutation, first int(mask_rate*N) are masked
    num_mask = int(MASK_RATE * N)
    perm = jax.random.permutation(keys[1], N)
    mask = jnp.zeros((N,), jnp.float32).at[perm[:num_mask]].set(1.0).reshape(N, 1)

    def init(k, shape, fan_in):
        bound = 1.0 / jnp.sqrt(fan_in)
        return jax.random.uniform(k, shape, jnp.float32, -bound, bound)

    params = {
        "tok": jnp.zeros((1, IN_DIM), jnp.float32),            # enc_mask_token
        "w1": init(keys[2], (IN_DIM, NUM_HIDDEN), IN_DIM),
        "b1": init(keys[3], (1, NUM_HIDDEN), IN_DIM),
        "a1": PRELU_INIT,
        "w2": init(keys[4], (NUM_HIDDEN, NUM_HIDDEN), NUM_HIDDEN),
        "b2": init(keys[5], (1, NUM_HIDDEN), NUM_HIDDEN),
        "we2d": init(keys[6], (NUM_HIDDEN, NUM_HIDDEN), NUM_HIDDEN),
        "wd1": init(keys[7], (NUM_HIDDEN, NUM_HIDDEN), NUM_HIDDEN),
        "bd1": init(keys[8], (1, NUM_HIDDEN), NUM_HIDDEN),
        "ad": PRELU_INIT,
        "wd2": init(keys[9], (NUM_HIDDEN, IN_DIM), NUM_HIDDEN),
        "bd2": init(keys[10], (1, IN_DIM), NUM_HIDDEN),
    }

    prepped = prepare_params(params)   # one-time weight fusion / padding / bf16 cast

    loss, recon = premodel_forward(x, edge_index, mask, prepped, tile_n=TILE_N)
    loss = jax.block_until_ready(loss)
    recon = jax.block_until_ready(recon)

    ref_loss, ref_recon = _reference_forward(x, mask, params)
    assert recon.shape == (N, IN_DIM)
    assert jnp.allclose(recon, ref_recon, rtol=2e-2, atol=2e-2), \
        float(jnp.max(jnp.abs(recon - ref_recon)))
    assert jnp.allclose(loss, ref_loss, rtol=1e-2, atol=1e-4), \
        (float(loss), float(ref_loss))
    print("KERNEL_OK")
</pallas_src>

<mosaic_0001>
module attributes {stable_mosaic.version = 11 : i64} {
  func.func @premodel_kernel(%arg0: i32, %arg1: memref<296x32xf32, #tpu.memory_space<vmem>>, %arg2: memref<296x1xf32, #tpu.memory_space<vmem>>, %arg3: memref<1x32xf32, #tpu.memory_space<vmem>>, %arg4: memref<2xf32, #tpu.memory_space<smem>>, %arg5: memref<32x128xbf16, #tpu.memory_space<vmem>>, %arg6: memref<1x128xf32, #tpu.memory_space<vmem>>, %arg7: memref<128x128xbf16, #tpu.memory_space<vmem>>, %arg8: memref<1x128xf32, #tpu.memory_space<vmem>>, %arg9: memref<128x32xbf16, #tpu.memory_space<vmem>>, %arg10: memref<1x32xf32, #tpu.memory_space<vmem>>, %arg11: memref<296x32xf32, #tpu.memory_space<vmem>>, %arg12: memref<1x1xf32, #tpu.memory_space<smem>>) attributes {dimension_semantics = [#tpu.dimension_semantics<arbitrary>], iteration_bounds = array<i64: 2>, scalar_prefetch = 0 : i64, scratch_operands = 0 : i64, tpu.core_type = #tpu.core_type<tc>, window_params = [{transform_indices = @transform_0, window_bounds = array<i64: 296, 32>}, {transform_indices = @transform_1, window_bounds = array<i64: 296, 1>}, {pipeline_mode = #tpu.pipeline_mode<synchronous>, transform_indices = @transform_2, window_bounds = array<i64: 1, 32>}, {transform_indices = @transform_3, window_bounds = array<i64: 2>}, {pipeline_mode = #tpu.pipeline_mode<synchronous>, transform_indices = @transform_4, window_bounds = array<i64: 32, 128>}, {pipeline_mode = #tpu.pipeline_mode<synchronous>, transform_indices = @transform_5, window_bounds = array<i64: 1, 128>}, {pipeline_mode = #tpu.pipeline_mode<synchronous>, transform_indices = @transform_6, window_bounds = array<i64: 128, 128>}, {pipeline_mode = #tpu.pipeline_mode<synchronous>, transform_indices = @transform_7, window_bounds = array<i64: 1, 128>}, {pipeline_mode = #tpu.pipeline_mode<synchronous>, transform_indices = @transform_8, window_bounds = array<i64: 128, 32>}, {pipeline_mode = #tpu.pipeline_mode<synchronous>, transform_indices = @transform_9, window_bounds = array<i64: 1, 32>}, {transform_indices = @transform_10, window_bounds = array<i64: 296, 32>}, {transform_indices = @transform_11, window_bounds = array<i64: 1, 1>}]} {
    %c296_i32 = arith.constant 296 : i32
    %0 = arith.muli %arg0, %c296_i32 : i32
    %1 = tpu.iota {dimensions = array<i32: 0>} : vector<296x1xi32>
    %2 = vector.broadcast %0 : i32 to vector<296x1xi32>
    %3 = arith.addi %2, %1 : vector<296x1xi32>
    %c300_i32 = arith.constant 300 : i32
    %4 = vector.broadcast %c300_i32 : i32 to vector<296x1xi32>
    %5 = arith.cmpi slt, %3, %4 : vector<296x1xi32>
    %c0 = arith.constant 0 : index
    %c0_0 = arith.constant 0 : index
    %6 = vector.load %arg1[%c0, %c0_0] : memref<296x32xf32, #tpu.memory_space<vmem>>, vector<296x32xf32>
    %cst = arith.constant 0.000000e+00 : f32
    %7 = vector.shape_cast %5 : vector<296x1xi1> to vector<296x1xi1>
    %8 = vector.broadcast %7 : vector<296x1xi1> to vector<296x32xi1>
    %9 = vector.broadcast %cst : f32 to vector<296x32xf32>
    %10 = arith.select %8, %6, %9 : vector<296x32xi1>, vector<296x32xf32>
    %c0_1 = arith.constant 0 : index
    %c0_2 = arith.constant 0 : index
    %11 = vector.load %arg2[%c0_1, %c0_2] : memref<296x1xf32, #tpu.memory_space<vmem>>, vector<296x1xf32>
    %cst_3 = arith.constant 0.000000e+00 : f32
    %12 = vector.broadcast %cst_3 : f32 to vector<296x1xf32>
    %13 = arith.select %5, %11, %12 : vector<296x1xi1>, vector<296x1xf32>
    %c0_4 = arith.constant 0 : index
    %14 = memref.load %arg4[%c0_4] : memref<2xf32, #tpu.memory_space<smem>>
    %c1 = arith.constant 1 : index
    %15 = memref.load %arg4[%c1] : memref<2xf32, #tpu.memory_space<smem>>
    %cst_5 = arith.constant 0.000000e+00 : f32
    %16 = vector.broadcast %cst_5 : f32 to vector<296x1xf32>
    %17 = arith.cmpf one, %13, %16 : vector<296x1xf32>
    %c0_6 = arith.constant 0 : index
    %c0_7 = arith.constant 0 : index
    %18 = vector.load %arg3[%c0_6, %c0_7] : memref<1x32xf32, #tpu.memory_space<vmem>>, vector<1x32xf32>
    %19 = vector.shape_cast %17 : vector<296x1xi1> to vector<296x1xi1>
    %20 = vector.broadcast %19 : vector<296x1xi1> to vector<296x32xi1>
    %21 = vector.shape_cast %18 : vector<1x32xf32> to vector<1x32xf32>
    %22 = vector.broadcast %21 : vector<1x32xf32> to vector<296x32xf32>
    %23 = arith.select %20, %22, %10 : vector<296x32xi1>, vector<296x32xf32>
    %24 = arith.truncf %23 : vector<296x32xf32> to vector<296x32xbf16>
    %c0_8 = arith.constant 0 : index
    %c0_9 = arith.constant 0 : index
    %25 = vector.load %arg5[%c0_8, %c0_9] : memref<32x128xbf16, #tpu.memory_space<vmem>>, vector<32x128xbf16>
    %cst_10 = arith.constant dense<0.000000e+00> : vector<296x128xf32>
    %26 = tpu.matmul %24, %25, %cst_10 {dimension_numbers = #tpu.dot_dimension_numbers<[1], [0], [0], [1], [0, 0, 1, 1], [], []>} : vector<296x32xbf16>, vector<32x128xbf16>, vector<296x128xf32> -> vector<296x128xf32>
    %c0_11 = arith.constant 0 : index
    %c0_12 = arith.constant 0 : index
    %27 = vector.load %arg6[%c0_11, %c0_12] : memref<1x128xf32, #tpu.memory_space<vmem>>, vector<1x128xf32>
    %28 = vector.broadcast %27 : vector<1x128xf32> to vector<296x128xf32>
    %29 = arith.addf %26, %28 : vector<296x128xf32>
    %cst_13 = arith.constant 0.000000e+00 : f32
    %30 = vector.broadcast %cst_13 : f32 to vector<296x128xf32>
    %31 = arith.cmpf ogt, %29, %30 : vector<296x128xf32>
    %32 = vector.broadcast %14 : f32 to vector<296x128xf32>
    %33 = arith.mulf %32, %29 : vector<296x128xf32>
    %34 = arith.select %31, %29, %33 : vector<296x128xi1>, vector<296x128xf32>
    %35 = arith.truncf %34 : vector<296x128xf32> to vector<296x128xbf16>
    %c0_14 = arith.constant 0 : index
    %c0_15 = arith.constant 0 : index
    %36 = vector.load %arg7[%c0_14, %c0_15] : memref<128x128xbf16, #tpu.memory_space<vmem>>, vector<128x128xbf16>
    %cst_16 = arith.constant dense<0.000000e+00> : vector<296x128xf32>
    %37 = tpu.matmul %35, %36, %cst_16 {dimension_numbers = #tpu.dot_dimension_numbers<[1], [0], [0], [1], [0, 0, 1, 1], [], []>} : vector<296x128xbf16>, vector<128x128xbf16>, vector<296x128xf32> -> vector<296x128xf32>
    %c0_17 = arith.constant 0 : index
    %c0_18 = arith.constant 0 : index
    %38 = vector.load %arg8[%c0_17, %c0_18] : memref<1x128xf32, #tpu.memory_space<vmem>>, vector<1x128xf32>
    %39 = vector.broadcast %38 : vector<1x128xf32> to vector<296x128xf32>
    %40 = arith.addf %37, %39 : vector<296x128xf32>
    %cst_19 = arith.constant 0.000000e+00 : f32
    %41 = vector.broadcast %cst_19 : f32 to vector<296x128xf32>
    %42 = arith.cmpf ogt, %40, %41 : vector<296x128xf32>
    %43 = vector.broadcast %15 : f32 to vector<296x128xf32>
    %44 = arith.mulf %43, %40 : vector<296x128xf32>
    %45 = arith.select %42, %40, %44 : vector<296x128xi1>, vector<296x128xf32>
    %46 = arith.truncf %45 : vector<296x128xf32> to vector<296x128xbf16>
    %c0_20 = arith.constant 0 : index
    %c0_21 = arith.constant 0 : index
    %47 = vector.load %arg9[%c0_20, %c0_21] : memref<128x32xbf16, #tpu.memory_space<vmem>>, vector<128x32xbf16>
    %cst_22 = arith.constant dense<0.000000e+00> : vector<296x32xf32>
    %48 = tpu.matmul %46, %47, %cst_22 {dimension_numbers = #tpu.dot_dimension_numbers<[1], [0], [0], [1], [0, 0, 1, 1], [], []>} : vector<296x128xbf16>, vector<128x32xbf16>, vector<296x32xf32> -> vector<296x32xf32>
    %c0_23 = arith.constant 0 : index
    %c0_24 = arith.constant 0 : index
    %49 = vector.load %arg10[%c0_23, %c0_24] : memref<1x32xf32, #tpu.memory_space<vmem>>, vector<1x32xf32>
    %50 = vector.broadcast %49 : vector<1x32xf32> to vector<296x32xf32>
    %51 = arith.addf %48, %50 : vector<296x32xf32>
    %c0_25 = arith.constant 0 : index
    %c0_26 = arith.constant 0 : index
    %52 = vector.load %arg11[%c0_25, %c0_26] : memref<296x32xf32, #tpu.memory_space<vmem>>, vector<296x32xf32>
    tpu.vector_store %arg11[%c0_25, %c0_26], %51 {strides = array<i32>} : memref<296x32xf32, #tpu.memory_space<vmem>>, vector<296x32xf32>,
    %53 = arith.mulf %51, %51 : vector<296x32xf32>
    %cst_27 = arith.constant dense<0.000000e+00> : vector<296xf32>
    %54 = vector.multi_reduction <add>, %53, %cst_27 [1] : vector<296x32xf32> to vector<296xf32>
    %55 = vector.shape_cast %54 : vector<296xf32> to vector<296x1xf32>
    %56 = arith.mulf %10, %10 : vector<296x32xf32>
    %cst_28 = arith.constant dense<0.000000e+00> : vector<296xf32>
    %57 = vector.multi_reduction <add>, %56, %cst_28 [1] : vector<296x32xf32> to vector<296xf32>
    %58 = vector.shape_cast %57 : vector<296xf32> to vector<296x1xf32>
    %cst_29 = arith.constant 1.000000e-24 : f32
    %59 = vector.broadcast %cst_29 : f32 to vector<296x1xf32>
    %60 = arith.maximumf %55, %59 : vector<296x1xf32>
    %61 = math.rsqrt %60 : vector<296x1xf32>
    %cst_30 = arith.constant 1.000000e-24 : f32
    %62 = vector.broadcast %cst_30 : f32 to vector<296x1xf32>
    %63 = arith.maximumf %58, %62 : vector<296x1xf32>
    %64 = math.rsqrt %63 : vector<296x1xf32>
    %65 = arith.mulf %61, %64 : vector<296x1xf32>
    %66 = arith.mulf %51, %10 : vector<296x32xf32>
    %cst_31 = arith.constant dense<0.000000e+00> : vector<296xf32>
    %67 = vector.multi_reduction <add>, %66, %cst_31 [1] : vector<296x32xf32> to vector<296xf32>
    %68 = vector.shape_cast %67 : vector<296xf32> to vector<296x1xf32>
    %69 = arith.mulf %68, %65 : vector<296x1xf32>
    %cst_32 = arith.constant 1.000000e+00 : f32
    %70 = vector.broadcast %cst_32 : f32 to vector<296x1xf32>
    %71 = arith.subf %70, %69 : vector<296x1xf32>
    %c0_i32 = arith.constant 0 : i32
    %72 = arith.cmpi eq, %arg0, %c0_i32 : i32
    %73 = arith.extui %72 : i1 to i32
    %c0_i32_33 = arith.constant 0 : i32
    %74 = arith.cmpi ne, %73, %c0_i32_33 : i32
    scf.if %74 {
      %cst_39 = arith.constant 0.000000e+00 : f32
      %c0_40 = arith.constant 0 : index
      %c0_41 = arith.constant 0 : index
      %84 = memref.load %arg12[%c0_40, %c0_41] : memref<1x1xf32, #tpu.memory_space<smem>>
      memref.store %cst_39, %arg12[%c0_40, %c0_41] : memref<1x1xf32, #tpu.memory_space<smem>>
    } else {
    }
    %c0_34 = arith.constant 0 : index
    %c0_35 = arith.constant 0 : index
    %75 = memref.load %arg12[%c0_34, %c0_35] : memref<1x1xf32, #tpu.memory_space<smem>>
    %76 = arith.mulf %71, %71 : vector<296x1xf32>
    %77 = arith.mulf %13, %76 : vector<296x1xf32>
    %78 = vector.shape_cast %77 : vector<296x1xf32> to vector<1x296x1xf32>
    %cst_36 = arith.constant dense<0.000000e+00> : vector<1xf32>
    %79 = vector.multi_reduction <add>, %78, %cst_36 [1, 2] : vector<1x296x1xf32> to vector<1xf32>
    %80 = vector.shape_cast %79 : vector<1xf32> to vector<1x1x1xf32>
    %81 = vector.extract %80[0, 0, 0] : f32 from vector<1x1x1xf32>
    %82 = arith.addf %75, %81 : f32
    %c0_37 = arith.constant 0 : index
    %c0_38 = arith.constant 0 : index
    %83 = memref.load %arg12[%c0_37, %c0_38] : memref<1x1xf32, #tpu.memory_space<smem>>
    memref.store %82, %arg12[%c0_37, %c0_38] : memref<1x1xf32, #tpu.memory_space<smem>>
    return
  }
  func.func @transform_0(%arg0: i32) -> (i32, i32) {
    %c0_i32 = arith.constant 0 : i32
    %c0_i32_0 = arith.constant 0 : i32
    return %arg0, %c0_i32 : i32, i32
  }
  func.func @transform_1(%arg0: i32) -> (i32, i32) {
    %c0_i32 = arith.constant 0 : i32
    %c0_i32_0 = arith.constant 0 : i32
    return %arg0, %c0_i32 : i32, i32
  }
  func.func @transform_2(%arg0: i32) -> (i32, i32) {
    %c0_i32 = arith.constant 0 : i32
    %c0_i32_0 = arith.constant 0 : i32
    %c0_i32_1 = arith.constant 0 : i32
    return %c0_i32, %c0_i32_0 : i32, i32
  }
  func.func @transform_3(%arg0: i32) -> i32 {
    %c0_i32 = arith.constant 0 : i32
    %c0_i32_0 = arith.constant 0 : i32
    return %c0_i32 : i32
  }
  func.func @transform_4(%arg0: i32) -> (i32, i32) {
    %c0_i32 = arith.constant 0 : i32
    %c0_i32_0 = arith.constant 0 : i32
    %c0_i32_1 = arith.constant 0 : i32
    return %c0_i32, %c0_i32_0 : i32, i32
  }
  func.func @transform_5(%arg0: i32) -> (i32, i32) {
    %c0_i32 = arith.constant 0 : i32
    %c0_i32_0 = arith.constant 0 : i32
    %c0_i32_1 = arith.constant 0 : i32
    return %c0_i32, %c0_i32_0 : i32, i32
  }
  func.func @transform_6(%arg0: i32) -> (i32, i32) {
    %c0_i32 = arith.constant 0 : i32
    %c0_i32_0 = arith.constant 0 : i32
    %c0_i32_1 = arith.constant 0 : i32
    return %c0_i32, %c0_i32_0 : i32, i32
  }
  func.func @transform_7(%arg0: i32) -> (i32, i32) {
    %c0_i32 = arith.constant 0 : i32
    %c0_i32_0 = arith.constant 0 : i32
    %c0_i32_1 = arith.constant 0 : i32
    return %c0_i32, %c0_i32_0 : i32, i32
  }
  func.func @transform_8(%arg0: i32) -> (i32, i32) {
    %c0_i32 = arith.constant 0 : i32
    %c0_i32_0 = arith.constant 0 : i32
    %c0_i32_1 = arith.constant 0 : i32
    return %c0_i32, %c0_i32_0 : i32, i32
  }
  func.func @transform_9(%arg0: i32) -> (i32, i32) {
    %c0_i32 = arith.constant 0 : i32
    %c0_i32_0 = arith.constant 0 : i32
    %c0_i32_1 = arith.constant 0 : i32
    return %c0_i32, %c0_i32_0 : i32, i32
  }
  func.func @transform_10(%arg0: i32) -> (i32, i32) {
    %c0_i32 = arith.constant 0 : i32
    %c0_i32_0 = arith.constant 0 : i32
    return %arg0, %c0_i32 : i32, i32
  }
  func.func @transform_11(%arg0: i32) -> (i32, i32) {
    %c0_i32 = arith.constant 0 : i32
    %c0_i32_0 = arith.constant 0 : i32
    %c0_i32_1 = arith.constant 0 : i32
    return %c0_i32, %c0_i32_0 : i32, i32
  }
}

</mosaic_0001>

<llo_original>
// kernel: tpu_custom_call.1
$region0: #{tpu_custom_call.1}
  #allocation0 [shape = 'u32[]', space=smem, size = 0x4, offset = 0x4, fixed_abs, tag = 'smem constant byte address 0x4 - core index']
  #allocation1 [shape = 'u32[144,128]{1,0:T(1,128)}', space=vmem, size = 0x12000, scoped, tag = 'internal scratch']
  %s0 = inlined_call_operand.vmem [shape: f32[300,32], index: 0, kind: input, shape index: {}]
  %s1 = inlined_call_operand.vmem [shape: f32[300,1], index: 1, kind: input, shape index: {}]
  %s2 = inlined_call_operand.vmem [shape: f32[1,32], index: 2, kind: input, shape index: {}]
  %s3 = inlined_call_operand.vmem [shape: f32[2], index: 3, kind: input, shape index: {}]
  %s4 = inlined_call_operand.vmem [shape: bf16[32,128], index: 4, kind: input, shape index: {}]
  %s5 = inlined_call_operand.vmem [shape: f32[1,128], index: 5, kind: input, shape index: {}]
  %s6 = inlined_call_operand.vmem [shape: bf16[128,128], index: 6, kind: input, shape index: {}]
  %s7 = inlined_call_operand.vmem [shape: f32[1,128], index: 7, kind: input, shape index: {}]
  %s8 = inlined_call_operand.vmem [shape: bf16[128,32], index: 8, kind: input, shape index: {}]
  %s9 = inlined_call_operand.vmem [shape: f32[1,32], index: 9, kind: input, shape index: {}]
  %s10 = inlined_call_operand.vmem [shape: f32[300,32], index: 10, kind: output, shape index: {0}]
  %s11 = inlined_call_operand.hbm [shape: f32[1,1], index: 11, kind: output, shape index: {1}]
  %12 = xla_tuple %s10, %s11
  %s13 = sld [smem:[#allocation0]]
  $region137: #{tpu_custom_call.1} parent=0
    _
  %s15 = ssub.s32 1, %s13
  %s16 = scalar_select 0, %s15, %s13
  $region1: #{tpu_custom_call.1} parent=0
    #allocation2 [shape = 'u8[512]{0}', space=smem, size = 0x200, scoped, tag = 'input window, operand 3, single buffered']
    #allocation3 [shape = 's32[2]{0}', space=sflag, size = 0x8, scoped, tag = 'scoped memory for tpu_custom_call.1']
    #allocation4 [shape = 's32[2]{0}', space=sflag, size = 0x8, scoped, tag = 'scoped memory for tpu_custom_call.1']
    #allocation5 [shape = 'u8[303104]{0}', space=vmem, size = 0x4a000, scoped, tag = 'output window, operand 0']
    #allocation6 [shape = 'u8[512]{0}', space=smem, size = 0x200, scoped, tag = 'output window, operand 1, single buffered']
    %17 = vsyncpa [#allocation4], 0
    %18 = vsyncpa [#allocation3], 0
    loop: start=0, step=1, limit=4
    $region2: #{tpu_custom_call.1} parent=1 // loop_pre_header
      _
    $region3: #{tpu_custom_call.1} parent=1 // loop_header
      %s20 = sphi 0, %s24
      %p21 = scmp.ge.s32.totalorder %s20, 4
      %s30 = sphi 0, %s32
      %s33 = sphi 0, %s30
      %s34 = sphi 0, %s33
      %s50 = sphi 0, %s34
      %s56 = sphi 0, %s58
      %s59 = sphi 0, %s56
      %s60 = sphi 0, %s59
      %s76 = sphi 0, %s60
      %s80 = sphi 0, %s80
      %s82 = sphi 0, %s80
      %s83 = sphi 0, %s82
      %s97 = sphi 0, %s83
      %s101 = sphi 0, %s101
      %s103 = sphi 0, %s101
      %s104 = sphi 0, %s103
      %s118 = sphi 0, %s104
      %s122 = sphi 0, %s122
      %s124 = sphi 0, %s122
      %s125 = sphi 0, %s124
      %s139 = sphi 0, %s125
      %s143 = sphi 0, %s143
      %s145 = sphi 0, %s143
      %s146 = sphi 0, %s145
      %s160 = sphi 0, %s146
      %s164 = sphi 0, %s164
      %s166 = sphi 0, %s164
      %s167 = sphi 0, %s166
      %s181 = sphi 0, %s167
      %s185 = sphi 0, %s185
      %s187 = sphi 0, %s185
      %s188 = sphi 0, %s187
      %s202 = sphi 0, %s188
      %s206 = sphi 0, %s206
      %s208 = sphi 0, %s206
      %s209 = sphi 0, %s208
      %s223 = sphi 0, %s209
      %s227 = sphi 0, %s227
      %s229 = sphi 0, %s227
      %s230 = sphi 0, %s229
      %s244 = sphi 0, %s230
      %s250 = sphi 0, %s252
      %s253 = sphi 0, %s250
      %s254 = sphi 0, %s253
      %s270 = sphi 0, %s254
      %s274 = sphi 0, %s274
      %s276 = sphi 0, %s274
      %s277 = sphi 0, %s276
      %s291 = sphi 0, %s277
    $region4: #{tpu_custom_call.1} parent=1 // loop_header_branch
      %23 = sbr.rel (%p21) target = $region8
    $region5: #{tpu_custom_call.1} parent=1 // loop_body
      %s25 = ssub.s32 %s20, 1
      %s26 = ssub.s32 %s20, 2
      %s27 = sadd.s32 %s20, 1
      %s28 = ssub.s32 %s20, %s27
      %p29 = scmp.eq.s32.totalorder %s28, 0
      %s31 = sadd.s32 %s30, 1
      %s32 = scalar_select %p29, %s30, %s31
      %p35 = pneg %p29
      %p36 = scmp.eq.s32.totalorder %s20, 1
      %p37 = por %p35, %p36
      %p38 = scmp.ne.s32.totalorder %s30, %s33
      %p39 = scmp.eq.s32.totalorder %s20, 0
      %p40 = por %p38, %p39
      %p41 = scmp.ne.s32.totalorder %s30, %s33
      %p42 = scmp.eq.s32.totalorder %s25, 1
      %p43 = por %p41, %p42
      %p44 = scmp.ne.s32.totalorder %s33, %s34
      %p45 = scmp.eq.s32.totalorder %s25, 0
      %p46 = por %p44, %p45
      %p47 = scmp.ne.s32.totalorder %s33, %s34
      %p48 = scmp.eq.s32.totalorder %s26, 1
      %p49 = por %p47, %p48
      %p51 = scmp.ne.s32.totalorder %s34, %s50
      %p52 = scmp.eq.s32.totalorder %s26, 0
      %p53 = por %p51, %p52
      %s54 = ssub.s32 %s20, %s27
      %p55 = scmp.eq.s32.totalorder %s54, 0
      %s57 = sadd.s32 %s56, 1
      %s58 = scalar_select %p55, %s56, %s57
      %p61 = pneg %p55
      %p62 = scmp.eq.s32.totalorder %s20, 1
      %p63 = por %p61, %p62
      %p64 = scmp.ne.s32.totalorder %s56, %s59
      %p65 = scmp.eq.s32.totalorder %s20, 0
      %p66 = por %p64, %p65
      %p67 = scmp.ne.s32.totalorder %s56, %s59
      %p68 = scmp.eq.s32.totalorder %s25, 1
      %p69 = por %p67, %p68
      %p70 = scmp.ne.s32.totalorder %s59, %s60
      %p71 = scmp.eq.s32.totalorder %s25, 0
      %p72 = por %p70, %p71
      %p73 = scmp.ne.s32.totalorder %s59, %s60
      %p74 = scmp.eq.s32.totalorder %s26, 1
      %p75 = por %p73, %p74
      %p77 = scmp.ne.s32.totalorder %s60, %s76
      %p78 = scmp.eq.s32.totalorder %s26, 0
      %p79 = por %p77, %p78
      %s81 = sadd.s32 %s80, 1
      %p84 = scmp.eq.s32.totalorder %s20, 1
      %p85 = scmp.ne.s32.totalorder %s80, %s82
      %p86 = scmp.eq.s32.totalorder %s20, 0
      %p87 = por %p85, %p86
      %p88 = scmp.ne.s32.totalorder %s80, %s82
      %p89 = scmp.eq.s32.totalorder %s25, 1
      %p90 = por %p88, %p89
      %p91 = scmp.ne.s32.totalorder %s82, %s83
      %p92 = scmp.eq.s32.totalorder %s25, 0
      %p93 = por %p91, %p92
      %p94 = scmp.ne.s32.totalorder %s82, %s83
      %p95 = scmp.eq.s32.totalorder %s26, 1
      %p96 = por %p94, %p95
      %p98 = scmp.ne.s32.totalorder %s83, %s97
      %p99 = scmp.eq.s32.totalorder %s26, 0
      %p100 = por %p98, %p99
      %s102 = sadd.s32 %s101, 1
      %p105 = scmp.eq.s32.totalorder %s20, 1
      %p106 = scmp.ne.s32.totalorder %s101, %s103
      %p107 = scmp.eq.s32.totalorder %s20, 0
      %p108 = por %p106, %p107
      %p109 = scmp.ne.s32.totalorder %s101, %s103
      %p110 = scmp.eq.s32.totalorder %s25, 1
      %p111 = por %p109, %p110
      %p112 = scmp.ne.s32.totalorder %s103, %s104
      %p113 = scmp.eq.s32.totalorder %s25, 0
      %p114 = por %p112, %p113
      %p115 = scmp.ne.s32.totalorder %s103, %s104
      %p116 = scmp.eq.s32.totalorder %s26, 1
      %p117 = por %p115, %p116
      %p119 = scmp.ne.s32.totalorder %s104, %s118
      %p120 = scmp.eq.s32.totalorder %s26, 0
      %p121 = por %p119, %p120
      %s123 = sadd.s32 %s122, 1
      %p126 = scmp.eq.s32.totalorder %s20, 1
      %p127 = scmp.ne.s32.totalorder %s122, %s124
      %p128 = scmp.eq.s32.totalorder %s20, 0
      %p129 = por %p127, %p128
      %p130 = scmp.ne.s32.totalorder %s122, %s124
      %p131 = scmp.eq.s32.totalorder %s25, 1
      %p132 = por %p130, %p131
      %p133 = scmp.ne.s32.totalorder %s124, %s125
      %p134 = scmp.eq.s32.totalorder %s25, 0
      %p135 = por %p133, %p134
      %p136 = scmp.ne.s32.totalorder %s124, %s125
      %p137 = scmp.eq.s32.totalorder %s26, 1
      %p138 = por %p136, %p137
      %p140 = scmp.ne.s32.totalorder %s125, %s139
      %p141 = scmp.eq.s32.totalorder %s26, 0
      %p142 = por %p140, %p141
      %s144 = sadd.s32 %s143, 1
      %p147 = scmp.eq.s32.totalorder %s20, 1
      %p148 = scmp.ne.s32.totalorder %s143, %s145
      %p149 = scmp.eq.s32.totalorder %s20, 0
      %p150 = por %p148, %p149
      %p151 = scmp.ne.s32.totalorder %s143, %s145
      %p152 = scmp.eq.s32.totalorder %s25, 1
      %p153 = por %p151, %p152
      %p154 = scmp.ne.s32.totalorder %s145, %s146
      %p155 = scmp.eq.s32.totalorder %s25, 0
      %p156 = por %p154, %p155
      %p157 = scmp.ne.s32.totalorder %s145, %s146
      %p158 = scmp.eq.s32.totalorder %s26, 1
      %p159 = por %p157, %p158
      %p161 = scmp.ne.s32.totalorder %s146, %s160
      %p162 = scmp.eq.s32.totalorder %s26, 0
      %p163 = por %p161, %p162
      %s165 = sadd.s32 %s164, 1
      %p168 = scmp.eq.s32.totalorder %s20, 1
      %p169 = scmp.ne.s32.totalorder %s164, %s166
      %p170 = scmp.eq.s32.totalorder %s20, 0
      %p171 = por %p169, %p170
      %p172 = scmp.ne.s32.totalorder %s164, %s166
      %p173 = scmp.eq.s32.totalorder %s25, 1
      %p174 = por %p172, %p173
      %p175 = scmp.ne.s32.totalorder %s166, %s167
      %p176 = scmp.eq.s32.totalorder %s25, 0
      %p177 = por %p175, %p176
      %p178 = scmp.ne.s32.totalorder %s166, %s167
      %p179 = scmp.eq.s32.totalorder %s26, 1
      %p180 = por %p178, %p179
      %p182 = scmp.ne.s32.totalorder %s167, %s181
      %p183 = scmp.eq.s32.totalorder %s26, 0
      %p184 = por %p182, %p183
      %s186 = sadd.s32 %s185, 1
      %p189 = scmp.eq.s32.totalorder %s20, 1
      %p190 = scmp.ne.s32.totalorder %s185, %s187
      %p191 = scmp.eq.s32.totalorder %s20, 0
      %p192 = por %p190, %p191
      %p193 = scmp.ne.s32.totalorder %s185, %s187
      %p194 = scmp.eq.s32.totalorder %s25, 1
      %p195 = por %p193, %p194
      %p196 = scmp.ne.s32.totalorder %s187, %s188
      %p197 = scmp.eq.s32.totalorder %s25, 0
      %p198 = por %p196, %p197
      %p199 = scmp.ne.s32.totalorder %s187, %s188
      %p200 = scmp.eq.s32.totalorder %s26, 1
      %p201 = por %p199, %p200
      %p203 = scmp.ne.s32.totalorder %s188, %s202
      %p204 = scmp.eq.s32.totalorder %s26, 0
      %p205 = por %p203, %p204
      %s207 = sadd.s32 %s206, 1
      %p210 = scmp.eq.s32.totalorder %s20, 1
      %p211 = scmp.ne.s32.totalorder %s206, %s208
      %p212 = scmp.eq.s32.totalorder %s20, 0
      %p213 = por %p211, %p212
      %p214 = scmp.ne.s32.totalorder %s206, %s208
      %p215 = scmp.eq.s32.totalorder %s25, 1
      %p216 = por %p214, %p215
      %p217 = scmp.ne.s32.totalorder %s208, %s209
      %p218 = scmp.eq.s32.totalorder %s25, 0
      %p219 = por %p217, %p218
      %p220 = scmp.ne.s32.totalorder %s208, %s209
      %p221 = scmp.eq.s32.totalorder %s26, 1
      %p222 = por %p220, %p221
      %p224 = scmp.ne.s32.totalorder %s209, %s223
      %p225 = scmp.eq.s32.totalorder %s26, 0
      %p226 = por %p224, %p225
      %s228 = sadd.s32 %s227, 1
      %p231 = scmp.eq.s32.totalorder %s20, 1
      %p232 = scmp.ne.s32.totalorder %s227, %s229
      %p233 = scmp.eq.s32.totalorder %s20, 0
      %p234 = por %p232, %p233
      %p235 = scmp.ne.s32.totalorder %s227, %s229
      %p236 = scmp.eq.s32.totalorder %s25, 1
      %p237 = por %p235, %p236
      %p238 = scmp.ne.s32.totalorder %s229, %s230
      %p239 = scmp.eq.s32.totalorder %s25, 0
      %p240 = por %p238, %p239
      %p241 = scmp.ne.s32.totalorder %s229, %s230
      %p242 = scmp.eq.s32.totalorder %s26, 1
      %p243 = por %p241, %p242
      %p245 = scmp.ne.s32.totalorder %s230, %s244
      %p246 = scmp.eq.s32.totalorder %s26, 0
      %p247 = por %p245, %p246
      %s248 = ssub.s32 %s20, %s27
      %p249 = scmp.eq.s32.totalorder %s248, 0
      %s251 = sadd.s32 %s250, 1
      %s252 = scalar_select %p249, %s250, %s251
      %p255 = pneg %p249
      %p256 = scmp.eq.s32.totalorder %s20, 1
      %p257 = por %p255, %p256
      %p258 = scmp.ne.s32.totalorder %s250, %s253
      %p259 = scmp.eq.s32.totalorder %s20, 0
      %p260 = por %p258, %p259
      %p261 = scmp.ne.s32.totalorder %s250, %s253
      %p262 = scmp.eq.s32.totalorder %s25, 1
      %p263 = por %p261, %p262
      %p264 = scmp.ne.s32.totalorder %s253, %s254
      %p265 = scmp.eq.s32.totalorder %s25, 0
      %p266 = por %p264, %p265
      %p267 = scmp.ne.s32.totalorder %s253, %s254
      %p268 = scmp.eq.s32.totalorder %s26, 1
      %p269 = por %p267, %p268
      %p271 = scmp.ne.s32.totalorder %s254, %s270
      %p272 = scmp.eq.s32.totalorder %s26, 0
      %p273 = por %p271, %p272
      %s275 = sadd.s32 %s274, 1
      %p278 = scmp.eq.s32.totalorder %s20, 1
      %p279 = scmp.ne.s32.totalorder %s274, %s276
      %p280 = scmp.eq.s32.totalorder %s20, 0
      %p281 = por %p279, %p280
      %p282 = scmp.ne.s32.totalorder %s274, %s276
      %p283 = scmp.eq.s32.totalorder %s25, 1
      %p284 = por %p282, %p283
      %p285 = scmp.ne.s32.totalorder %s276, %s277
      %p286 = scmp.eq.s32.totalorder %s25, 0
      %p287 = por %p285, %p286
      %p288 = scmp.ne.s32.totalorder %s276, %s277
      %p289 = scmp.eq.s32.totalorder %s26, 1
      %p290 = por %p288, %p289
      %p292 = scmp.ne.s32.totalorder %s277, %s291
      %p293 = scmp.eq.s32.totalorder %s26, 0
      %p294 = por %p292, %p293
      %p295 = scmp.le.s32.totalorder 1, %s20
      %p296 = scmp.lt.s32.totalorder %s20, 3
      %p297 = pnand %p295, %p296
      %p298 = pneg %p297
      // Predicated region
      $region9: #{tpu_custom_call.1} parent=5 // pred_check
        _
      $region10: #{tpu_custom_call.1} parent=5 // pred_check_branch
        %300 = sbr.rel (%p297) target = $region12
      $region11: #{tpu_custom_call.1} parent=5 // pred_region
        %s301 = ssub.s32 %s20, 1
        // Predicated region
        $region13: #{tpu_custom_call.1} parent=11 // pred_check
          %p302 = pneg %p93
        $region14: #{tpu_custom_call.1} parent=11 // pred_check_branch
          %304 = sbr.rel (%p302) target = $region16
        $region15: #{tpu_custom_call.1} parent=11 // pred_region
          _
        $region16: #{tpu_custom_call.1} parent=11 // pred_fallthru
          _
        // Predicated region
        $region17: #{tpu_custom_call.1} parent=11 // pred_check
          %p305 = pneg %p114
        $region18: #{tpu_custom_call.1} parent=11 // pred_check_branch
          %307 = sbr.rel (%p305) target = $region20
        $region19: #{tpu_custom_call.1} parent=11 // pred_region
          %s309 = ssub.s32 16, 16
          %310 = vsyncadd [#allocation4], %s309
          %s312 = sshll.u32 %s3, 4
          %s313 = int_to_ptr.vmem [resolvable:$true] %s312
          %315 = dma.vmem_to_smem %s313, 16, [#allocation2], [#allocation4]
        $region20: #{tpu_custom_call.1} parent=11 // pred_fallthru
          _
        // Predicated region
        $region21: #{tpu_custom_call.1} parent=11 // pred_check
          %p316 = pneg %p135
        $region22: #{tpu_custom_call.1} parent=11 // pred_check_branch
          %318 = sbr.rel (%p316) target = $region24
        $region23: #{tpu_custom_call.1} parent=11 // pred_region
          _
        $region24: #{tpu_custom_call.1} parent=11 // pred_fallthru
          _
        // Predicated region
        $region25: #{tpu_custom_call.1} parent=11 // pred_check
          %p319 = pneg %p156
        $region26: #{tpu_custom_call.1} parent=11 // pred_check_branch
          %321 = sbr.rel (%p319) target = $region28
        $region27: #{tpu_custom_call.1} parent=11 // pred_region
          _
        $region28: #{tpu_custom_call.1} parent=11 // pred_fallthru
          _
        // Predicated region
        $region29: #{tpu_custom_call.1} parent=11 // pred_check
          %p322 = pneg %p177
        $region30: #{tpu_custom_call.1} parent=11 // pred_check_branch
          %324 = sbr.rel (%p322) target = $region32
        $region31: #{tpu_custom_call.1} parent=11 // pred_region
          _
        $region32: #{tpu_custom_call.1} parent=11 // pred_fallthru
          _
        // Predicated region
        $region33: #{tpu_custom_call.1} parent=11 // pred_check
          %p325 = pneg %p198
        $region34: #{tpu_custom_call.1} parent=11 // pred_check_branch
          %327 = sbr.rel (%p325) target = $region36
        $region35: #{tpu_custom_call.1} parent=11 // pred_region
          _
        $region36: #{tpu_custom_call.1} parent=11 // pred_fallthru
          _
        // Predicated region
        $region37: #{tpu_custom_call.1} parent=11 // pred_check
          %p328 = pneg %p219
        $region38: #{tpu_custom_call.1} parent=11 // pred_check_branch
          %330 = sbr.rel (%p328) target = $region40
        $region39: #{tpu_custom_call.1} parent=11 // pred_region
          _
        $region40: #{tpu_custom_call.1} parent=11 // pred_fallthru
          _
        // Predicated region
        $region41: #{tpu_custom_call.1} parent=11 // pred_check
          %p331 = pneg %p240
        $region42: #{tpu_custom_call.1} parent=11 // pred_check_branch
          %333 = sbr.rel (%p331) target = $region44
        $region43: #{tpu_custom_call.1} parent=11 // pred_region
          _
        $region44: #{tpu_custom_call.1} parent=11 // pred_fallthru
          _
      $region12: #{tpu_custom_call.1} parent=5 // pred_fallthru
        _
      %p334 = scmp.lt.s32.totalorder %s20, 2
      // Predicated region
      $region45: #{tpu_custom_call.1} parent=5 // pred_check
        %p335 = pneg %p334
      $region46: #{tpu_custom_call.1} parent=5 // pred_check_branch
        %337 = sbr.rel (%p335) target = $region48
      $region47: #{tpu_custom_call.1} parent=5 // pred_region
        // Predicated region
        $region49: #{tpu_custom_call.1} parent=47 // pred_check
          %p338 = pneg %p40
        $region50: #{tpu_custom_call.1} parent=47 // pred_check_branch
          %340 = sbr.rel (%p338) target = $region52
        $region51: #{tpu_custom_call.1} parent=47 // pred_region
          %s341 = smul.u32 37, %s20
          %s342 = ssub.s32 38, %s341
          %p343 = scmp.lt.s32.totalorder %s342, 37
          %s344 = scalar_select %p343, %s342, 37
          %s345 = smul.u32 128, %s344
          %p346 = scmp.lt.s32.totalorder %s341, 37
          %s347 = scalar_select %p346, %s341, 37
          %s348 = smul.addr %s347, 8
          %s349 = scalar_lea.vmem %s0, %s348
          %s350 = smul.u32 37, %s20
          %s351 = ssub.s32 38, %s350
          %p352 = scmp.lt.s32.totalorder %s351, 37
          %s353 = scalar_select %p352, %s351, 37
          %s354 = smul.u32 128, %s353
        $region52: #{tpu_custom_call.1} parent=47 // pred_fallthru
          _
        // Predicated region
        $region53: #{tpu_custom_call.1} parent=47 // pred_check
          %p355 = pneg %p66
        $region54: #{tpu_custom_call.1} parent=47 // pred_check_branch
          %357 = sbr.rel (%p355) target = $region56
        $region55: #{tpu_custom_call.1} parent=47 // pred_region
          %s358 = smul.u32 37, %s20
          %s359 = ssub.s32 38, %s358
          %p360 = scmp.lt.s32.totalorder %s359, 37
          %s361 = scalar_select %p360, %s359, 37
          %s362 = smul.u32 128, %s361
          %p363 = scmp.lt.s32.totalorder %s358, 37
          %s364 = scalar_select %p363, %s358, 37
          %s365 = smul.addr %s364, 8
          %s366 = scalar_lea.vmem %s1, %s365
          %s367 = smul.u32 37, %s20
          %s368 = ssub.s32 38, %s367
          %p369 = scmp.lt.s32.totalorder %s368, 37
          %s370 = scalar_select %p369, %s368, 37
          %s371 = smul.u32 128, %s370
        $region56: #{tpu_custom_call.1} parent=47 // pred_fallthru
          _
      $region48: #{tpu_custom_call.1} parent=5 // pred_fallthru
        _
      %p372 = scmp.le.s32.totalorder 1, %s20
      %p373 = scmp.lt.s32.totalorder %s20, 3
      %p374 = pnand %p372, %p373
      %p375 = pneg %p374
      // Predicated region
      $region57: #{tpu_custom_call.1} parent=5 // pred_check
        _
      $region58: #{tpu_custom_call.1} parent=5 // pred_check_branch
        %377 = sbr.rel (%p374) target = $region60
      $region59: #{tpu_custom_call.1} parent=5 // pred_region
        %s378 = ssub.s32 %s20, 1
        // Predicated region
        $region61: #{tpu_custom_call.1} parent=59 // pred_check
          %p379 = pneg %p114
        $region62: #{tpu_custom_call.1} parent=59 // pred_check_branch
          %381 = sbr.rel (%p379) target = $region64
        $region63: #{tpu_custom_call.1} parent=59 // pred_region
          %382 = dma.done [#allocation4], 16
        $region64: #{tpu_custom_call.1} parent=59 // pred_fallthru
          _
        %383 = sfence
        %s384 = smul.u32 37, %s25
        %s385 = ssub.s32 38, %s384
        %p386 = scmp.lt.s32.totalorder %s385, 37
        %s387 = scalar_select %p386, %s385, 37
        %s388 = smul.u32 128, %s387
        %p389 = scmp.lt.s32.totalorder %s384, 37
        %s390 = scalar_select %p389, %s384, 37
        %s391 = smul.addr %s390, 8
        %s392 = scalar_lea.vmem %s0, %s391
        %p393 = pneg %p46
        %p394 = pneg %p43
        %s395 = smul.u32 37, %s25
        %s396 = ssub.s32 38, %s395
        %p397 = scmp.lt.s32.totalorder %s396, 37
        %s398 = scalar_select %p397, %s396, 37
        %s399 = smul.u32 128, %s398
        %p400 = scmp.lt.s32.totalorder %s395, 37
        %s401 = scalar_select %p400, %s395, 37
        %s402 = smul.addr %s401, 8
        %s403 = scalar_lea.vmem %s1, %s402
        %p404 = pneg %p72
        %p405 = pneg %p69
        %p406 = pneg %p93
        %p407 = pneg %p90
        %p408 = pneg %p114
        %p409 = pneg %p111
        %p410 = pneg %p135
        %p411 = pneg %p132
        %p412 = pneg %p156
        %p413 = pneg %p153
        %p414 = pneg %p177
        %p415 = pneg %p174
        %p416 = pneg %p198
        %p417 = pneg %p195
        %p418 = pneg %p219
        %p419 = pneg %p216
        %p420 = pneg %p240
        %p421 = pneg %p237
        %p422 = pneg %p266
        %p423 = pneg %p263
        %s424 = sand.u32 %s253, 1
        %s425 = sand.u32 %s253, 1
        %s426 = smul.addr %s425, 296
        %s427 = scalar_lea.vmem [#allocation5], %s426
        %p428 = pneg %p287
        %p429 = pneg %p284
        %s430 = smul.u32 37, %s25
        %s431 = ssub.s32 38, %s430
        %p432 = scmp.lt.s32.totalorder %s431, 37
        %s433 = scalar_select %p432, %s431, 37
        %s434 = smul.u32 128, %s433
        %p435 = scmp.lt.s32.totalorder %s430, 37
        %s436 = scalar_select %p435, %s430, 37
        %s437 = smul.addr %s436, 8
        %s438 = scalar_lea.vmem %s0, %s437
        %s439 = smul.u32 37, %s25
        %s440 = ssub.s32 38, %s439
        %p441 = scmp.lt.s32.totalorder %s440, 37
        %s442 = scalar_select %p441, %s440, 37
        %s443 = smul.u32 128, %s442
        %s444 = smul.u32 37, %s25
        %s445 = ssub.s32 38, %s444
        %p446 = scmp.lt.s32.totalorder %s445, 37
        %s447 = scalar_select %p446, %s445, 37
        %s448 = smul.u32 128, %s447
        %p449 = scmp.lt.s32.totalorder %s444, 37
        %s450 = scalar_select %p449, %s444, 37
        %s451 = smul.addr %s450, 8
        %s452 = scalar_lea.vmem %s1, %s451
        %s453 = smul.u32 37, %s25
        %s454 = ssub.s32 38, %s453
        %p455 = scmp.lt.s32.totalorder %s454, 37
        %s456 = scalar_select %p455, %s454, 37
        %s457 = smul.u32 128, %s456
        %s458 = smul.u32 37, %s25
        %s459 = ssub.s32 38, %s458
        %p460 = scmp.lt.s32.totalorder %s459, 37
        %s461 = scalar_select %p460, %s459, 37
        %s462 = smul.u32 128, %s461
        %s464 = smul.u32 %s25, 296
        %v465 = vlaneseq
        %v466 = vshrl.u32 %v465, 7
        %v467 = vadd.s32 %v466, 8
        %v468 = vadd.s32 %v466, 16
        %v469 = vadd.s32 %v466, 24
        %v470 = vadd.s32 %v466, 32
        %v471 = vadd.s32 %v466, 40
        %v472 = vadd.s32 %v466, 48
        %v473 = vadd.s32 %v466, 56
        %v474 = vadd.s32 %v466, 64
        %v475 = vadd.s32 %v466, 72
        %v476 = vadd.s32 %v466, 80
        %v477 = vadd.s32 %v466, 88
        %v478 = vadd.s32 %v466, 96
        %v479 = vadd.s32 %v466, 104
        %v480 = vadd.s32 %v466, 112
        %v481 = vadd.s32 %v466, 120
        %v482 = vadd.s32 %v466, 128
        %v483 = vadd.s32 %v466, 136
        %v484 = vadd.s32 %v466, 144
        %v485 = vadd.s32 %v466, 152
        %v486 = vadd.s32 %v466, 160
        %v487 = vadd.s32 %v466, 168
        %v488 = vadd.s32 %v466, 176
        %v489 = vadd.s32 %v466, 184
        %v490 = vadd.s32 %v466, 192
        %v491 = vadd.s32 %v466, 200
        %v492 = vadd.s32 %v466, 208
        %v493 = vadd.s32 %v466, 216
        %v494 = vadd.s32 %v466, 224
        %v495 = vadd.s32 %v466, 232
        %v496 = vadd.s32 %v466, 240
        %v497 = vadd.s32 %v466, 248
        %v498 = vadd.s32 %v466, 256
        %v499 = vadd.s32 %v466, 264
        %v500 = vadd.s32 %v466, 272
        %v501 = vadd.s32 %v466, 280
        %v502 = vadd.s32 %v466, 288
        %v503 = vstv %s464
        %v504 = vadd.s32 %v503, %v466
        %v505 = vadd.s32 %v503, %v467
        %v506 = vadd.s32 %v503, %v468
        %v507 = vadd.s32 %v503, %v469
        %v508 = vadd.s32 %v503, %v470
        %v509 = vadd.s32 %v503, %v471
        %v510 = vadd.s32 %v503, %v472
        %v511 = vadd.s32 %v503, %v473
        %v512 = vadd.s32 %v503, %v474
        %v513 = vadd.s32 %v503, %v475
        %v514 = vadd.s32 %v503, %v476
        %v515 = vadd.s32 %v503, %v477
        %v516 = vadd.s32 %v503, %v478
        %v517 = vadd.s32 %v503, %v479
        %v518 = vadd.s32 %v503, %v480
        %v519 = vadd.s32 %v503, %v481
        %v520 = vadd.s32 %v503, %v482
        %v521 = vadd.s32 %v503, %v483
        %v522 = vadd.s32 %v503, %v484
        %v523 = vadd.s32 %v503, %v485
        %v524 = vadd.s32 %v503, %v486
        %v525 = vadd.s32 %v503, %v487
        %v526 = vadd.s32 %v503, %v488
        %v527 = vadd.s32 %v503, %v489
        %v528 = vadd.s32 %v503, %v490
        %v529 = vadd.s32 %v503, %v491
        %v530 = vadd.s32 %v503, %v492
        %v531 = vadd.s32 %v503, %v493
        %v532 = vadd.s32 %v503, %v494
        %v533 = vadd.s32 %v503, %v495
        %v534 = vadd.s32 %v503, %v496
        %v535 = vadd.s32 %v503, %v497
        %v536 = vadd.s32 %v503, %v498
        %v537 = vadd.s32 %v503, %v499
        %v538 = vadd.s32 %v503, %v500
        %v539 = vadd.s32 %v503, %v501
        %v540 = vadd.s32 %v503, %v502
        %vm541 = vcmp.lt.s32.totalorder %v504, 300
        %vm542 = vcmp.lt.s32.totalorder %v505, 300
        %vm543 = vcmp.lt.s32.totalorder %v506, 300
        %vm544 = vcmp.lt.s32.totalorder %v507, 300
        %vm545 = vcmp.lt.s32.totalorder %v508, 300
        %vm546 = vcmp.lt.s32.totalorder %v509, 300
        %vm547 = vcmp.lt.s32.totalorder %v510, 300
        %vm548 = vcmp.lt.s32.totalorder %v511, 300
        %vm549 = vcmp.lt.s32.totalorder %v512, 300
        %vm550 = vcmp.lt.s32.totalorder %v513, 300
        %vm551 = vcmp.lt.s32.totalorder %v514, 300
        %vm552 = vcmp.lt.s32.totalorder %v515, 300
        %vm553 = vcmp.lt.s32.totalorder %v516, 300
        %vm554 = vcmp.lt.s32.totalorder %v517, 300
        %vm555 = vcmp.lt.s32.totalorder %v518, 300
        %vm556 = vcmp.lt.s32.totalorder %v519, 300
        %vm557 = vcmp.lt.s32.totalorder %v520, 300
        %vm558 = vcmp.lt.s32.totalorder %v521, 300
        %vm559 = vcmp.lt.s32.totalorder %v522, 300
        %vm560 = vcmp.lt.s32.totalorder %v523, 300
        %vm561 = vcmp.lt.s32.totalorder %v524, 300
        %vm562 = vcmp.lt.s32.totalorder %v525, 300
        %vm563 = vcmp.lt.s32.totalorder %v526, 300
        %vm564 = vcmp.lt.s32.totalorder %v527, 300
        %vm565 = vcmp.lt.s32.totalorder %v528, 300
        %vm566 = vcmp.lt.s32.totalorder %v529, 300
        %vm567 = vcmp.lt.s32.totalorder %v530, 300
        %vm568 = vcmp.lt.s32.totalorder %v531, 300
        %vm569 = vcmp.lt.s32.totalorder %v532, 300
        %vm570 = vcmp.lt.s32.totalorder %v533, 300
        %vm571 = vcmp.lt.s32.totalorder %v534, 300
        %vm572 = vcmp.lt.s32.totalorder %v535, 300
        %vm573 = vcmp.lt.s32.totalorder %v536, 300
        %vm574 = vcmp.lt.s32.totalorder %v537, 300
        %vm575 = vcmp.lt.s32.totalorder %v538, 300
        %vm576 = vcmp.lt.s32.totalorder %v539, 300
        %vm577 = vcmp.lt.s32.totalorder %v540, 300
        %v578 = vld [vmem:[%s438] sm:$0xff]
        %v579 = vld [vmem:[%s438 + $0x8] sm:$0xff]
        %v580 = vld [vmem:[%s438 + $0x10] sm:$0xff]
        %v581 = vld [vmem:[%s438 + $0x18] sm:$0xff]
        %v582 = vld [vmem:[%s438 + $0x20] sm:$0xff]
        %v583 = vld [vmem:[%s438 + $0x28] sm:$0xff]
        %v584 = vld [vmem:[%s438 + $0x30] sm:$0xff]
        %v585 = vld [vmem:[%s438 + $0x38] sm:$0xff]
        %v586 = vld [vmem:[%s438 + $0x40] sm:$0xff]
        %v587 = vld [vmem:[%s438 + $0x48] sm:$0xff]
        %v588 = vld [vmem:[%s438 + $0x50] sm:$0xff]
        %v589 = vld [vmem:[%s438 + $0x58] sm:$0xff]
        %v590 = vld [vmem:[%s438 + $0x60] sm:$0xff]
        %v591 = vld [vmem:[%s438 + $0x68] sm:$0xff]
        %v592 = vld [vmem:[%s438 + $0x70] sm:$0xff]
        %v593 = vld [vmem:[%s438 + $0x78] sm:$0xff]
        %v594 = vld [vmem:[%s438 + $0x80] sm:$0xff]
        %v595 = vld [vmem:[%s438 + $0x88] sm:$0xff]
        %v596 = vld [vmem:[%s438 + $0x90] sm:$0xff]
        %v597 = vld [vmem:[%s438 + $0x98] sm:$0xff]
        %v598 = vld [vmem:[%s438 + $0xa0] sm:$0xff]
        %v599 = vld [vmem:[%s438 + $0xa8] sm:$0xff]
        %v600 = vld [vmem:[%s438 + $0xb0] sm:$0xff]
        %v601 = vld [vmem:[%s438 + $0xb8] sm:$0xff]
        %v602 = vld [vmem:[%s438 + $0xc0] sm:$0xff]
        %v603 = vld [vmem:[%s438 + $0xc8] sm:$0xff]
        %v604 = vld [vmem:[%s438 + $0xd0] sm:$0xff]
        %v605 = vld [vmem:[%s438 + $0xd8] sm:$0xff]
        %v606 = vld [vmem:[%s438 + $0xe0] sm:$0xff]
        %v607 = vld [vmem:[%s438 + $0xe8] sm:$0xff]
        %v608 = vld [vmem:[%s438 + $0xf0] sm:$0xff]
        %v609 = vld [vmem:[%s438 + $0xf8] sm:$0xff]
        %v610 = vld [vmem:[%s438 + $0x100] sm:$0xff]
        %v611 = vld [vmem:[%s438 + $0x108] sm:$0xff]
        %v612 = vld [vmem:[%s438 + $0x110] sm:$0xff]
        %v613 = vld [vmem:[%s438 + $0x118] sm:$0xff]
        %v614 = vld [vmem:[%s438 + $0x120] sm:$0xff]
        %v615 = vsel %vm541, 1, 0
        %v616 = vsel %vm542, 1, 0
        %v617 = vsel %vm543, 1, 0
        %v618 = vsel %vm544, 1, 0
        %v619 = vsel %vm545, 1, 0
        %v620 = vsel %vm546, 1, 0
        %v621 = vsel %vm547, 1, 0
        %v622 = vsel %vm548, 1, 0
        %v623 = vsel %vm549, 1, 0
        %v624 = vsel %vm550, 1, 0
        %v625 = vsel %vm551, 1, 0
        %v626 = vsel %vm552, 1, 0
        %v627 = vsel %vm553, 1, 0
        %v628 = vsel %vm554, 1, 0
        %v629 = vsel %vm555, 1, 0
        %v630 = vsel %vm556, 1, 0
        %v631 = vsel %vm557, 1, 0
        %v632 = vsel %vm558, 1, 0
        %v633 = vsel %vm559, 1, 0
        %v634 = vsel %vm560, 1, 0
        %v635 = vsel %vm561, 1, 0
        %v636 = vsel %vm562, 1, 0
        %v637 = vsel %vm563, 1, 0
        %v638 = vsel %vm564, 1, 0
        %v639 = vsel %vm565, 1, 0
        %v640 = vsel %vm566, 1, 0
        %v641 = vsel %vm567, 1, 0
        %v642 = vsel %vm568, 1, 0
        %v643 = vsel %vm569, 1, 0
        %v644 = vsel %vm570, 1, 0
        %v645 = vsel %vm571, 1, 0
        %v646 = vsel %vm572, 1, 0
        %v647 = vsel %vm573, 1, 0
        %v648 = vsel %vm574, 1, 0
        %v649 = vsel %vm575, 1, 0
        %v650 = vsel %vm576, 1, 0
        %v651 = vsel %vm577, 1, 0
        %vm652 = vcmp.eq.s32.totalorder %v615, 1
        %vm653 = vcmp.eq.s32.totalorder %v616, 1
        %vm654 = vcmp.eq.s32.totalorder %v617, 1
        %vm655 = vcmp.eq.s32.totalorder %v618, 1
        %vm656 = vcmp.eq.s32.totalorder %v619, 1
        %vm657 = vcmp.eq.s32.totalorder %v620, 1
        %vm658 = vcmp.eq.s32.totalorder %v621, 1
        %vm659 = vcmp.eq.s32.totalorder %v622, 1
        %vm660 = vcmp.eq.s32.totalorder %v623, 1
        %vm661 = vcmp.eq.s32.totalorder %v624, 1
        %vm662 = vcmp.eq.s32.totalorder %v625, 1
        %vm663 = vcmp.eq.s32.totalorder %v626, 1
        %vm664 = vcmp.eq.s32.totalorder %v627, 1
        %vm665 = vcmp.eq.s32.totalorder %v628, 1
        %vm666 = vcmp.eq.s32.totalorder %v629, 1
        %vm667 = vcmp.eq.s32.totalorder %v630, 1
        %vm668 = vcmp.eq.s32.totalorder %v631, 1
        %vm669 = vcmp.eq.s32.totalorder %v632, 1
        %vm670 = vcmp.eq.s32.totalorder %v633, 1
        %vm671 = vcmp.eq.s32.totalorder %v634, 1
        %vm672 = vcmp.eq.s32.totalorder %v635, 1
        %vm673 = vcmp.eq.s32.totalorder %v636, 1
        %vm674 = vcmp.eq.s32.totalorder %v637, 1
        %vm675 = vcmp.eq.s32.totalorder %v638, 1
        %vm676 = vcmp.eq.s32.totalorder %v639, 1
        %vm677 = vcmp.eq.s32.totalorder %v640, 1
        %vm678 = vcmp.eq.s32.totalorder %v641, 1
        %vm679 = vcmp.eq.s32.totalorder %v642, 1
        %vm680 = vcmp.eq.s32.totalorder %v643, 1
        %vm681 = vcmp.eq.s32.totalorder %v644, 1
        %vm682 = vcmp.eq.s32.totalorder %v645, 1
        %vm683 = vcmp.eq.s32.totalorder %v646, 1
        %vm684 = vcmp.eq.s32.totalorder %v647, 1
        %vm685 = vcmp.eq.s32.totalorder %v648, 1
        %vm686 = vcmp.eq.s32.totalorder %v649, 1
        %vm687 = vcmp.eq.s32.totalorder %v650, 1
        %vm688 = vcmp.eq.s32.totalorder %v651, 1
        %v689 = vsel %vm652, %v578, 0.0
        %v690 = vsel %vm653, %v579, 0.0
        %v691 = vsel %vm654, %v580, 0.0
        %v692 = vsel %vm655, %v581, 0.0
        %v693 = vsel %vm656, %v582, 0.0
        %v694 = vsel %vm657, %v583, 0.0
        %v695 = vsel %vm658, %v584, 0.0
        %v696 = vsel %vm659, %v585, 0.0
        %v697 = vsel %vm660, %v586, 0.0
        %v698 = vsel %vm661, %v587, 0.0
        %v699 = vsel %vm662, %v588, 0.0
        %v700 = vsel %vm663, %v589, 0.0
        %v701 = vsel %vm664, %v590, 0.0
        %v702 = vsel %vm665, %v591, 0.0
        %v703 = vsel %vm666, %v592, 0.0
        %v704 = vsel %vm667, %v593, 0.0
        %v705 = vsel %vm668, %v594, 0.0
        %v706 = vsel %vm669, %v595, 0.0
        %v707 = vsel %vm670, %v596, 0.0
        %v708 = vsel %vm671, %v597, 0.0
        %v709 = vsel %vm672, %v598, 0.0
        %v710 = vsel %vm673, %v599, 0.0
        %v711 = vsel %vm674, %v600, 0.0
        %v712 = vsel %vm675, %v601, 0.0
        %v713 = vsel %vm676, %v602, 0.0
        %v714 = vsel %vm677, %v603, 0.0
        %v715 = vsel %vm678, %v604, 0.0
        %v716 = vsel %vm679, %v605, 0.0
        %v717 = vsel %vm680, %v606, 0.0
        %v718 = vsel %vm681, %v607, 0.0
        %v719 = vsel %vm682, %v608, 0.0
        %v720 = vsel %vm683, %v609, 0.0
        %v721 = vsel %vm684, %v610, 0.0
        %v722 = vsel %vm685, %v611, 0.0
        %v723 = vsel %vm686, %v612, 0.0
        %v724 = vsel %vm687, %v613, 0.0
        %v725 = vsel %vm688, %v614, 0.0
        %v726 = vld [vmem:[%s452] sm:$0xff]
        %v727 = vld [vmem:[%s452 + $0x8] sm:$0xff]
        %v728 = vld [vmem:[%s452 + $0x10] sm:$0xff]
        %v729 = vld [vmem:[%s452 + $0x18] sm:$0xff]
        %v730 = vld [vmem:[%s452 + $0x20] sm:$0xff]
        %v731 = vld [vmem:[%s452 + $0x28] sm:$0xff]
        %v732 = vld [vmem:[%s452 + $0x30] sm:$0xff]
        %v733 = vld [vmem:[%s452 + $0x38] sm:$0xff]
        %v734 = vld [vmem:[%s452 + $0x40] sm:$0xff]
        %v735 = vld [vmem:[%s452 + $0x48] sm:$0xff]
        %v736 = vld [vmem:[%s452 + $0x50] sm:$0xff]
        %v737 = vld [vmem:[%s452 + $0x58] sm:$0xff]
        %v738 = vld [vmem:[%s452 + $0x60] sm:$0xff]
        %v739 = vld [vmem:[%s452 + $0x68] sm:$0xff]
        %v740 = vld [vmem:[%s452 + $0x70] sm:$0xff]
        %v741 = vld [vmem:[%s452 + $0x78] sm:$0xff]
        %v742 = vld [vmem:[%s452 + $0x80] sm:$0xff]
        %v743 = vld [vmem:[%s452 + $0x88] sm:$0xff]
        %v744 = vld [vmem:[%s452 + $0x90] sm:$0xff]
        %v745 = vld [vmem:[%s452 + $0x98] sm:$0xff]
        %v746 = vld [vmem:[%s452 + $0xa0] sm:$0xff]
        %v747 = vld [vmem:[%s452 + $0xa8] sm:$0xff]
        %v748 = vld [vmem:[%s452 + $0xb0] sm:$0xff]
        %v749 = vld [vmem:[%s452 + $0xb8] sm:$0xff]
        %v750 = vld [vmem:[%s452 + $0xc0] sm:$0xff]
        %v751 = vld [vmem:[%s452 + $0xc8] sm:$0xff]
        %v752 = vld [vmem:[%s452 + $0xd0] sm:$0xff]
        %v753 = vld [vmem:[%s452 + $0xd8] sm:$0xff]
        %v754 = vld [vmem:[%s452 + $0xe0] sm:$0xff]
        %v755 = vld [vmem:[%s452 + $0xe8] sm:$0xff]
        %v756 = vld [vmem:[%s452 + $0xf0] sm:$0xff]
        %v757 = vld [vmem:[%s452 + $0xf8] sm:$0xff]
        %v758 = vld [vmem:[%s452 + $0x100] sm:$0xff]
        %v759 = vld [vmem:[%s452 + $0x108] sm:$0xff]
        %v760 = vld [vmem:[%s452 + $0x110] sm:$0xff]
        %v761 = vld [vmem:[%s452 + $0x118] sm:$0xff]
        %v762 = vld [vmem:[%s452 + $0x120] sm:$0xff]
        %v763 = vsel %vm541, %v726, 0.0
        %v764 = vsel %vm542, %v727, 0.0
        %v765 = vsel %vm543, %v728, 0.0
        %v766 = vsel %vm544, %v729, 0.0
        %v767 = vsel %vm545, %v730, 0.0
        %v768 = vsel %vm546, %v731, 0.0
        %v769 = vsel %vm547, %v732, 0.0
        %v770 = vsel %vm548, %v733, 0.0
        %v771 = vsel %vm549, %v734, 0.0
        %v772 = vsel %vm550, %v735, 0.0
        %v773 = vsel %vm551, %v736, 0.0
        %v774 = vsel %vm552, %v737, 0.0
        %v775 = vsel %vm553, %v738, 0.0
        %v776 = vsel %vm554, %v739, 0.0
        %v777 = vsel %vm555, %v740, 0.0
        %v778 = vsel %vm556, %v741, 0.0
        %v779 = vsel %vm557, %v742, 0.0
        %v780 = vsel %vm558, %v743, 0.0
        %v781 = vsel %vm559, %v744, 0.0
        %v782 = vsel %vm560, %v745, 0.0
        %v783 = vsel %vm561, %v746, 0.0
        %v784 = vsel %vm562, %v747, 0.0
        %v785 = vsel %vm563, %v748, 0.0
        %v786 = vsel %vm564, %v749, 0.0
        %v787 = vsel %vm565, %v750, 0.0
        %v788 = vsel %vm566, %v751, 0.0
        %v789 = vsel %vm567, %v752, 0.0
        %v790 = vsel %vm568, %v753, 0.0
        %v791 = vsel %vm569, %v754, 0.0
        %v792 = vsel %vm570, %v755, 0.0
        %v793 = vsel %vm571, %v756, 0.0
        %v794 = vsel %vm572, %v757, 0.0
        %v795 = vsel %vm573, %v758, 0.0
        %v796 = vsel %vm574, %v759, 0.0
        %v797 = vsel %vm575, %v760, 0.0
        %v798 = vsel %vm576, %v761, 0.0
        %v799 = vsel %vm577, %v762, 0.0
        %s800 = sld [smem:[#allocation2]]
        %s801 = sld [smem:[#allocation2 + $0x1]]
        %vm802 = vcmp.ne.f32.partialorder %v763, 0.0
        %vm803 = vcmp.ne.f32.partialorder %v764, 0.0
        %vm804 = vcmp.ne.f32.partialorder %v765, 0.0
        %vm805 = vcmp.ne.f32.partialorder %v766, 0.0
        %vm806 = vcmp.ne.f32.partialorder %v767, 0.0
        %vm807 = vcmp.ne.f32.partialorder %v768, 0.0
        %vm808 = vcmp.ne.f32.partialorder %v769, 0.0
        %vm809 = vcmp.ne.f32.partialorder %v770, 0.0
        %vm810 = vcmp.ne.f32.partialorder %v771, 0.0
        %vm811 = vcmp.ne.f32.partialorder %v772, 0.0
        %vm812 = vcmp.ne.f32.partialorder %v773, 0.0
        %vm813 = vcmp.ne.f32.partialorder %v774, 0.0
        %vm814 = vcmp.ne.f32.partialorder %v775, 0.0
        %vm815 = vcmp.ne.f32.partialorder %v776, 0.0
        %vm816 = vcmp.ne.f32.partialorder %v777, 0.0
        %vm817 = vcmp.ne.f32.partialorder %v778, 0.0
        %vm818 = vcmp.ne.f32.partialorder %v779, 0.0
        %vm819 = vcmp.ne.f32.partialorder %v780, 0.0
        %vm820 = vcmp.ne.f32.partialorder %v781, 0.0
        %vm821 = vcmp.ne.f32.partialorder %v782, 0.0
        %vm822 = vcmp.ne.f32.partialorder %v783, 0.0
        %vm823 = vcmp.ne.f32.partialorder %v784, 0.0
        %vm824 = vcmp.ne.f32.partialorder %v785, 0.0
        %vm825 = vcmp.ne.f32.partialorder %v786, 0.0
        %vm826 = vcmp.ne.f32.partialorder %v787, 0.0
        %vm827 = vcmp.ne.f32.partialorder %v788, 0.0
        %vm828 = vcmp.ne.f32.partialorder %v789, 0.0
        %vm829 = vcmp.ne.f32.partialorder %v790, 0.0
        %vm830 = vcmp.ne.f32.partialorder %v791, 0.0
        %vm831 = vcmp.ne.f32.partialorder %v792, 0.0
        %vm832 = vcmp.ne.f32.partialorder %v793, 0.0
        %vm833 = vcmp.ne.f32.partialorder %v794, 0.0
        %vm834 = vcmp.ne.f32.partialorder %v795, 0.0
        %vm835 = vcmp.ne.f32.partialorder %v796, 0.0
        %vm836 = vcmp.ne.f32.partialorder %v797, 0.0
        %vm837 = vcmp.ne.f32.partialorder %v798, 0.0
        %vm838 = vcmp.ne.f32.partialorder %v799, 0.0
        %v839 = vld [vmem:[%s2] sm:$0x1]
        %v840 = vsel %vm802, 1, 0
        %v841 = vsel %vm803, 1, 0
        %v842 = vsel %vm804, 1, 0
        %v843 = vsel %vm805, 1, 0
        %v844 = vsel %vm806, 1, 0
        %v845 = vsel %vm807, 1, 0
        %v846 = vsel %vm808, 1, 0
        %v847 = vsel %vm809, 1, 0
        %v848 = vsel %vm810, 1, 0
        %v849 = vsel %vm811, 1, 0
        %v850 = vsel %vm812, 1, 0
        %v851 = vsel %vm813, 1, 0
        %v852 = vsel %vm814, 1, 0
        %v853 = vsel %vm815, 1, 0
        %v854 = vsel %vm816, 1, 0
        %v855 = vsel %vm817, 1, 0
        %v856 = vsel %vm818, 1, 0
        %v857 = vsel %vm819, 1, 0
        %v858 = vsel %vm820, 1, 0
        %v859 = vsel %vm821, 1, 0
        %v860 = vsel %vm822, 1, 0
        %v861 = vsel %vm823, 1, 0
        %v862 = vsel %vm824, 1, 0
        %v863 = vsel %vm825, 1, 0
        %v864 = vsel %vm826, 1, 0
        %v865 = vsel %vm827, 1, 0
        %v866 = vsel %vm828, 1, 0
        %v867 = vsel %vm829, 1, 0
        %v868 = vsel %vm830, 1, 0
        %v869 = vsel %vm831, 1, 0
        %v870 = vsel %vm832, 1, 0
        %v871 = vsel %vm833, 1, 0
        %v872 = vsel %vm834, 1, 0
        %v873 = vsel %vm835, 1, 0
        %v874 = vsel %vm836, 1, 0
        %v875 = vsel %vm837, 1, 0
        %v876 = vsel %vm838, 1, 0
        %877 = vset.pattern.permute.xlu0 0
        %878 = vperm.xlu0 %877, %v840
        %v879 = vpop.permute.xlu0 %878
        %880 = vset.pattern.permute.xlu0 0
        %881 = vperm.xlu0 %880, %v841
        %v882 = vpop.permute.xlu0 %881
        %883 = vset.pattern.permute.xlu0 0
        %884 = vperm.xlu0 %883, %v842
        %v885 = vpop.permute.xlu0 %884
        %886 = vset.pattern.permute.xlu0 0
        %887 = vperm.xlu0 %886, %v843
        %v888 = vpop.permute.xlu0 %887
        %889 = vset.pattern.permute.xlu0 0
        %890 = vperm.xlu0 %889, %v844
        %v891 = vpop.permute.xlu0 %890
        %892 = vset.pattern.permute.xlu0 0
        %893 = vperm.xlu0 %892, %v845
        %v894 = vpop.permute.xlu0 %893
        %895 = vset.pattern.permute.xlu0 0
        %896 = vperm.xlu0 %895, %v846
        %v897 = vpop.permute.xlu0 %896
        %898 = vset.pattern.permute.xlu0 0
        %899 = vperm.xlu0 %898, %v847
        %v900 = vpop.permute.xlu0 %899
        %901 = vset.pattern.permute.xlu0 0
        %902 = vperm.xlu0 %901, %v848
        %v903 = vpop.permute.xlu0 %902
        %904 = vset.pattern.permute.xlu0 0
        %905 = vperm.xlu0 %904, %v849
        %v906 = vpop.permute.xlu0 %905
        %907 = vset.pattern.permute.xlu0 0
        %908 = vperm.xlu0 %907, %v850
        %v909 = vpop.permute.xlu0 %908
        %910 = vset.pattern.permute.xlu0 0
        %911 = vperm.xlu0 %910, %v851
        %v912 = vpop.permute.xlu0 %911
        %913 = vset.pattern.permute.xlu0 0
        %914 = vperm.xlu0 %913, %v852
        %v915 = vpop.permute.xlu0 %914
        %916 = vset.pattern.permute.xlu0 0
        %917 = vperm.xlu0 %916, %v853
        %v918 = vpop.permute.xlu0 %917
        %919 = vset.pattern.permute.xlu0 0
        %920 = vperm.xlu0 %919, %v854
        %v921 = vpop.permute.xlu0 %920
        %922 = vset.pattern.permute.xlu0 0
        %923 = vperm.xlu0 %922, %v855
        %v924 = vpop.permute.xlu0 %923
        %925 = vset.pattern.permute.xlu0 0
        %926 = vperm.xlu0 %925, %v856
        %v927 = vpop.permute.xlu0 %926
        %928 = vset.pattern.permute.xlu0 0
        %929 = vperm.xlu0 %928, %v857
        %v930 = vpop.permute.xlu0 %929
        %931 = vset.pattern.permute.xlu0 0
        %932 = vperm.xlu0 %931, %v858
        %v933 = vpop.permute.xlu0 %932
        %934 = vset.pattern.permute.xlu0 0
        %935 = vperm.xlu0 %934, %v859
        %v936 = vpop.permute.xlu0 %935
        %937 = vset.pattern.permute.xlu0 0
        %938 = vperm.xlu0 %937, %v860
        %v939 = vpop.permute.xlu0 %938
        %940 = vset.pattern.permute.xlu0 0
        %941 = vperm.xlu0 %940, %v861
        %v942 = vpop.permute.xlu0 %941
        %943 = vset.pattern.permute.xlu0 0
        %944 = vperm.xlu0 %943, %v862
        %v945 = vpop.permute.xlu0 %944
        %946 = vset.pattern.permute.xlu0 0
        %947 = vperm.xlu0 %946, %v863
        %v948 = vpop.permute.xlu0 %947
        %949 = vset.pattern.permute.xlu0 0
        %950 = vperm.xlu0 %949, %v864
        %v951 = vpop.permute.xlu0 %950
        %952 = vset.pattern.permute.xlu0 0
        %953 = vperm.xlu0 %952, %v865
        %v954 = vpop.permute.xlu0 %953
        %955 = vset.pattern.permute.xlu0 0
        %956 = vperm.xlu0 %955, %v866
        %v957 = vpop.permute.xlu0 %956
        %958 = vset.pattern.permute.xlu0 0
        %959 = vperm.xlu0 %958, %v867
        %v960 = vpop.permute.xlu0 %959
        %961 = vset.pattern.permute.xlu0 0
        %962 = vperm.xlu0 %961, %v868
        %v963 = vpop.permute.xlu0 %962
        %964 = vset.pattern.permute.xlu0 0
        %965 = vperm.xlu0 %964, %v869
        %v966 = vpop.permute.xlu0 %965
        %967 = vset.pattern.permute.xlu0 0
        %968 = vperm.xlu0 %967, %v870
        %v969 = vpop.permute.xlu0 %968
        %970 = vset.pattern.permute.xlu0 0
        %971 = vperm.xlu0 %970, %v871
        %v972 = vpop.permute.xlu0 %971
        %973 = vset.pattern.permute.xlu0 0
        %974 = vperm.xlu0 %973, %v872
        %v975 = vpop.permute.xlu0 %974
        %976 = vset.pattern.permute.xlu0 0
        %977 = vperm.xlu0 %976, %v873
        %v978 = vpop.permute.xlu0 %977
        %979 = vset.pattern.permute.xlu0 0
        %980 = vperm.xlu0 %979, %v874
        %v981 = vpop.permute.xlu0 %980
        %982 = vset.pattern.permute.xlu0 0
        %983 = vperm.xlu0 %982, %v875
        %v984 = vpop.permute.xlu0 %983
        %985 = vset.pattern.permute.xlu0 0
        %986 = vperm.xlu0 %985, %v876
        %v987 = vpop.permute.xlu0 %986
        %vm988 = vcmp.eq.s32.totalorder %v879, 1
        %vm989 = vcmp.eq.s32.totalorder %v882, 1
        %vm990 = vcmp.eq.s32.totalorder %v885, 1
        %vm991 = vcmp.eq.s32.totalorder %v888, 1
        %vm992 = vcmp.eq.s32.totalorder %v891, 1
        %vm993 = vcmp.eq.s32.totalorder %v894, 1
        %vm994 = vcmp.eq.s32.totalorder %v897, 1
        %vm995 = vcmp.eq.s32.totalorder %v900, 1
        %vm996 = vcmp.eq.s32.totalorder %v903, 1
        %vm997 = vcmp.eq.s32.totalorder %v906, 1
        %vm998 = vcmp.eq.s32.totalorder %v909, 1
        %vm999 = vcmp.eq.s32.totalorder %v912, 1
        %vm1000 = vcmp.eq.s32.totalorder %v915, 1
        %vm1001 = vcmp.eq.s32.totalorder %v918, 1
        %vm1002 = vcmp.eq.s32.totalorder %v921, 1
        %vm1003 = vcmp.eq.s32.totalorder %v924, 1
        %vm1004 = vcmp.eq.s32.totalorder %v927, 1
        %vm1005 = vcmp.eq.s32.totalorder %v930, 1
        %vm1006 = vcmp.eq.s32.totalorder %v933, 1
        %vm1007 = vcmp.eq.s32.totalorder %v936, 1
        %vm1008 = vcmp.eq.s32.totalorder %v939, 1
        %vm1009 = vcmp.eq.s32.totalorder %v942, 1
        %vm1010 = vcmp.eq.s32.totalorder %v945, 1
        %vm1011 = vcmp.eq.s32.totalorder %v948, 1
        %vm1012 = vcmp.eq.s32.totalorder %v951, 1
        %vm1013 = vcmp.eq.s32.totalorder %v954, 1
        %vm1014 = vcmp.eq.s32.totalorder %v957, 1
        %vm1015 = vcmp.eq.s32.totalorder %v960, 1
        %vm1016 = vcmp.eq.s32.totalorder %v963, 1
        %vm1017 = vcmp.eq.s32.totalorder %v966, 1
        %vm1018 = vcmp.eq.s32.totalorder %v969, 1
        %vm1019 = vcmp.eq.s32.totalorder %v972, 1
        %vm1020 = vcmp.eq.s32.totalorder %v975, 1
        %vm1021 = vcmp.eq.s32.totalorder %v978, 1
        %vm1022 = vcmp.eq.s32.totalorder %v981, 1
        %vm1023 = vcmp.eq.s32.totalorder %v984, 1
        %vm1024 = vcmp.eq.s32.totalorder %v987, 1
        %v1026 = vlaneseq
        %v1027 = vshrl.u32 %v1026, 7
        %v1028 = vsub.s32 0, %v1027
        %v1029 = vrot.slane %v839, %v1028
        %v1031 = vsel %vm988, %v1029, %v689
        %v1032 = vsel %vm989, %v1029, %v690
        %v1033 = vsel %vm990, %v1029, %v691
        %v1034 = vsel %vm991, %v1029, %v692
        %v1035 = vsel %vm992, %v1029, %v693
        %v1036 = vsel %vm993, %v1029, %v694
        %v1037 = vsel %vm994, %v1029, %v695
        %v1038 = vsel %vm995, %v1029, %v696
        %v1039 = vsel %vm996, %v1029, %v697
        %v1040 = vsel %vm997, %v1029, %v698
        %v1041 = vsel %vm998, %v1029, %v699
        %v1042 = vsel %vm999, %v1029, %v700
        %v1043 = vsel %vm1000, %v1029, %v701
        %v1044 = vsel %vm1001, %v1029, %v702
        %v1045 = vsel %vm1002, %v1029, %v703
        %v1046 = vsel %vm1003, %v1029, %v704
        %v1047 = vsel %vm1004, %v1029, %v705
        %v1048 = vsel %vm1005, %v1029, %v706
        %v1049 = vsel %vm1006, %v1029, %v707
        %v1050 = vsel %vm1007, %v1029, %v708
        %v1051 = vsel %vm1008, %v1029, %v709
        %v1052 = vsel %vm1009, %v1029, %v710
        %v1053 = vsel %vm1010, %v1029, %v711
        %v1054 = vsel %vm1011, %v1029, %v712
        %v1055 = vsel %vm1012, %v1029, %v713
        %v1056 = vsel %vm1013, %v1029, %v714
        %v1057 = vsel %vm1014, %v1029, %v715
        %v1058 = vsel %vm1015, %v1029, %v716
        %v1059 = vsel %vm1016, %v1029, %v717
        %v1060 = vsel %vm1017, %v1029, %v718
        %v1061 = vsel %vm1018, %v1029, %v719
        %v1062 = vsel %vm1019, %v1029, %v720
        %v1063 = vsel %vm1020, %v1029, %v721
        %v1064 = vsel %vm1021, %v1029, %v722
        %v1065 = vsel %vm1022, %v1029, %v723
        %v1066 = vsel %vm1023, %v1029, %v724
        %v1067 = vsel %vm1024, %v1029, %v725
        %v1068 = vpack.c.bf16 %v1032, %v1031
        %v1069 = vpack.c.bf16 %v1034, %v1033
        %v1070 = vpack.c.bf16 %v1036, %v1035
        %v1071 = vpack.c.bf16 %v1038, %v1037
        %v1072 = vpack.c.bf16 %v1040, %v1039
        %v1073 = vpack.c.bf16 %v1042, %v1041
        %v1074 = vpack.c.bf16 %v1044, %v1043
        %v1075 = vpack.c.bf16 %v1046, %v1045
        %v1076 = vpack.c.bf16 %v1048, %v1047
        %v1077 = vpack.c.bf16 %v1050, %v1049
        %v1078 = vpack.c.bf16 %v1052, %v1051
        %v1079 = vpack.c.bf16 %v1054, %v1053
        %v1080 = vpack.c.bf16 %v1056, %v1055
        %v1081 = vpack.c.bf16 %v1058, %v1057
        %v1082 = vpack.c.bf16 %v1060, %v1059
        %v1083 = vpack.c.bf16 %v1062, %v1061
        %v1084 = vpack.c.bf16 %v1064, %v1063
        %v1085 = vpack.c.bf16 %v1066, %v1065
        %v1086 = vpack.c.bf16 %v1067, %v1067
        %v1087 = vld [vmem:[%s4] sm:$0xf]
        %v1088 = vld [vmem:[%s4 + $0x4] sm:$0xf]
        %v1089 = vld [vmem:[%s4 + $0x8] sm:$0xf]
        %v1090 = vld [vmem:[%s4 + $0xc] sm:$0xf]
        %v1091 = vld [vmem:[%s5] sm:$0x1]
        %v1093 = vlaneseq
        %v1094 = vshrl.u32 %v1093, 7
        %v1095 = vsub.s32 0, %v1094
        %v1096 = vrot.slane %v1091, %v1095
        %v1102 = vunpack.c.l.b16 %v1087
        %v1103 = vunpack.c.l.b16 %v1088
        %v1104 = vunpack.c.l.b16 %v1089
        %v1105 = vunpack.c.l.b16 %v1090
        %v1106 = vpack.c.b16 %v1103, %v1102
        %v1107 = vpack.c.b16 %v1105, %v1104
        %vm1110 = vcmask 261120
        %v1112 = vsel %vm1110, %v1068, 0
        %v1115 = vsel %vm1110, %v1069, 0
        %v1118 = vsel %vm1110, %v1070, 0
        %v1121 = vsel %vm1110, %v1071, 0
        %v1124 = vsel %vm1110, %v1072, 0
        %v1127 = vsel %vm1110, %v1073, 0
        %v1130 = vsel %vm1110, %v1074, 0
        %v1133 = vsel %vm1110, %v1075, 0
        %v1136 = vsel %vm1110, %v1076, 0
        %v1139 = vsel %vm1110, %v1077, 0
        %v1142 = vsel %vm1110, %v1078, 0
        %v1145 = vsel %vm1110, %v1079, 0
        %v1148 = vsel %vm1110, %v1080, 0
        %v1151 = vsel %vm1110, %v1081, 0
        %v1154 = vsel %vm1110, %v1082, 0
        %v1157 = vsel %vm1110, %v1083, 0
        %v1160 = vsel %vm1110, %v1084, 0
        %v1163 = vsel %vm1110, %v1085, 0
        %v1166 = vsel %vm1110, %v1086, 0
        %1168 = vmatprep.subr.bf16.mxu0 0
        %1169 = vmatpush1.bf16.msra.mxu0 0
        %1170 = vmatprep.subr.bf16.mxu0 0
        %1171 = vmatpush1.bf16.msra.mxu0 0
        %1172 = vmatprep.subr.bf16.mxu0 0
        %1173 = vmatpush1.bf16.msra.mxu0 0
        %1174 = vmatprep.subr.bf16.mxu0 0
        %1175 = vmatpush1.bf16.msra.mxu0 0
        %1176 = vmatprep.subr.bf16.mxu0 0
        %1177 = vmatpush1.bf16.msra.mxu0 0
        %1178 = vmatprep.subr.bf16.mxu0 0
        %1179 = vmatpush1.bf16.msra.mxu0 0
        %1180 = vmatprep.subr.bf16.mxu0 0
        %1181 = vmatpush1.bf16.msra.mxu0 %v1107
        %1182 = vmatprep.subr.bf16.mxu0 0
        %1183 = vmatpush1.bf16.msra.mxu0 %v1106
        %1184 = vmatprep.subr.bf16.mxu0 0
        %1185 = vmatpush2.bf16.msra.mxu0 0
        %1186 = vmatprep.subr.bf16.mxu0 0
        %1187 = vmatpush2.bf16.msra.mxu0 0
        %1188 = vmatprep.subr.bf16.mxu0 0
        %1189 = vmatpush2.bf16.msra.mxu0 0
        %1190 = vmatprep.subr.bf16.mxu0 0
        %1191 = vmatpush2.bf16.msra.mxu0 0
        %1192 = vmatprep.subr.bf16.mxu0 0
        %1193 = vmatpush2.bf16.msra.mxu0 0
        %1194 = vmatprep.subr.bf16.mxu0 0
        %1195 = vmatpush2.bf16.msra.mxu0 0
        %1196 = vmatprep.subr.bf16.mxu0 0
        %1197 = vmatpush2.bf16.msra.mxu0 0
        %1198 = vmatprep.subr.bf16.mxu0 0
        %1199 = vmatpush2.bf16.msra.mxu0 0
        %1200 = vmatprep.mubr.bf16.mxu0 0
        %1201 = vmatmul.mubr.bf16.gmra.mxu0 %v1112
        %v1202 = vpop.f32.mrf.mxu0
        %v1203 = vadd.f32 %v1096, %v1202
        %v1204 = vpop.f32.mrf.mxu0
        %v1205 = vpop.f32.mrf.mxu0
        %v1206 = vadd.f32 %v1096, %v1205
        %v1207 = vpop.f32.mrf.mxu0
        %1208 = vmatprep.mubr.bf16.mxu0 0
        %1209 = vmatmul.mubr.bf16.gmra.mxu0 %v1115
        %v1210 = vpop.f32.mrf.mxu0
        %v1211 = vadd.f32 %v1096, %v1210
        %v1212 = vpop.f32.mrf.mxu0
        %v1213 = vpop.f32.mrf.mxu0
        %v1214 = vadd.f32 %v1096, %v1213
        %v1215 = vpop.f32.mrf.mxu0
        %1216 = vmatprep.mubr.bf16.mxu0 0
        %1217 = vmatmul.mubr.bf16.gmra.mxu0 %v1118
        %v1218 = vpop.f32.mrf.mxu0
        %v1219 = vadd.f32 %v1096, %v1218
        %v1220 = vpop.f32.mrf.mxu0
        %v1221 = vpop.f32.mrf.mxu0
        %v1222 = vadd.f32 %v1096, %v1221
        %v1223 = vpop.f32.mrf.mxu0
        %1224 = vmatprep.mubr.bf16.mxu0 0
        %1225 = vmatmul.mubr.bf16.gmra.mxu0 %v1121
        %v1226 = vpop.f32.mrf.mxu0
        %v1227 = vadd.f32 %v1096, %v1226
        %v1228 = vpop.f32.mrf.mxu0
        %v1229 = vpop.f32.mrf.mxu0
        %v1230 = vadd.f32 %v1096, %v1229
        %v1231 = vpop.f32.mrf.mxu0
        %1232 = vmatprep.mubr.bf16.mxu0 0
        %1233 = vmatmul.mubr.bf16.gmra.mxu0 %v1124
        %v1234 = vpop.f32.mrf.mxu0
        %v1235 = vadd.f32 %v1096, %v1234
        %v1236 = vpop.f32.mrf.mxu0
        %v1237 = vpop.f32.mrf.mxu0
        %v1238 = vadd.f32 %v1096, %v1237
        %v1239 = vpop.f32.mrf.mxu0
        %1240 = vmatprep.mubr.bf16.mxu0 0
        %1241 = vmatmul.mubr.bf16.gmra.mxu0 %v1127
        %v1242 = vpop.f32.mrf.mxu0
        %v1243 = vadd.f32 %v1096, %v1242
        %v1244 = vpop.f32.mrf.mxu0
        %v1245 = vpop.f32.mrf.mxu0
        %v1246 = vadd.f32 %v1096, %v1245
        %v1247 = vpop.f32.mrf.mxu0
        %1248 = vmatprep.mubr.bf16.mxu0 0
        %1249 = vmatmul.mubr.bf16.gmra.mxu0 %v1130
        %v1250 = vpop.f32.mrf.mxu0
        %v1251 = vadd.f32 %v1096, %v1250
        %v1252 = vpop.f32.mrf.mxu0
        %v1253 = vpop.f32.mrf.mxu0
        %v1254 = vadd.f32 %v1096, %v1253
        %v1255 = vpop.f32.mrf.mxu0
        %1256 = vmatprep.mubr.bf16.mxu0 0
        %1257 = vmatmul.mubr.bf16.gmra.mxu0 %v1133
        %v1258 = vpop.f32.mrf.mxu0
        %v1259 = vadd.f32 %v1096, %v1258
        %v1260 = vpop.f32.mrf.mxu0
        %v1261 = vpop.f32.mrf.mxu0
        %v1262 = vadd.f32 %v1096, %v1261
        %v1263 = vpop.f32.mrf.mxu0
        %1264 = vmatprep.mubr.bf16.mxu0 0
        %1265 = vmatmul.mubr.bf16.gmra.mxu0 %v1136
        %v1266 = vpop.f32.mrf.mxu0
        %v1267 = vadd.f32 %v1096, %v1266
        %v1268 = vpop.f32.mrf.mxu0
        %v1269 = vpop.f32.mrf.mxu0
        %v1270 = vadd.f32 %v1096, %v1269
        %v1271 = vpop.f32.mrf.mxu0
        %1272 = vmatprep.mubr.bf16.mxu0 0
        %1273 = vmatmul.mubr.bf16.gmra.mxu0 %v1139
        %v1274 = vpop.f32.mrf.mxu0
        %v1275 = vadd.f32 %v1096, %v1274
        %v1276 = vpop.f32.mrf.mxu0
        %v1277 = vpop.f32.mrf.mxu0
        %v1278 = vadd.f32 %v1096, %v1277
        %v1279 = vpop.f32.mrf.mxu0
        %1280 = vmatprep.mubr.bf16.mxu0 0
        %1281 = vmatmul.mubr.bf16.gmra.mxu0 %v1142
        %v1282 = vpop.f32.mrf.mxu0
        %v1283 = vadd.f32 %v1096, %v1282
        %v1284 = vpop.f32.mrf.mxu0
        %v1285 = vpop.f32.mrf.mxu0
        %v1286 = vadd.f32 %v1096, %v1285
        %v1287 = vpop.f32.mrf.mxu0
        %1288 = vmatprep.mubr.bf16.mxu0 0
        %1289 = vmatmul.mubr.bf16.gmra.mxu0 %v1145
        %v1290 = vpop.f32.mrf.mxu0
        %v1291 = vadd.f32 %v1096, %v1290
        %v1292 = vpop.f32.mrf.mxu0
        %v1293 = vpop.f32.mrf.mxu0
        %v1294 = vadd.f32 %v1096, %v1293
        %v1295 = vpop.f32.mrf.mxu0
        %1296 = vmatprep.mubr.bf16.mxu0 0
        %1297 = vmatmul.mubr.bf16.gmra.mxu0 %v1148
        %v1298 = vpop.f32.mrf.mxu0
        %v1299 = vadd.f32 %v1096, %v1298
        %v1300 = vpop.f32.mrf.mxu0
        %v1301 = vpop.f32.mrf.mxu0
        %v1302 = vadd.f32 %v1096, %v1301
        %v1303 = vpop.f32.mrf.mxu0
        %1304 = vmatprep.mubr.bf16.mxu0 0
        %1305 = vmatmul.mubr.bf16.gmra.mxu0 %v1151
        %v1306 = vpop.f32.mrf.mxu0
        %v1307 = vadd.f32 %v1096, %v1306
        %v1308 = vpop.f32.mrf.mxu0
        %v1309 = vpop.f32.mrf.mxu0
        %v1310 = vadd.f32 %v1096, %v1309
        %v1311 = vpop.f32.mrf.mxu0
        %1312 = vmatprep.mubr.bf16.mxu0 0
        %1313 = vmatmul.mubr.bf16.gmra.mxu0 %v1154
        %v1314 = vpop.f32.mrf.mxu0
        %v1315 = vadd.f32 %v1096, %v1314
        %v1316 = vpop.f32.mrf.mxu0
        %v1317 = vpop.f32.mrf.mxu0
        %v1318 = vadd.f32 %v1096, %v1317
        %v1319 = vpop.f32.mrf.mxu0
        %1320 = vmatprep.mubr.bf16.mxu0 0
        %1321 = vmatmul.mubr.bf16.gmra.mxu0 %v1157
        %v1322 = vpop.f32.mrf.mxu0
        %v1323 = vadd.f32 %v1096, %v1322
        %v1324 = vpop.f32.mrf.mxu0
        %v1325 = vpop.f32.mrf.mxu0
        %v1326 = vadd.f32 %v1096, %v1325
        %v1327 = vpop.f32.mrf.mxu0
        %1328 = vmatprep.mubr.bf16.mxu0 0
        %1329 = vmatmul.mubr.bf16.gmra.mxu0 %v1160
        %v1330 = vpop.f32.mrf.mxu0
        %v1331 = vadd.f32 %v1096, %v1330
        %v1332 = vpop.f32.mrf.mxu0
        %v1333 = vpop.f32.mrf.mxu0
        %v1334 = vadd.f32 %v1096, %v1333
        %v1335 = vpop.f32.mrf.mxu0
        %1336 = vmatprep.mubr.bf16.mxu0 0
        %1337 = vmatmul.mubr.bf16.gmra.mxu0 %v1163
        %v1338 = vpop.f32.mrf.mxu0
        %v1339 = vadd.f32 %v1096, %v1338
        %v1340 = vpop.f32.mrf.mxu0
        %v1341 = vpop.f32.mrf.mxu0
        %v1342 = vadd.f32 %v1096, %v1341
        %v1343 = vpop.f32.mrf.mxu0
        %1344 = vmatprep.mubr.bf16.mxu0 0
        %1345 = vmatmul.mubr.bf16.gmra.mxu0 %v1166
        %v1346 = vpop.f32.mrf.mxu0
        %v1347 = vadd.f32 %v1096, %v1346
        %v1348 = vpop.f32.mrf.mxu0
        %v1349 = vpop.f32.mrf.mxu0
        %v1350 = vpop.f32.mrf.mxu0
        %1351 = vdwg.mxu0
        %vm1352 = vcmp.gt.f32.partialorder %v1203, 0.0
        %vm1353 = vcmp.gt.f32.partialorder %v1206, 0.0
        %vm1354 = vcmp.gt.f32.partialorder %v1211, 0.0
        %vm1355 = vcmp.gt.f32.partialorder %v1214, 0.0
        %vm1356 = vcmp.gt.f32.partialorder %v1219, 0.0
        %vm1357 = vcmp.gt.f32.partialorder %v1222, 0.0
        %vm1358 = vcmp.gt.f32.partialorder %v1227, 0.0
        %vm1359 = vcmp.gt.f32.partialorder %v1230, 0.0
        %vm1360 = vcmp.gt.f32.partialorder %v1235, 0.0
        %vm1361 = vcmp.gt.f32.partialorder %v1238, 0.0
        %vm1362 = vcmp.gt.f32.partialorder %v1243, 0.0
        %vm1363 = vcmp.gt.f32.partialorder %v1246, 0.0
        %vm1364 = vcmp.gt.f32.partialorder %v1251, 0.0
        %vm1365 = vcmp.gt.f32.partialorder %v1254, 0.0
        %vm1366 = vcmp.gt.f32.partialorder %v1259, 0.0
        %vm1367 = vcmp.gt.f32.partialorder %v1262, 0.0
        %vm1368 = vcmp.gt.f32.partialorder %v1267, 0.0
        %vm1369 = vcmp.gt.f32.partialorder %v1270, 0.0
        %vm1370 = vcmp.gt.f32.partialorder %v1275, 0.0
        %vm1371 = vcmp.gt.f32.partialorder %v1278, 0.0
        %vm1372 = vcmp.gt.f32.partialorder %v1283, 0.0
        %vm1373 = vcmp.gt.f32.partialorder %v1286, 0.0
        %vm1374 = vcmp.gt.f32.partialorder %v1291, 0.0
        %vm1375 = vcmp.gt.f32.partialorder %v1294, 0.0
        %vm1376 = vcmp.gt.f32.partialorder %v1299, 0.0
        %vm1377 = vcmp.gt.f32.partialorder %v1302, 0.0
        %vm1378 = vcmp.gt.f32.partialorder %v1307, 0.0
        %vm1379 = vcmp.gt.f32.partialorder %v1310, 0.0
        %vm1380 = vcmp.gt.f32.partialorder %v1315, 0.0
        %vm1381 = vcmp.gt.f32.partialorder %v1318, 0.0
        %vm1382 = vcmp.gt.f32.partialorder %v1323, 0.0
        %vm1383 = vcmp.gt.f32.partialorder %v1326, 0.0
        %vm1384 = vcmp.gt.f32.partialorder %v1331, 0.0
        %vm1385 = vcmp.gt.f32.partialorder %v1334, 0.0
        %vm1386 = vcmp.gt.f32.partialorder %v1339, 0.0
        %vm1387 = vcmp.gt.f32.partialorder %v1342, 0.0
        %vm1388 = vcmp.gt.f32.partialorder %v1347, 0.0
        %v1389 = vstv %s800
        %v1390 = vmul.f32 %v1389, %v1203
        %v1391 = vmul.f32 %v1389, %v1206
        %v1392 = vmul.f32 %v1389, %v1211
        %v1393 = vmul.f32 %v1389, %v1214
        %v1394 = vmul.f32 %v1389, %v1219
        %v1395 = vmul.f32 %v1389, %v1222
        %v1396 = vmul.f32 %v1389, %v1227
        %v1397 = vmul.f32 %v1389, %v1230
        %v1398 = vmul.f32 %v1389, %v1235
        %v1399 = vmul.f32 %v1389, %v1238
        %v1400 = vmul.f32 %v1389, %v1243
        %v1401 = vmul.f32 %v1389, %v1246
        %v1402 = vmul.f32 %v1389, %v1251
        %v1403 = vmul.f32 %v1389, %v1254
        %v1404 = vmul.f32 %v1389, %v1259
        %v1405 = vmul.f32 %v1389, %v1262
        %v1406 = vmul.f32 %v1389, %v1267
        %v1407 = vmul.f32 %v1389, %v1270
        %v1408 = vmul.f32 %v1389, %v1275
        %v1409 = vmul.f32 %v1389, %v1278
        %v1410 = vmul.f32 %v1389, %v1283
        %v1411 = vmul.f32 %v1389, %v1286
        %v1412 = vmul.f32 %v1389, %v1291
        %v1413 = vmul.f32 %v1389, %v1294
        %v1414 = vmul.f32 %v1389, %v1299
        %v1415 = vmul.f32 %v1389, %v1302
        %v1416 = vmul.f32 %v1389, %v1307
        %v1417 = vmul.f32 %v1389, %v1310
        %v1418 = vmul.f32 %v1389, %v1315
        %v1419 = vmul.f32 %v1389, %v1318
        %v1420 = vmul.f32 %v1389, %v1323
        %v1421 = vmul.f32 %v1389, %v1326
        %v1422 = vmul.f32 %v1389, %v1331
        %v1423 = vmul.f32 %v1389, %v1334
        %v1424 = vmul.f32 %v1389, %v1339
        %v1425 = vmul.f32 %v1389, %v1342
        %v1426 = vmul.f32 %v1389, %v1347
        %v1427 = vsel %vm1352, %v1203, %v1390
        %v1428 = vsel %vm1353, %v1206, %v1391
        %v1429 = vsel %vm1354, %v1211, %v1392
        %v1430 = vsel %vm1355, %v1214, %v1393
        %v1431 = vsel %vm1356, %v1219, %v1394
        %v1432 = vsel %vm1357, %v1222, %v1395
        %v1433 = vsel %vm1358, %v1227, %v1396
        %v1434 = vsel %vm1359, %v1230, %v1397
        %v1435 = vsel %vm1360, %v1235, %v1398
        %v1436 = vsel %vm1361, %v1238, %v1399
        %v1437 = vsel %vm1362, %v1243, %v1400
        %v1438 = vsel %vm1363, %v1246, %v1401
        %v1439 = vsel %vm1364, %v1251, %v1402
        %v1440 = vsel %vm1365, %v1254, %v1403
        %v1441 = vsel %vm1366, %v1259, %v1404
        %v1442 = vsel %vm1367, %v1262, %v1405
        %v1443 = vsel %vm1368, %v1267, %v1406
        %v1444 = vsel %vm1369, %v1270, %v1407
        %v1445 = vsel %vm1370, %v1275, %v1408
        %v1446 = vsel %vm1371, %v1278, %v1409
        %v1447 = vsel %vm1372, %v1283, %v1410
        %v1448 = vsel %vm1373, %v1286, %v1411
        %v1449 = vsel %vm1374, %v1291, %v1412
        %v1450 = vsel %vm1375, %v1294, %v1413
        %v1451 = vsel %vm1376, %v1299, %v1414
        %v1452 = vsel %vm1377, %v1302, %v1415
        %v1453 = vsel %vm1378, %v1307, %v1416
        %v1454 = vsel %vm1379, %v1310, %v1417
        %v1455 = vsel %vm1380, %v1315, %v1418
        %v1456 = vsel %vm1381, %v1318, %v1419
        %v1457 = vsel %vm1382, %v1323, %v1420
        %v1458 = vsel %vm1383, %v1326, %v1421
        %v1459 = vsel %vm1384, %v1331, %v1422
        %v1460 = vsel %vm1385, %v1334, %v1423
        %v1461 = vsel %vm1386, %v1339, %v1424
        %v1462 = vsel %vm1387, %v1342, %v1425
        %v1463 = vsel %vm1388, %v1347, %v1426
        %v1464 = vpack.c.bf16 %v1428, %v1427
        %v1465 = vpack.c.bf16 %v1430, %v1429
        %v1466 = vpack.c.bf16 %v1432, %v1431
        %v1467 = vpack.c.bf16 %v1434, %v1433
        %v1468 = vpack.c.bf16 %v1436, %v1435
        %v1469 = vpack.c.bf16 %v1438, %v1437
        %v1470 = vpack.c.bf16 %v1440, %v1439
        %v1471 = vpack.c.bf16 %v1442, %v1441
        %v1472 = vpack.c.bf16 %v1444, %v1443
        %v1473 = vpack.c.bf16 %v1446, %v1445
        %v1474 = vpack.c.bf16 %v1448, %v1447
        %v1475 = vpack.c.bf16 %v1450, %v1449
        %v1476 = vpack.c.bf16 %v1452, %v1451
        %v1477 = vpack.c.bf16 %v1454, %v1453
        %v1478 = vpack.c.bf16 %v1456, %v1455
        %v1479 = vpack.c.bf16 %v1458, %v1457
        %v1480 = vpack.c.bf16 %v1460, %v1459
        %v1481 = vpack.c.bf16 %v1462, %v1461
        %v1482 = vpack.c.bf16 %v1463, %v1463
        %v1483 = vld [vmem:[%s6] sm:$0xf]
        %v1484 = vld [vmem:[%s6 + $0x4] sm:$0xf]
        %v1485 = vld [vmem:[%s6 + $0x8] sm:$0xf]
        %v1486 = vld [vmem:[%s6 + $0xc] sm:$0xf]
        %v1487 = vld [vmem:[%s6 + $0x10] sm:$0xf]
        %v1488 = vld [vmem:[%s6 + $0x14] sm:$0xf]
        %v1489 = vld [vmem:[%s6 + $0x18] sm:$0xf]
        %v1490 = vld [vmem:[%s6 + $0x1c] sm:$0xf]
        %v1491 = vld [vmem:[%s6 + $0x20] sm:$0xf]
        %v1492 = vld [vmem:[%s6 + $0x24] sm:$0xf]
        %v1493 = vld [vmem:[%s6 + $0x28] sm:$0xf]
        %v1494 = vld [vmem:[%s6 + $0x2c] sm:$0xf]
        %v1495 = vld [vmem:[%s6 + $0x30] sm:$0xf]
        %v1496 = vld [vmem:[%s6 + $0x34] sm:$0xf]
        %v1497 = vld [vmem:[%s6 + $0x38] sm:$0xf]
        %v1498 = vld [vmem:[%s6 + $0x3c] sm:$0xf]
        %v1499 = vld [vmem:[%s7] sm:$0x1]
        %v1501 = vlaneseq
        %v1502 = vshrl.u32 %v1501, 7
        %v1503 = vsub.s32 0, %v1502
        %v1504 = vrot.slane %v1499, %v1503
        %v1522 = vunpack.c.l.b16 %v1483
        %v1523 = vunpack.c.l.b16 %v1484
        %v1524 = vunpack.c.l.b16 %v1485
        %v1525 = vunpack.c.l.b16 %v1486
        %v1526 = vunpack.c.l.b16 %v1487
        %v1527 = vunpack.c.l.b16 %v1488
        %v1528 = vunpack.c.l.b16 %v1489
        %v1529 = vunpack.c.l.b16 %v1490
        %v1530 = vunpack.c.l.b16 %v1491
        %v1531 = vunpack.c.l.b16 %v1492
        %v1532 = vunpack.c.l.b16 %v1493
        %v1533 = vunpack.c.l.b16 %v1494
        %v1534 = vunpack.c.l.b16 %v1495
        %v1535 = vunpack.c.l.b16 %v1496
        %v1536 = vunpack.c.l.b16 %v1497
        %v1537 = vunpack.c.l.b16 %v1498
        %v1538 = vpack.c.b16 %v1523, %v1522
        %v1539 = vpack.c.b16 %v1525, %v1524
        %v1540 = vpack.c.b16 %v1527, %v1526
        %v1541 = vpack.c.b16 %v1529, %v1528
        %v1542 = vpack.c.b16 %v1531, %v1530
        %v1543 = vpack.c.b16 %v1533, %v1532
        %v1544 = vpack.c.b16 %v1535, %v1534
        %v1545 = vpack.c.b16 %v1537, %v1536
        %1554 = vmatprep.subr.bf16.mxu0 0
        %1555 = vmatpush1.bf16.msra.mxu0 %v1545
        %1556 = vmatprep.subr.bf16.mxu0 0
        %1557 = vmatpush1.bf16.msra.mxu0 %v1544
        %1558 = vmatprep.subr.bf16.mxu0 0
        %1559 = vmatpush1.bf16.msra.mxu0 %v1543
        %1560 = vmatprep.subr.bf16.mxu0 0
        %1561 = vmatpush1.bf16.msra.mxu0 %v1542
        %1562 = vmatprep.subr.bf16.mxu0 0
        %1563 = vmatpush1.bf16.msra.mxu0 %v1541
        %1564 = vmatprep.subr.bf16.mxu0 0
        %1565 = vmatpush1.bf16.msra.mxu0 %v1540
        %1566 = vmatprep.subr.bf16.mxu0 0
        %1567 = vmatpush1.bf16.msra.mxu0 %v1539
        %1568 = vmatprep.subr.bf16.mxu0 0
        %1569 = vmatpush1.bf16.msra.mxu0 %v1538
        %1570 = vmatprep.subr.bf16.mxu0 0
        %1571 = vmatpush2.bf16.msra.mxu0 0
        %1572 = vmatprep.subr.bf16.mxu0 0
        %1573 = vmatpush2.bf16.msra.mxu0 0
        %1574 = vmatprep.subr.bf16.mxu0 0
        %1575 = vmatpush2.bf16.msra.mxu0 0
        %1576 = vmatprep.subr.bf16.mxu0 0
        %1577 = vmatpush2.bf16.msra.mxu0 0
        %1578 = vmatprep.subr.bf16.mxu0 0
        %1579 = vmatpush2.bf16.msra.mxu0 0
        %1580 = vmatprep.subr.bf16.mxu0 0
        %1581 = vmatpush2.bf16.msra.mxu0 0
        %1582 = vmatprep.subr.bf16.mxu0 0
        %1583 = vmatpush2.bf16.msra.mxu0 0
        %1584 = vmatprep.subr.bf16.mxu0 0
        %1585 = vmatpush2.bf16.msra.mxu0 0
        %1586 = vmatprep.mubr.bf16.mxu0 0
        %1587 = vmatmul.mubr.bf16.gmra.mxu0 %v1464
        %v1588 = vpop.f32.mrf.mxu0
        %v1589 = vadd.f32 %v1504, %v1588
        %v1590 = vpop.f32.mrf.mxu0
        %v1591 = vpop.f32.mrf.mxu0
        %v1592 = vadd.f32 %v1504, %v1591
        %v1593 = vpop.f32.mrf.mxu0
        %1594 = vmatprep.mubr.bf16.mxu0 0
        %1595 = vmatmul.mubr.bf16.gmra.mxu0 %v1465
        %v1596 = vpop.f32.mrf.mxu0
        %v1597 = vadd.f32 %v1504, %v1596
        %v1598 = vpop.f32.mrf.mxu0
        %v1599 = vpop.f32.mrf.mxu0
        %v1600 = vadd.f32 %v1504, %v1599
        %v1601 = vpop.f32.mrf.mxu0
        %1602 = vmatprep.mubr.bf16.mxu0 0
        %1603 = vmatmul.mubr.bf16.gmra.mxu0 %v1466
        %v1604 = vpop.f32.mrf.mxu0
        %v1605 = vadd.f32 %v1504, %v1604
        %v1606 = vpop.f32.mrf.mxu0
        %v1607 = vpop.f32.mrf.mxu0
        %v1608 = vadd.f32 %v1504, %v1607
        %v1609 = vpop.f32.mrf.mxu0
        %1610 = vmatprep.mubr.bf16.mxu0 0
        %1611 = vmatmul.mubr.bf16.gmra.mxu0 %v1467
        %v1612 = vpop.f32.mrf.mxu0
        %v1613 = vadd.f32 %v1504, %v1612
        %v1614 = vpop.f32.mrf.mxu0
        %v1615 = vpop.f32.mrf.mxu0
        %v1616 = vadd.f32 %v1504, %v1615
        %v1617 = vpop.f32.mrf.mxu0
        %1618 = vmatprep.mubr.bf16.mxu0 0
        %1619 = vmatmul.mubr.bf16.gmra.mxu0 %v1468
        %v1620 = vpop.f32.mrf.mxu0
        %v1621 = vadd.f32 %v1504, %v1620
        %v1622 = vpop.f32.mrf.mxu0
        %v1623 = vpop.f32.mrf.mxu0
        %v1624 = vadd.f32 %v1504, %v1623
        %v1625 = vpop.f32.mrf.mxu0
        %1626 = vmatprep.mubr.bf16.mxu0 0
        %1627 = vmatmul.mubr.bf16.gmra.mxu0 %v1469
        %v1628 = vpop.f32.mrf.mxu0
        %v1629 = vadd.f32 %v1504, %v1628
        %v1630 = vpop.f32.mrf.mxu0
        %v1631 = vpop.f32.mrf.mxu0
        %v1632 = vadd.f32 %v1504, %v1631
        %v1633 = vpop.f32.mrf.mxu0
        %1634 = vmatprep.mubr.bf16.mxu0 0
        %1635 = vmatmul.mubr.bf16.gmra.mxu0 %v1470
        %v1636 = vpop.f32.mrf.mxu0
        %v1637 = vadd.f32 %v1504, %v1636
        %v1638 = vpop.f32.mrf.mxu0
        %v1639 = vpop.f32.mrf.mxu0
        %v1640 = vadd.f32 %v1504, %v1639
        %v1641 = vpop.f32.mrf.mxu0
        %1642 = vmatprep.mubr.bf16.mxu0 0
        %1643 = vmatmul.mubr.bf16.gmra.mxu0 %v1471
        %v1644 = vpop.f32.mrf.mxu0
        %v1645 = vadd.f32 %v1504, %v1644
        %v1646 = vpop.f32.mrf.mxu0
        %v1647 = vpop.f32.mrf.mxu0
        %v1648 = vadd.f32 %v1504, %v1647
        %v1649 = vpop.f32.mrf.mxu0
        %1650 = vmatprep.mubr.bf16.mxu0 0
        %1651 = vmatmul.mubr.bf16.gmra.mxu0 %v1472
        %v1652 = vpop.f32.mrf.mxu0
        %v1653 = vadd.f32 %v1504, %v1652
        %v1654 = vpop.f32.mrf.mxu0
        %v1655 = vpop.f32.mrf.mxu0
        %v1656 = vadd.f32 %v1504, %v1655
        %v1657 = vpop.f32.mrf.mxu0
        %1658 = vmatprep.mubr.bf16.mxu0 0
        %1659 = vmatmul.mubr.bf16.gmra.mxu0 %v1473
        %v1660 = vpop.f32.mrf.mxu0
        %v1661 = vadd.f32 %v1504, %v1660
        %v1662 = vpop.f32.mrf.mxu0
        %v1663 = vpop.f32.mrf.mxu0
        %v1664 = vadd.f32 %v1504, %v1663
        %v1665 = vpop.f32.mrf.mxu0
        %1666 = vmatprep.mubr.bf16.mxu0 0
        %1667 = vmatmul.mubr.bf16.gmra.mxu0 %v1474
        %v1668 = vpop.f32.mrf.mxu0
        %v1669 = vadd.f32 %v1504, %v1668
        %v1670 = vpop.f32.mrf.mxu0
        %v1671 = vpop.f32.mrf.mxu0
        %v1672 = vadd.f32 %v1504, %v1671
        %v1673 = vpop.f32.mrf.mxu0
        %1674 = vmatprep.mubr.bf16.mxu0 0
        %1675 = vmatmul.mubr.bf16.gmra.mxu0 %v1475
        %v1676 = vpop.f32.mrf.mxu0
        %v1677 = vadd.f32 %v1504, %v1676
        %v1678 = vpop.f32.mrf.mxu0
        %v1679 = vpop.f32.mrf.mxu0
        %v1680 = vadd.f32 %v1504, %v1679
        %v1681 = vpop.f32.mrf.mxu0
        %1682 = vmatprep.mubr.bf16.mxu0 0
        %1683 = vmatmul.mubr.bf16.gmra.mxu0 %v1476
        %v1684 = vpop.f32.mrf.mxu0
        %v1685 = vadd.f32 %v1504, %v1684
        %v1686 = vpop.f32.mrf.mxu0
        %v1687 = vpop.f32.mrf.mxu0
        %v1688 = vadd.f32 %v1504, %v1687
        %v1689 = vpop.f32.mrf.mxu0
        %1690 = vmatprep.mubr.bf16.mxu0 0
        %1691 = vmatmul.mubr.bf16.gmra.mxu0 %v1477
        %v1692 = vpop.f32.mrf.mxu0
        %v1693 = vadd.f32 %v1504, %v1692
        %v1694 = vpop.f32.mrf.mxu0
        %v1695 = vpop.f32.mrf.mxu0
        %v1696 = vadd.f32 %v1504, %v1695
        %v1697 = vpop.f32.mrf.mxu0
        %1698 = vmatprep.mubr.bf16.mxu0 0
        %1699 = vmatmul.mubr.bf16.gmra.mxu0 %v1478
        %v1700 = vpop.f32.mrf.mxu0
        %v1701 = vadd.f32 %v1504, %v1700
        %v1702 = vpop.f32.mrf.mxu0
        %v1703 = vpop.f32.mrf.mxu0
        %v1704 = vadd.f32 %v1504, %v1703
        %v1705 = vpop.f32.mrf.mxu0
        %1706 = vmatprep.mubr.bf16.mxu0 0
        %1707 = vmatmul.mubr.bf16.gmra.mxu0 %v1479
        %v1708 = vpop.f32.mrf.mxu0
        %v1709 = vadd.f32 %v1504, %v1708
        %v1710 = vpop.f32.mrf.mxu0
        %v1711 = vpop.f32.mrf.mxu0
        %v1712 = vadd.f32 %v1504, %v1711
        %v1713 = vpop.f32.mrf.mxu0
        %1714 = vmatprep.mubr.bf16.mxu0 0
        %1715 = vmatmul.mubr.bf16.gmra.mxu0 %v1480
        %v1716 = vpop.f32.mrf.mxu0
        %v1717 = vadd.f32 %v1504, %v1716
        %v1718 = vpop.f32.mrf.mxu0
        %v1719 = vpop.f32.mrf.mxu0
        %v1720 = vadd.f32 %v1504, %v1719
        %v1721 = vpop.f32.mrf.mxu0
        %1722 = vmatprep.mubr.bf16.mxu0 0
        %1723 = vmatmul.mubr.bf16.gmra.mxu0 %v1481
        %v1724 = vpop.f32.mrf.mxu0
        %v1725 = vadd.f32 %v1504, %v1724
        %v1726 = vpop.f32.mrf.mxu0
        %v1727 = vpop.f32.mrf.mxu0
        %v1728 = vadd.f32 %v1504, %v1727
        %v1729 = vpop.f32.mrf.mxu0
        %1730 = vmatprep.mubr.bf16.mxu0 0
        %1731 = vmatmul.mubr.bf16.gmra.mxu0 %v1482
        %v1732 = vpop.f32.mrf.mxu0
        %v1733 = vadd.f32 %v1504, %v1732
        %v1734 = vpop.f32.mrf.mxu0
        %v1735 = vpop.f32.mrf.mxu0
        %v1736 = vpop.f32.mrf.mxu0
        %1737 = vdwg.mxu0
        %vm1738 = vcmp.gt.f32.partialorder %v1589, 0.0
        %vm1739 = vcmp.gt.f32.partialorder %v1592, 0.0
        %vm1740 = vcmp.gt.f32.partialorder %v1597, 0.0
        %vm1741 = vcmp.gt.f32.partialorder %v1600, 0.0
        %vm1742 = vcmp.gt.f32.partialorder %v1605, 0.0
        %vm1743 = vcmp.gt.f32.partialorder %v1608, 0.0
        %vm1744 = vcmp.gt.f32.partialorder %v1613, 0.0
        %vm1745 = vcmp.gt.f32.partialorder %v1616, 0.0
        %vm1746 = vcmp.gt.f32.partialorder %v1621, 0.0
        %vm1747 = vcmp.gt.f32.partialorder %v1624, 0.0
        %vm1748 = vcmp.gt.f32.partialorder %v1629, 0.0
        %vm1749 = vcmp.gt.f32.partialorder %v1632, 0.0
        %vm1750 = vcmp.gt.f32.partialorder %v1637, 0.0
        %vm1751 = vcmp.gt.f32.partialorder %v1640, 0.0
        %vm1752 = vcmp.gt.f32.partialorder %v1645, 0.0
        %vm1753 = vcmp.gt.f32.partialorder %v1648, 0.0
        %vm1754 = vcmp.gt.f32.partialorder %v1653, 0.0
        %vm1755 = vcmp.gt.f32.partialorder %v1656, 0.0
        %vm1756 = vcmp.gt.f32.partialorder %v1661, 0.0
        %vm1757 = vcmp.gt.f32.partialorder %v1664, 0.0
        %vm1758 = vcmp.gt.f32.partialorder %v1669, 0.0
        %vm1759 = vcmp.gt.f32.partialorder %v1672, 0.0
        %vm1760 = vcmp.gt.f32.partialorder %v1677, 0.0
        %vm1761 = vcmp.gt.f32.partialorder %v1680, 0.0
        %vm1762 = vcmp.gt.f32.partialorder %v1685, 0.0
        %vm1763 = vcmp.gt.f32.partialorder %v1688, 0.0
        %vm1764 = vcmp.gt.f32.partialorder %v1693, 0.0
        %vm1765 = vcmp.gt.f32.partialorder %v1696, 0.0
        %vm1766 = vcmp.gt.f32.partialorder %v1701, 0.0
        %vm1767 = vcmp.gt.f32.partialorder %v1704, 0.0
        %vm1768 = vcmp.gt.f32.partialorder %v1709, 0.0
        %vm1769 = vcmp.gt.f32.partialorder %v1712, 0.0
        %vm1770 = vcmp.gt.f32.partialorder %v1717, 0.0
        %vm1771 = vcmp.gt.f32.partialorder %v1720, 0.0
        %vm1772 = vcmp.gt.f32.partialorder %v1725, 0.0
        %vm1773 = vcmp.gt.f32.partialorder %v1728, 0.0
        %vm1774 = vcmp.gt.f32.partialorder %v1733, 0.0
        %v1775 = vstv %s801
        %v1776 = vmul.f32 %v1775, %v1589
        %v1777 = vmul.f32 %v1775, %v1592
        %v1778 = vmul.f32 %v1775, %v1597
        %v1779 = vmul.f32 %v1775, %v1600
        %v1780 = vmul.f32 %v1775, %v1605
        %v1781 = vmul.f32 %v1775, %v1608
        %v1782 = vmul.f32 %v1775, %v1613
        %v1783 = vmul.f32 %v1775, %v1616
        %v1784 = vmul.f32 %v1775, %v1621
        %v1785 = vmul.f32 %v1775, %v1624
        %v1786 = vmul.f32 %v1775, %v1629
        %v1787 = vmul.f32 %v1775, %v1632
        %v1788 = vmul.f32 %v1775, %v1637
        %v1789 = vmul.f32 %v1775, %v1640
        %v1790 = vmul.f32 %v1775, %v1645
        %v1791 = vmul.f32 %v1775, %v1648
        %v1792 = vmul.f32 %v1775, %v1653
        %v1793 = vmul.f32 %v1775, %v1656
        %v1794 = vmul.f32 %v1775, %v1661
        %v1795 = vmul.f32 %v1775, %v1664
        %v1796 = vmul.f32 %v1775, %v1669
        %v1797 = vmul.f32 %v1775, %v1672
        %v1798 = vmul.f32 %v1775, %v1677
        %v1799 = vmul.f32 %v1775, %v1680
        %v1800 = vmul.f32 %v1775, %v1685
        %v1801 = vmul.f32 %v1775, %v1688
        %v1802 = vmul.f32 %v1775, %v1693
        %v1803 = vmul.f32 %v1775, %v1696
        %v1804 = vmul.f32 %v1775, %v1701
        %v1805 = vmul.f32 %v1775, %v1704
        %v1806 = vmul.f32 %v1775, %v1709
        %v1807 = vmul.f32 %v1775, %v1712
        %v1808 = vmul.f32 %v1775, %v1717
        %v1809 = vmul.f32 %v1775, %v1720
        %v1810 = vmul.f32 %v1775, %v1725
        %v1811 = vmul.f32 %v1775, %v1728
        %v1812 = vmul.f32 %v1775, %v1733
        %v1813 = vsel %vm1738, %v1589, %v1776
        %v1814 = vsel %vm1739, %v1592, %v1777
        %v1815 = vsel %vm1740, %v1597, %v1778
        %v1816 = vsel %vm1741, %v1600, %v1779
        %v1817 = vsel %vm1742, %v1605, %v1780
        %v1818 = vsel %vm1743, %v1608, %v1781
        %v1819 = vsel %vm1744, %v1613, %v1782
        %v1820 = vsel %vm1745, %v1616, %v1783
        %v1821 = vsel %vm1746, %v1621, %v1784
        %v1822 = vsel %vm1747, %v1624, %v1785
        %v1823 = vsel %vm1748, %v1629, %v1786
        %v1824 = vsel %vm1749, %v1632, %v1787
        %v1825 = vsel %vm1750, %v1637, %v1788
        %v1826 = vsel %vm1751, %v1640, %v1789
        %v1827 = vsel %vm1752, %v1645, %v1790
        %v1828 = vsel %vm1753, %v1648, %v1791
        %v1829 = vsel %vm1754, %v1653, %v1792
        %v1830 = vsel %vm1755, %v1656, %v1793
        %v1831 = vsel %vm1756, %v1661, %v1794
        %v1832 = vsel %vm1757, %v1664, %v1795
        %v1833 = vsel %vm1758, %v1669, %v1796
        %v1834 = vsel %vm1759, %v1672, %v1797
        %v1835 = vsel %vm1760, %v1677, %v1798
        %v1836 = vsel %vm1761, %v1680, %v1799
        %v1837 = vsel %vm1762, %v1685, %v1800
        %v1838 = vsel %vm1763, %v1688, %v1801
        %v1839 = vsel %vm1764, %v1693, %v1802
        %v1840 = vsel %vm1765, %v1696, %v1803
        %v1841 = vsel %vm1766, %v1701, %v1804
        %v1842 = vsel %vm1767, %v1704, %v1805
        %v1843 = vsel %vm1768, %v1709, %v1806
        %v1844 = vsel %vm1769, %v1712, %v1807
        %v1845 = vsel %vm1770, %v1717, %v1808
        %v1846 = vsel %vm1771, %v1720, %v1809
        %v1847 = vsel %vm1772, %v1725, %v1810
        %v1848 = vsel %vm1773, %v1728, %v1811
        %v1849 = vsel %vm1774, %v1733, %v1812
        %v1850 = vpack.c.bf16 %v1814, %v1813
        %v1851 = vpack.c.bf16 %v1816, %v1815
        %v1852 = vpack.c.bf16 %v1818, %v1817
        %v1853 = vpack.c.bf16 %v1820, %v1819
        %v1854 = vpack.c.bf16 %v1822, %v1821
        %v1855 = vpack.c.bf16 %v1824, %v1823
        %v1856 = vpack.c.bf16 %v1826, %v1825
        %v1857 = vpack.c.bf16 %v1828, %v1827
        %v1858 = vpack.c.bf16 %v1830, %v1829
        %v1859 = vpack.c.bf16 %v1832, %v1831
        %v1860 = vpack.c.bf16 %v1834, %v1833
        %v1861 = vpack.c.bf16 %v1836, %v1835
        %v1862 = vpack.c.bf16 %v1838, %v1837
        %v1863 = vpack.c.bf16 %v1840, %v1839
        %v1864 = vpack.c.bf16 %v1842, %v1841
        %v1865 = vpack.c.bf16 %v1844, %v1843
        %v1866 = vpack.c.bf16 %v1846, %v1845
        %v1867 = vpack.c.bf16 %v1848, %v1847
        %v1868 = vpack.c.bf16 %v1849, %v1849
        %v1869 = vld [vmem:[%s8] sm:$0xf]
        %v1870 = vld [vmem:[%s8 + $0x4] sm:$0xf]
        %v1871 = vld [vmem:[%s8 + $0x8] sm:$0xf]
        %v1872 = vld [vmem:[%s8 + $0xc] sm:$0xf]
        %v1873 = vld [vmem:[%s8 + $0x10] sm:$0xf]
        %v1874 = vld [vmem:[%s8 + $0x14] sm:$0xf]
        %v1875 = vld [vmem:[%s8 + $0x18] sm:$0xf]
        %v1876 = vld [vmem:[%s8 + $0x1c] sm:$0xf]
        %v1877 = vld [vmem:[%s8 + $0x20] sm:$0xf]
        %v1878 = vld [vmem:[%s8 + $0x24] sm:$0xf]
        %v1879 = vld [vmem:[%s8 + $0x28] sm:$0xf]
        %v1880 = vld [vmem:[%s8 + $0x2c] sm:$0xf]
        %v1881 = vld [vmem:[%s8 + $0x30] sm:$0xf]
        %v1882 = vld [vmem:[%s8 + $0x34] sm:$0xf]
        %v1883 = vld [vmem:[%s8 + $0x38] sm:$0xf]
        %v1884 = vld [vmem:[%s8 + $0x3c] sm:$0xf]
        %v1885 = vld [vmem:[%s9] sm:$0x1]
        %v1887 = vlaneseq
        %v1888 = vshrl.u32 %v1887, 7
        %v1889 = vsub.s32 0, %v1888
        %v1890 = vrot.slane %v1885, %v1889
        %v1908 = vunpack.c.l.b16 %v1869
        %v1909 = vunpack.c.l.b16 %v1870
        %v1910 = vunpack.c.l.b16 %v1871
        %v1911 = vunpack.c.l.b16 %v1872
        %v1912 = vunpack.c.l.b16 %v1873
        %v1913 = vunpack.c.l.b16 %v1874
        %v1914 = vunpack.c.l.b16 %v1875
        %v1915 = vunpack.c.l.b16 %v1876
        %v1916 = vunpack.c.l.b16 %v1877
        %v1917 = vunpack.c.l.b16 %v1878
        %v1918 = vunpack.c.l.b16 %v1879
        %v1919 = vunpack.c.l.b16 %v1880
        %v1920 = vunpack.c.l.b16 %v1881
        %v1921 = vunpack.c.l.b16 %v1882
        %v1922 = vunpack.c.l.b16 %v1883
        %v1923 = vunpack.c.l.b16 %v1884
        %v1924 = vpack.c.b16 %v1909, %v1908
        %v1925 = vpack.c.b16 %v1911, %v1910
        %v1926 = vpack.c.b16 %v1913, %v1912
        %v1927 = vpack.c.b16 %v1915, %v1914
        %v1928 = vpack.c.b16 %v1917, %v1916
        %v1929 = vpack.c.b16 %v1919, %v1918
        %v1930 = vpack.c.b16 %v1921, %v1920
        %v1931 = vpack.c.b16 %v1923, %v1922
        %1940 = vmatprep.subr.bf16.mxu0 0
        %1941 = vmatpush1.bf16.msra.mxu0 %v1931
        %1942 = vmatprep.subr.bf16.mxu0 0
        %1943 = vmatpush1.bf16.msra.mxu0 %v1930
        %1944 = vmatprep.subr.bf16.mxu0 0
        %1945 = vmatpush1.bf16.msra.mxu0 %v1929
        %1946 = vmatprep.subr.bf16.mxu0 0
        %1947 = vmatpush1.bf16.msra.mxu0 %v1928
        %1948 = vmatprep.subr.bf16.mxu0 0
        %1949 = vmatpush1.bf16.msra.mxu0 %v1927
        %1950 = vmatprep.subr.bf16.mxu0 0
        %1951 = vmatpush1.bf16.msra.mxu0 %v1926
        %1952 = vmatprep.subr.bf16.mxu0 0
        %1953 = vmatpush1.bf16.msra.mxu0 %v1925
        %1954 = vmatprep.subr.bf16.mxu0 0
        %1955 = vmatpush1.bf16.msra.mxu0 %v1924
        %1956 = vmatprep.subr.bf16.mxu0 0
        %1957 = vmatpush2.bf16.msra.mxu0 0
        %1958 = vmatprep.subr.bf16.mxu0 0
        %1959 = vmatpush2.bf16.msra.mxu0 0
        %1960 = vmatprep.subr.bf16.mxu0 0
        %1961 = vmatpush2.bf16.msra.mxu0 0
        %1962 = vmatprep.subr.bf16.mxu0 0
        %1963 = vmatpush2.bf16.msra.mxu0 0
        %1964 = vmatprep.subr.bf16.mxu0 0
        %1965 = vmatpush2.bf16.msra.mxu0 0
        %1966 = vmatprep.subr.bf16.mxu0 0
        %1967 = vmatpush2.bf16.msra.mxu0 0
        %1968 = vmatprep.subr.bf16.mxu0 0
        %1969 = vmatpush2.bf16.msra.mxu0 0
        %1970 = vmatprep.subr.bf16.mxu0 0
        %1971 = vmatpush2.bf16.msra.mxu0 0
        %1972 = vmatprep.mubr.bf16.mxu0 0
        %1973 = vmatmul.mubr.bf16.gmra.mxu0 %v1850
        %v1974 = vpop.f32.mrf.mxu0
        %v1975 = vadd.f32 %v1890, %v1974
        %v1976 = vpop.f32.mrf.mxu0
        %v1977 = vpop.f32.mrf.mxu0
        %v1978 = vadd.f32 %v1890, %v1977
        %v1979 = vpop.f32.mrf.mxu0
        %1980 = vmatprep.mubr.bf16.mxu0 0
        %1981 = vmatmul.mubr.bf16.gmra.mxu0 %v1851
        %v1982 = vpop.f32.mrf.mxu0
        %v1983 = vadd.f32 %v1890, %v1982
        %v1984 = vpop.f32.mrf.mxu0
        %v1985 = vpop.f32.mrf.mxu0
        %v1986 = vadd.f32 %v1890, %v1985
        %v1987 = vpop.f32.mrf.mxu0
        %1988 = vmatprep.mubr.bf16.mxu0 0
        %1989 = vmatmul.mubr.bf16.gmra.mxu0 %v1852
        %v1990 = vpop.f32.mrf.mxu0
        %v1991 = vadd.f32 %v1890, %v1990
        %v1992 = vpop.f32.mrf.mxu0
        %v1993 = vpop.f32.mrf.mxu0
        %v1994 = vadd.f32 %v1890, %v1993
        %v1995 = vpop.f32.mrf.mxu0
        %1996 = vmatprep.mubr.bf16.mxu0 0
        %1997 = vmatmul.mubr.bf16.gmra.mxu0 %v1853
        %v1998 = vpop.f32.mrf.mxu0
        %v1999 = vadd.f32 %v1890, %v1998
        %v2000 = vpop.f32.mrf.mxu0
        %v2001 = vpop.f32.mrf.mxu0
        %v2002 = vadd.f32 %v1890, %v2001
        %v2003 = vpop.f32.mrf.mxu0
        %2004 = vmatprep.mubr.bf16.mxu0 0
        %2005 = vmatmul.mubr.bf16.gmra.mxu0 %v1854
        %v2006 = vpop.f32.mrf.mxu0
        %v2007 = vadd.f32 %v1890, %v2006
        %v2008 = vpop.f32.mrf.mxu0
        %v2009 = vpop.f32.mrf.mxu0
        %v2010 = vadd.f32 %v1890, %v2009
        %v2011 = vpop.f32.mrf.mxu0
        %2012 = vmatprep.mubr.bf16.mxu0 0
        %2013 = vmatmul.mubr.bf16.gmra.mxu0 %v1855
        %v2014 = vpop.f32.mrf.mxu0
        %v2015 = vadd.f32 %v1890, %v2014
        %v2016 = vpop.f32.mrf.mxu0
        %v2017 = vpop.f32.mrf.mxu0
        %v2018 = vadd.f32 %v1890, %v2017
        %v2019 = vpop.f32.mrf.mxu0
        %2020 = vmatprep.mubr.bf16.mxu0 0
        %2021 = vmatmul.mubr.bf16.gmra.mxu0 %v1856
        %v2022 = vpop.f32.mrf.mxu0
        %v2023 = vadd.f32 %v1890, %v2022
        %v2024 = vpop.f32.mrf.mxu0
        %v2025 = vpop.f32.mrf.mxu0
        %v2026 = vadd.f32 %v1890, %v2025
        %v2027 = vpop.f32.mrf.mxu0
        %2028 = vmatprep.mubr.bf16.mxu0 0
        %2029 = vmatmul.mubr.bf16.gmra.mxu0 %v1857
        %v2030 = vpop.f32.mrf.mxu0
        %v2031 = vadd.f32 %v1890, %v2030
        %v2032 = vpop.f32.mrf.mxu0
        %v2033 = vpop.f32.mrf.mxu0
        %v2034 = vadd.f32 %v1890, %v2033
        %v2035 = vpop.f32.mrf.mxu0
        %2036 = vmatprep.mubr.bf16.mxu0 0
        %2037 = vmatmul.mubr.bf16.gmra.mxu0 %v1858
        %v2038 = vpop.f32.mrf.mxu0
        %v2039 = vadd.f32 %v1890, %v2038
        %v2040 = vpop.f32.mrf.mxu0
        %v2041 = vpop.f32.mrf.mxu0
        %v2042 = vadd.f32 %v1890, %v2041
        %v2043 = vpop.f32.mrf.mxu0
        %2044 = vmatprep.mubr.bf16.mxu0 0
        %2045 = vmatmul.mubr.bf16.gmra.mxu0 %v1859
        %v2046 = vpop.f32.mrf.mxu0
        %v2047 = vadd.f32 %v1890, %v2046
        %v2048 = vpop.f32.mrf.mxu0
        %v2049 = vpop.f32.mrf.mxu0
        %v2050 = vadd.f32 %v1890, %v2049
        %v2051 = vpop.f32.mrf.mxu0
        %2052 = vmatprep.mubr.bf16.mxu0 0
        %2053 = vmatmul.mubr.bf16.gmra.mxu0 %v1860
        %v2054 = vpop.f32.mrf.mxu0
        %v2055 = vadd.f32 %v1890, %v2054
        %v2056 = vpop.f32.mrf.mxu0
        %v2057 = vpop.f32.mrf.mxu0
        %v2058 = vadd.f32 %v1890, %v2057
        %v2059 = vpop.f32.mrf.mxu0
        %2060 = vmatprep.mubr.bf16.mxu0 0
        %2061 = vmatmul.mubr.bf16.gmra.mxu0 %v1861
        %v2062 = vpop.f32.mrf.mxu0
        %v2063 = vadd.f32 %v1890, %v2062
        %v2064 = vpop.f32.mrf.mxu0
        %v2065 = vpop.f32.mrf.mxu0
        %v2066 = vadd.f32 %v1890, %v2065
        %v2067 = vpop.f32.mrf.mxu0
        %2068 = vmatprep.mubr.bf16.mxu0 0
        %2069 = vmatmul.mubr.bf16.gmra.mxu0 %v1862
        %v2070 = vpop.f32.mrf.mxu0
        %v2071 = vadd.f32 %v1890, %v2070
        %v2072 = vpop.f32.mrf.mxu0
        %v2073 = vpop.f32.mrf.mxu0
        %v2074 = vadd.f32 %v1890, %v2073
        %v2075 = vpop.f32.mrf.mxu0
        %2076 = vmatprep.mubr.bf16.mxu0 0
        %2077 = vmatmul.mubr.bf16.gmra.mxu0 %v1863
        %v2078 = vpop.f32.mrf.mxu0
        %v2079 = vadd.f32 %v1890, %v2078
        %v2080 = vpop.f32.mrf.mxu0
        %v2081 = vpop.f32.mrf.mxu0
        %v2082 = vadd.f32 %v1890, %v2081
        %v2083 = vpop.f32.mrf.mxu0
        %2084 = vmatprep.mubr.bf16.mxu0 0
        %2085 = vmatmul.mubr.bf16.gmra.mxu0 %v1864
        %v2086 = vpop.f32.mrf.mxu0
        %v2087 = vadd.f32 %v1890, %v2086
        %v2088 = vpop.f32.mrf.mxu0
        %v2089 = vpop.f32.mrf.mxu0
        %v2090 = vadd.f32 %v1890, %v2089
        %v2091 = vpop.f32.mrf.mxu0
        %2092 = vmatprep.mubr.bf16.mxu0 0
        %2093 = vmatmul.mubr.bf16.gmra.mxu0 %v1865
        %v2094 = vpop.f32.mrf.mxu0
        %v2095 = vadd.f32 %v1890, %v2094
        %v2096 = vpop.f32.mrf.mxu0
        %v2097 = vpop.f32.mrf.mxu0
        %v2098 = vadd.f32 %v1890, %v2097
        %v2099 = vpop.f32.mrf.mxu0
        %2100 = vmatprep.mubr.bf16.mxu0 0
        %2101 = vmatmul.mubr.bf16.gmra.mxu0 %v1866
        %v2102 = vpop.f32.mrf.mxu0
        %v2103 = vadd.f32 %v1890, %v2102
        %v2104 = vpop.f32.mrf.mxu0
        %v2105 = vpop.f32.mrf.mxu0
        %v2106 = vadd.f32 %v1890, %v2105
        %v2107 = vpop.f32.mrf.mxu0
        %2108 = vmatprep.mubr.bf16.mxu0 0
        %2109 = vmatmul.mubr.bf16.gmra.mxu0 %v1867
        %v2110 = vpop.f32.mrf.mxu0
        %v2111 = vadd.f32 %v1890, %v2110
        %v2112 = vpop.f32.mrf.mxu0
        %v2113 = vpop.f32.mrf.mxu0
        %v2114 = vadd.f32 %v1890, %v2113
        %v2115 = vpop.f32.mrf.mxu0
        %2116 = vmatprep.mubr.bf16.mxu0 0
        %2117 = vmatmul.mubr.bf16.gmra.mxu0 %v1868
        %v2118 = vpop.f32.mrf.mxu0
        %v2119 = vadd.f32 %v1890, %v2118
        %v2120 = vpop.f32.mrf.mxu0
        %v2121 = vpop.f32.mrf.mxu0
        %v2122 = vpop.f32.mrf.mxu0
        %2123 = vdwg.mxu0
        %2124 = vst.msk [vmem:[%s427] sm:$0xff] %vm1110, %v1975
        %2125 = vst.msk [vmem:[%s427 + $0x8] sm:$0xff] %vm1110, %v1978
        %2126 = vst.msk [vmem:[%s427 + $0x10] sm:$0xff] %vm1110, %v1983
        %2127 = vst.msk [vmem:[%s427 + $0x18] sm:$0xff] %vm1110, %v1986
        %2128 = vst.msk [vmem:[%s427 + $0x20] sm:$0xff] %vm1110, %v1991
        %2129 = vst.msk [vmem:[%s427 + $0x28] sm:$0xff] %vm1110, %v1994
        %2130 = vst.msk [vmem:[%s427 + $0x30] sm:$0xff] %vm1110, %v1999
        %2131 = vst.msk [vmem:[%s427 + $0x38] sm:$0xff] %vm1110, %v2002
        %2132 = vst.msk [vmem:[%s427 + $0x40] sm:$0xff] %vm1110, %v2007
        %2133 = vst.msk [vmem:[%s427 + $0x48] sm:$0xff] %vm1110, %v2010
        %2134 = vst.msk [vmem:[%s427 + $0x50] sm:$0xff] %vm1110, %v2015
        %2135 = vst.msk [vmem:[%s427 + $0x58] sm:$0xff] %vm1110, %v2018
        %2136 = vst.msk [vmem:[%s427 + $0x60] sm:$0xff] %vm1110, %v2023
        %2137 = vst.msk [vmem:[%s427 + $0x68] sm:$0xff] %vm1110, %v2026
        %2138 = vst.msk [vmem:[%s427 + $0x70] sm:$0xff] %vm1110, %v2031
        %2139 = vst.msk [vmem:[%s427 + $0x78] sm:$0xff] %vm1110, %v2034
        %2140 = vst.msk [vmem:[%s427 + $0x80] sm:$0xff] %vm1110, %v2039
        %2141 = vst.msk [vmem:[%s427 + $0x88] sm:$0xff] %vm1110, %v2042
        %2142 = vst.msk [vmem:[%s427 + $0x90] sm:$0xff] %vm1110, %v2047
        %2143 = vst.msk [vmem:[%s427 + $0x98] sm:$0xff] %vm1110, %v2050
        %2144 = vst.msk [vmem:[%s427 + $0xa0] sm:$0xff] %vm1110, %v2055
        %2145 = vst.msk [vmem:[%s427 + $0xa8] sm:$0xff] %vm1110, %v2058
        %2146 = vst.msk [vmem:[%s427 + $0xb0] sm:$0xff] %vm1110, %v2063
        %2147 = vst.msk [vmem:[%s427 + $0xb8] sm:$0xff] %vm1110, %v2066
        %2148 = vst.msk [vmem:[%s427 + $0xc0] sm:$0xff] %vm1110, %v2071
        %2149 = vst.msk [vmem:[%s427 + $0xc8] sm:$0xff] %vm1110, %v2074
        %2150 = vst.msk [vmem:[%s427 + $0xd0] sm:$0xff] %vm1110, %v2079
        %2151 = vst.msk [vmem:[%s427 + $0xd8] sm:$0xff] %vm1110, %v2082
        %2152 = vst.msk [vmem:[%s427 + $0xe0] sm:$0xff] %vm1110, %v2087
        %2153 = vst.msk [vmem:[%s427 + $0xe8] sm:$0xff] %vm1110, %v2090
        %2154 = vst.msk [vmem:[%s427 + $0xf0] sm:$0xff] %vm1110, %v2095
        %2155 = vst.msk [vmem:[%s427 + $0xf8] sm:$0xff] %vm1110, %v2098
        %2156 = vst.msk [vmem:[%s427 + $0x100] sm:$0xff] %vm1110, %v2103
        %2157 = vst.msk [vmem:[%s427 + $0x108] sm:$0xff] %vm1110, %v2106
        %2158 = vst.msk [vmem:[%s427 + $0x110] sm:$0xff] %vm1110, %v2111
        %2159 = vst.msk [vmem:[%s427 + $0x118] sm:$0xff] %vm1110, %v2114
        %2160 = vst.msk [vmem:[%s427 + $0x120] sm:$0xff] %vm1110, %v2119
        %v2161 = vmul.f32 %v1975, %v1975
        %v2162 = vmul.f32 %v1978, %v1978
        %v2163 = vmul.f32 %v1983, %v1983
        %v2164 = vmul.f32 %v1986, %v1986
        %v2165 = vmul.f32 %v1991, %v1991
        %v2166 = vmul.f32 %v1994, %v1994
        %v2167 = vmul.f32 %v1999, %v1999
        %v2168 = vmul.f32 %v2002, %v2002
        %v2169 = vmul.f32 %v2007, %v2007
        %v2170 = vmul.f32 %v2010, %v2010
        %v2171 = vmul.f32 %v2015, %v2015
        %v2172 = vmul.f32 %v2018, %v2018
        %v2173 = vmul.f32 %v2023, %v2023
        %v2174 = vmul.f32 %v2026, %v2026
        %v2175 = vmul.f32 %v2031, %v2031
        %v2176 = vmul.f32 %v2034, %v2034
        %v2177 = vmul.f32 %v2039, %v2039
        %v2178 = vmul.f32 %v2042, %v2042
        %v2179 = vmul.f32 %v2047, %v2047
        %v2180 = vmul.f32 %v2050, %v2050
        %v2181 = vmul.f32 %v2055, %v2055
        %v2182 = vmul.f32 %v2058, %v2058
        %v2183 = vmul.f32 %v2063, %v2063
        %v2184 = vmul.f32 %v2066, %v2066
        %v2185 = vmul.f32 %v2071, %v2071
        %v2186 = vmul.f32 %v2074, %v2074
        %v2187 = vmul.f32 %v2079, %v2079
        %v2188 = vmul.f32 %v2082, %v2082
        %v2189 = vmul.f32 %v2087, %v2087
        %v2190 = vmul.f32 %v2090, %v2090
        %v2191 = vmul.f32 %v2095, %v2095
        %v2192 = vmul.f32 %v2098, %v2098
        %v2193 = vmul.f32 %v2103, %v2103
        %v2194 = vmul.f32 %v2106, %v2106
        %v2195 = vmul.f32 %v2111, %v2111
        %v2196 = vmul.f32 %v2114, %v2114
        %v2197 = vmul.f32 %v2119, %v2119
        %v2198 = vsel %vm1110, %v2161, 0.0
        %2199 = vadd.xlane.f32.xlu0 %v2198
        %v2200 = vpop.xlane.xlu0 %2199
        %v2201 = vsel %vm1110, %v2162, 0.0
        %2202 = vadd.xlane.f32.xlu0 %v2201
        %v2203 = vpop.xlane.xlu0 %2202
        %v2204 = vsel %vm1110, %v2163, 0.0
        %2205 = vadd.xlane.f32.xlu0 %v2204
        %v2206 = vpop.xlane.xlu0 %2205
        %v2207 = vsel %vm1110, %v2164, 0.0
        %2208 = vadd.xlane.f32.xlu0 %v2207
        %v2209 = vpop.xlane.xlu0 %2208
        %v2210 = vsel %vm1110, %v2165, 0.0
        %2211 = vadd.xlane.f32.xlu0 %v2210
        %v2212 = vpop.xlane.xlu0 %2211
        %v2213 = vsel %vm1110, %v2166, 0.0
        %2214 = vadd.xlane.f32.xlu0 %v2213
        %v2215 = vpop.xlane.xlu0 %2214
        %v2216 = vsel %vm1110, %v2167, 0.0
        %2217 = vadd.xlane.f32.xlu0 %v2216
        %v2218 = vpop.xlane.xlu0 %2217
        %v2219 = vsel %vm1110, %v2168, 0.0
        %2220 = vadd.xlane.f32.xlu0 %v2219
        %v2221 = vpop.xlane.xlu0 %2220
        %v2222 = vsel %vm1110, %v2169, 0.0
        %2223 = vadd.xlane.f32.xlu0 %v2222
        %v2224 = vpop.xlane.xlu0 %2223
        %v2225 = vsel %vm1110, %v2170, 0.0
        %2226 = vadd.xlane.f32.xlu0 %v2225
        %v2227 = vpop.xlane.xlu0 %2226
        %v2228 = vsel %vm1110, %v2171, 0.0
        %2229 = vadd.xlane.f32.xlu0 %v2228
        %v2230 = vpop.xlane.xlu0 %2229
        %v2231 = vsel %vm1110, %v2172, 0.0
        %2232 = vadd.xlane.f32.xlu0 %v2231
        %v2233 = vpop.xlane.xlu0 %2232
        %v2234 = vsel %vm1110, %v2173, 0.0
        %2235 = vadd.xlane.f32.xlu0 %v2234
        %v2236 = vpop.xlane.xlu0 %2235
        %v2237 = vsel %vm1110, %v2174, 0.0
        %2238 = vadd.xlane.f32.xlu0 %v2237
        %v2239 = vpop.xlane.xlu0 %2238
        %v2240 = vsel %vm1110, %v2175, 0.0
        %2241 = vadd.xlane.f32.xlu0 %v2240
        %v2242 = vpop.xlane.xlu0 %2241
        %v2243 = vsel %vm1110, %v2176, 0.0
        %2244 = vadd.xlane.f32.xlu0 %v2243
        %v2245 = vpop.xlane.xlu0 %2244
        %v2246 = vsel %vm1110, %v2177, 0.0
        %2247 = vadd.xlane.f32.xlu0 %v2246
        %v2248 = vpop.xlane.xlu0 %2247
        %v2249 = vsel %vm1110, %v2178, 0.0
        %2250 = vadd.xlane.f32.xlu0 %v2249
        %v2251 = vpop.xlane.xlu0 %2250
        %v2252 = vsel %vm1110, %v2179, 0.0
        %2253 = vadd.xlane.f32.xlu0 %v2252
        %v2254 = vpop.xlane.xlu0 %2253
        %v2255 = vsel %vm1110, %v2180, 0.0
        %2256 = vadd.xlane.f32.xlu0 %v2255
        %v2257 = vpop.xlane.xlu0 %2256
        %v2258 = vsel %vm1110, %v2181, 0.0
        %2259 = vadd.xlane.f32.xlu0 %v2258
        %v2260 = vpop.xlane.xlu0 %2259
        %v2261 = vsel %vm1110, %v2182, 0.0
        %2262 = vadd.xlane.f32.xlu0 %v2261
        %v2263 = vpop.xlane.xlu0 %2262
        %v2264 = vsel %vm1110, %v2183, 0.0
        %2265 = vadd.xlane.f32.xlu0 %v2264
        %v2266 = vpop.xlane.xlu0 %2265
        %v2267 = vsel %vm1110, %v2184, 0.0
        %2268 = vadd.xlane.f32.xlu0 %v2267
        %v2269 = vpop.xlane.xlu0 %2268
        %v2270 = vsel %vm1110, %v2185, 0.0
        %2271 = vadd.xlane.f32.xlu0 %v2270
        %v2272 = vpop.xlane.xlu0 %2271
        %v2273 = vsel %vm1110, %v2186, 0.0
        %2274 = vadd.xlane.f32.xlu0 %v2273
        %v2275 = vpop.xlane.xlu0 %2274
        %v2276 = vsel %vm1110, %v2187, 0.0
        %2277 = vadd.xlane.f32.xlu0 %v2276
        %v2278 = vpop.xlane.xlu0 %2277
        %v2279 = vsel %vm1110, %v2188, 0.0
        %2280 = vadd.xlane.f32.xlu0 %v2279
        %v2281 = vpop.xlane.xlu0 %2280
        %v2282 = vsel %vm1110, %v2189, 0.0
        %2283 = vadd.xlane.f32.xlu0 %v2282
        %v2284 = vpop.xlane.xlu0 %2283
        %v2285 = vsel %vm1110, %v2190, 0.0
        %2286 = vadd.xlane.f32.xlu0 %v2285
        %v2287 = vpop.xlane.xlu0 %2286
        %v2288 = vsel %vm1110, %v2191, 0.0
        %2289 = vadd.xlane.f32.xlu0 %v2288
        %v2290 = vpop.xlane.xlu0 %2289
        %v2291 = vsel %vm1110, %v2192, 0.0
        %2292 = vadd.xlane.f32.xlu0 %v2291
        %v2293 = vpop.xlane.xlu0 %2292
        %v2294 = vsel %vm1110, %v2193, 0.0
        %2295 = vadd.xlane.f32.xlu0 %v2294
        %v2296 = vpop.xlane.xlu0 %2295
        %v2297 = vsel %vm1110, %v2194, 0.0
        %2298 = vadd.xlane.f32.xlu0 %v2297
        %v2299 = vpop.xlane.xlu0 %2298
        %v2300 = vsel %vm1110, %v2195, 0.0
        %2301 = vadd.xlane.f32.xlu0 %v2300
        %v2302 = vpop.xlane.xlu0 %2301
        %v2303 = vsel %vm1110, %v2196, 0.0
        %2304 = vadd.xlane.f32.xlu0 %v2303
        %v2305 = vpop.xlane.xlu0 %2304
        %v2306 = vsel %vm1110, %v2197, 0.0
        %2307 = vadd.xlane.f32.xlu0 %v2306
        %v2308 = vpop.xlane.xlu0 %2307
        %v2309 = vmul.f32 %v689, %v689
        %v2310 = vmul.f32 %v690, %v690
        %v2311 = vmul.f32 %v691, %v691
        %v2312 = vmul.f32 %v692, %v692
        %v2313 = vmul.f32 %v693, %v693
        %v2314 = vmul.f32 %v694, %v694
        %v2315 = vmul.f32 %v695, %v695
        %v2316 = vmul.f32 %v696, %v696
        %v2317 = vmul.f32 %v697, %v697
        %v2318 = vmul.f32 %v698, %v698
        %v2319 = vmul.f32 %v699, %v699
        %v2320 = vmul.f32 %v700, %v700
        %v2321 = vmul.f32 %v701, %v701
        %v2322 = vmul.f32 %v702, %v702
        %v2323 = vmul.f32 %v703, %v703
        %v2324 = vmul.f32 %v704, %v704
        %v2325 = vmul.f32 %v705, %v705
        %v2326 = vmul.f32 %v706, %v706
        %v2327 = vmul.f32 %v707, %v707
        %v2328 = vmul.f32 %v708, %v708
        %v2329 = vmul.f32 %v709, %v709
        %v2330 = vmul.f32 %v710, %v710
        %v2331 = vmul.f32 %v711, %v711
        %v2332 = vmul.f32 %v712, %v712
        %v2333 = vmul.f32 %v713, %v713
        %v2334 = vmul.f32 %v714, %v714
        %v2335 = vmul.f32 %v715, %v715
        %v2336 = vmul.f32 %v716, %v716
        %v2337 = vmul.f32 %v717, %v717
        %v2338 = vmul.f32 %v718, %v718
        %v2339 = vmul.f32 %v719, %v719
        %v2340 = vmul.f32 %v720, %v720
        %v2341 = vmul.f32 %v721, %v721
        %v2342 = vmul.f32 %v722, %v722
        %v2343 = vmul.f32 %v723, %v723
        %v2344 = vmul.f32 %v724, %v724
        %v2345 = vmul.f32 %v725, %v725
        %v2346 = vsel %vm1110, %v2309, 0.0
        %2347 = vadd.xlane.f32.xlu0 %v2346
        %v2348 = vpop.xlane.xlu0 %2347
        %v2349 = vsel %vm1110, %v2310, 0.0
        %2350 = vadd.xlane.f32.xlu0 %v2349
        %v2351 = vpop.xlane.xlu0 %2350
        %v2352 = vsel %vm1110, %v2311, 0.0
        %2353 = vadd.xlane.f32.xlu0 %v2352
        %v2354 = vpop.xlane.xlu0 %2353
        %v2355 = vsel %vm1110, %v2312, 0.0
        %2356 = vadd.xlane.f32.xlu0 %v2355
        %v2357 = vpop.xlane.xlu0 %2356
        %v2358 = vsel %vm1110, %v2313, 0.0
        %2359 = vadd.xlane.f32.xlu0 %v2358
        %v2360 = vpop.xlane.xlu0 %2359
        %v2361 = vsel %vm1110, %v2314, 0.0
        %2362 = vadd.xlane.f32.xlu0 %v2361
        %v2363 = vpop.xlane.xlu0 %2362
        %v2364 = vsel %vm1110, %v2315, 0.0
        %2365 = vadd.xlane.f32.xlu0 %v2364
        %v2366 = vpop.xlane.xlu0 %2365
        %v2367 = vsel %vm1110, %v2316, 0.0
        %2368 = vadd.xlane.f32.xlu0 %v2367
        %v2369 = vpop.xlane.xlu0 %2368
        %v2370 = vsel %vm1110, %v2317, 0.0
        %2371 = vadd.xlane.f32.xlu0 %v2370
        %v2372 = vpop.xlane.xlu0 %2371
        %v2373 = vsel %vm1110, %v2318, 0.0
        %2374 = vadd.xlane.f32.xlu0 %v2373
        %v2375 = vpop.xlane.xlu0 %2374
        %v2376 = vsel %vm1110, %v2319, 0.0
        %2377 = vadd.xlane.f32.xlu0 %v2376
        %v2378 = vpop.xlane.xlu0 %2377
        %v2379 = vsel %vm1110, %v2320, 0.0
        %2380 = vadd.xlane.f32.xlu0 %v2379
        %v2381 = vpop.xlane.xlu0 %2380
        %v2382 = vsel %vm1110, %v2321, 0.0
        %2383 = vadd.xlane.f32.xlu0 %v2382
        %v2384 = vpop.xlane.xlu0 %2383
        %v2385 = vsel %vm1110, %v2322, 0.0
        %2386 = vadd.xlane.f32.xlu0 %v2385
        %v2387 = vpop.xlane.xlu0 %2386
        %v2388 = vsel %vm1110, %v2323, 0.0
        %2389 = vadd.xlane.f32.xlu0 %v2388
        %v2390 = vpop.xlane.xlu0 %2389
        %v2391 = vsel %vm1110, %v2324, 0.0
        %2392 = vadd.xlane.f32.xlu0 %v2391
        %v2393 = vpop.xlane.xlu0 %2392
        %v2394 = vsel %vm1110, %v2325, 0.0
        %2395 = vadd.xlane.f32.xlu0 %v2394
        %v2396 = vpop.xlane.xlu0 %2395
        %v2397 = vsel %vm1110, %v2326, 0.0
        %2398 = vadd.xlane.f32.xlu0 %v2397
        %v2399 = vpop.xlane.xlu0 %2398
        %v2400 = vsel %vm1110, %v2327, 0.0
        %2401 = vadd.xlane.f32.xlu0 %v2400
        %v2402 = vpop.xlane.xlu0 %2401
        %v2403 = vsel %vm1110, %v2328, 0.0
        %2404 = vadd.xlane.f32.xlu0 %v2403
        %v2405 = vpop.xlane.xlu0 %2404
        %v2406 = vsel %vm1110, %v2329, 0.0
        %2407 = vadd.xlane.f32.xlu0 %v2406
        %v2408 = vpop.xlane.xlu0 %2407
        %v2409 = vsel %vm1110, %v2330, 0.0
        %2410 = vadd.xlane.f32.xlu0 %v2409
        %v2411 = vpop.xlane.xlu0 %2410
        %v2412 = vsel %vm1110, %v2331, 0.0
        %2413 = vadd.xlane.f32.xlu0 %v2412
        %v2414 = vpop.xlane.xlu0 %2413
        %v2415 = vsel %vm1110, %v2332, 0.0
        %2416 = vadd.xlane.f32.xlu0 %v2415
        %v2417 = vpop.xlane.xlu0 %2416
        %v2418 = vsel %vm1110, %v2333, 0.0
        %2419 = vadd.xlane.f32.xlu0 %v2418
        %v2420 = vpop.xlane.xlu0 %2419
        %v2421 = vsel %vm1110, %v2334, 0.0
        %2422 = vadd.xlane.f32.xlu0 %v2421
        %v2423 = vpop.xlane.xlu0 %2422
        %v2424 = vsel %vm1110, %v2335, 0.0
        %2425 = vadd.xlane.f32.xlu0 %v2424
        %v2426 = vpop.xlane.xlu0 %2425
        %v2427 = vsel %vm1110, %v2336, 0.0
        %2428 = vadd.xlane.f32.xlu0 %v2427
        %v2429 = vpop.xlane.xlu0 %2428
        %v2430 = vsel %vm1110, %v2337, 0.0
        %2431 = vadd.xlane.f32.xlu0 %v2430
        %v2432 = vpop.xlane.xlu0 %2431
        %v2433 = vsel %vm1110, %v2338, 0.0
        %2434 = vadd.xlane.f32.xlu0 %v2433
        %v2435 = vpop.xlane.xlu0 %2434
        %v2436 = vsel %vm1110, %v2339, 0.0
        %2437 = vadd.xlane.f32.xlu0 %v2436
        %v2438 = vpop.xlane.xlu0 %2437
        %v2439 = vsel %vm1110, %v2340, 0.0
        %2440 = vadd.xlane.f32.xlu0 %v2439
        %v2441 = vpop.xlane.xlu0 %2440
        %v2442 = vsel %vm1110, %v2341, 0.0
        %2443 = vadd.xlane.f32.xlu0 %v2442
        %v2444 = vpop.xlane.xlu0 %2443
        %v2445 = vsel %vm1110, %v2342, 0.0
        %2446 = vadd.xlane.f32.xlu0 %v2445
        %v2447 = vpop.xlane.xlu0 %2446
        %v2448 = vsel %vm1110, %v2343, 0.0
        %2449 = vadd.xlane.f32.xlu0 %v2448
        %v2450 = vpop.xlane.xlu0 %2449
        %v2451 = vsel %vm1110, %v2344, 0.0
        %2452 = vadd.xlane.f32.xlu0 %v2451
        %v2453 = vpop.xlane.xlu0 %2452
        %v2454 = vsel %vm1110, %v2345, 0.0
        %2455 = vadd.xlane.f32.xlu0 %v2454
        %v2456 = vpop.xlane.xlu0 %2455
        %v2457 = vmax.f32 %v2200, 1e-24
        %v2458 = vmax.f32 %v2203, 1e-24
        %v2459 = vmax.f32 %v2206, 1e-24
        %v2460 = vmax.f32 %v2209, 1e-24
        %v2461 = vmax.f32 %v2212, 1e-24
        %v2462 = vmax.f32 %v2215, 1e-24
        %v2463 = vmax.f32 %v2218, 1e-24
        %v2464 = vmax.f32 %v2221, 1e-24
        %v2465 = vmax.f32 %v2224, 1e-24
        %v2466 = vmax.f32 %v2227, 1e-24
        %v2467 = vmax.f32 %v2230, 1e-24
        %v2468 = vmax.f32 %v2233, 1e-24
        %v2469 = vmax.f32 %v2236, 1e-24
        %v2470 = vmax.f32 %v2239, 1e-24
        %v2471 = vmax.f32 %v2242, 1e-24
        %v2472 = vmax.f32 %v2245, 1e-24
        %v2473 = vmax.f32 %v2248, 1e-24
        %v2474 = vmax.f32 %v2251, 1e-24
        %v2475 = vmax.f32 %v2254, 1e-24
        %v2476 = vmax.f32 %v2257, 1e-24
        %v2477 = vmax.f32 %v2260, 1e-24
        %v2478 = vmax.f32 %v2263, 1e-24
        %v2479 = vmax.f32 %v2266, 1e-24
        %v2480 = vmax.f32 %v2269, 1e-24
        %v2481 = vmax.f32 %v2272, 1e-24
        %v2482 = vmax.f32 %v2275, 1e-24
        %v2483 = vmax.f32 %v2278, 1e-24
        %v2484 = vmax.f32 %v2281, 1e-24
        %v2485 = vmax.f32 %v2284, 1e-24
        %v2486 = vmax.f32 %v2287, 1e-24
        %v2487 = vmax.f32 %v2290, 1e-24
        %v2488 = vmax.f32 %v2293, 1e-24
        %v2489 = vmax.f32 %v2296, 1e-24
        %v2490 = vmax.f32 %v2299, 1e-24
        %v2491 = vmax.f32 %v2302, 1e-24
        %v2492 = vmax.f32 %v2305, 1e-24
        %v2493 = vmax.f32 %v2308, 1e-24
        %v2494 = vrsqrt.pop %v2457
        %v2495 = vrsqrt.pop %v2458
        %v2496 = vrsqrt.pop %v2459
        %v2497 = vrsqrt.pop %v2460
        %v2498 = vrsqrt.pop %v2461
        %v2499 = vrsqrt.pop %v2462
        %v2500 = vrsqrt.pop %v2463
        %v2501 = vrsqrt.pop %v2464
        %v2502 = vrsqrt.pop %v2465
        %v2503 = vrsqrt.pop %v2466
        %v2504 = vrsqrt.pop %v2467
        %v2505 = vrsqrt.pop %v2468
        %v2506 = vrsqrt.pop %v2469
        %v2507 = vrsqrt.pop %v2470
        %v2508 = vrsqrt.pop %v2471
        %v2509 = vrsqrt.pop %v2472
        %v2510 = vrsqrt.pop %v2473
        %v2511 = vrsqrt.pop %v2474
        %v2512 = vrsqrt.pop %v2475
        %v2513 = vrsqrt.pop %v2476
        %v2514 = vrsqrt.pop %v2477
        %v2515 = vrsqrt.pop %v2478
        %v2516 = vrsqrt.pop %v2479
        %v2517 = vrsqrt.pop %v2480
        %v2518 = vrsqrt.pop %v2481
        %v2519 = vrsqrt.pop %v2482
        %v2520 = vrsqrt.pop %v2483
        %v2521 = vrsqrt.pop %v2484
        %v2522 = vrsqrt.pop %v2485
        %v2523 = vrsqrt.pop %v2486
        %v2524 = vrsqrt.pop %v2487
        %v2525 = vrsqrt.pop %v2488
        %v2526 = vrsqrt.pop %v2489
        %v2527 = vrsqrt.pop %v2490
        %v2528 = vrsqrt.pop %v2491
        %v2529 = vrsqrt.pop %v2492
        %v2530 = vrsqrt.pop %v2493
        %v2531 = vmax.f32 %v2348, 1e-24
        %v2532 = vmax.f32 %v2351, 1e-24
        %v2533 = vmax.f32 %v2354, 1e-24
        %v2534 = vmax.f32 %v2357, 1e-24
        %v2535 = vmax.f32 %v2360, 1e-24
        %v2536 = vmax.f32 %v2363, 1e-24
        %v2537 = vmax.f32 %v2366, 1e-24
        %v2538 = vmax.f32 %v2369, 1e-24
        %v2539 = vmax.f32 %v2372, 1e-24
        %v2540 = vmax.f32 %v2375, 1e-24
        %v2541 = vmax.f32 %v2378, 1e-24
        %v2542 = vmax.f32 %v2381, 1e-24
        %v2543 = vmax.f32 %v2384, 1e-24
        %v2544 = vmax.f32 %v2387, 1e-24
        %v2545 = vmax.f32 %v2390, 1e-24
        %v2546 = vmax.f32 %v2393, 1e-24
        %v2547 = vmax.f32 %v2396, 1e-24
        %v2548 = vmax.f32 %v2399, 1e-24
        %v2549 = vmax.f32 %v2402, 1e-24
        %v2550 = vmax.f32 %v2405, 1e-24
        %v2551 = vmax.f32 %v2408, 1e-24
        %v2552 = vmax.f32 %v2411, 1e-24
        %v2553 = vmax.f32 %v2414, 1e-24
        %v2554 = vmax.f32 %v2417, 1e-24
        %v2555 = vmax.f32 %v2420, 1e-24
        %v2556 = vmax.f32 %v2423, 1e-24
        %v2557 = vmax.f32 %v2426, 1e-24
        %v2558 = vmax.f32 %v2429, 1e-24
        %v2559 = vmax.f32 %v2432, 1e-24
        %v2560 = vmax.f32 %v2435, 1e-24
        %v2561 = vmax.f32 %v2438, 1e-24
        %v2562 = vmax.f32 %v2441, 1e-24
        %v2563 = vmax.f32 %v2444, 1e-24
        %v2564 = vmax.f32 %v2447, 1e-24
        %v2565 = vmax.f32 %v2450, 1e-24
        %v2566 = vmax.f32 %v2453, 1e-24
        %v2567 = vmax.f32 %v2456, 1e-24
        %v2568 = vrsqrt.pop %v2531
        %v2569 = vrsqrt.pop %v2532
        %v2570 = vrsqrt.pop %v2533
        %v2571 = vrsqrt.pop %v2534
        %v2572 = vrsqrt.pop %v2535
        %v2573 = vrsqrt.pop %v2536
        %v2574 = vrsqrt.pop %v2537
        %v2575 = vrsqrt.pop %v2538
        %v2576 = vrsqrt.pop %v2539
        %v2577 = vrsqrt.pop %v2540
        %v2578 = vrsqrt.pop %v2541
        %v2579 = vrsqrt.pop %v2542
        %v2580 = vrsqrt.pop %v2543
        %v2581 = vrsqrt.pop %v2544
        %v2582 = vrsqrt.pop %v2545
        %v2583 = vrsqrt.pop %v2546
        %v2584 = vrsqrt.pop %v2547
        %v2585 = vrsqrt.pop %v2548
        %v2586 = vrsqrt.pop %v2549
        %v2587 = vrsqrt.pop %v2550
        %v2588 = vrsqrt.pop %v2551
        %v2589 = vrsqrt.pop %v2552
        %v2590 = vrsqrt.pop %v2553
        %v2591 = vrsqrt.pop %v2554
        %v2592 = vrsqrt.pop %v2555
        %v2593 = vrsqrt.pop %v2556
        %v2594 = vrsqrt.pop %v2557
        %v2595 = vrsqrt.pop %v2558
        %v2596 = vrsqrt.pop %v2559
        %v2597 = vrsqrt.pop %v2560
        %v2598 = vrsqrt.pop %v2561
        %v2599 = vrsqrt.pop %v2562
        %v2600 = vrsqrt.pop %v2563
        %v2601 = vrsqrt.pop %v2564
        %v2602 = vrsqrt.pop %v2565
        %v2603 = vrsqrt.pop %v2566
        %v2604 = vrsqrt.pop %v2567
        %v2605 = vmul.f32 %v2494, %v2568
        %v2606 = vmul.f32 %v2495, %v2569
        %v2607 = vmul.f32 %v2496, %v2570
        %v2608 = vmul.f32 %v2497, %v2571
        %v2609 = vmul.f32 %v2498, %v2572
        %v2610 = vmul.f32 %v2499, %v2573
        %v2611 = vmul.f32 %v2500, %v2574
        %v2612 = vmul.f32 %v2501, %v2575
        %v2613 = vmul.f32 %v2502, %v2576
        %v2614 = vmul.f32 %v2503, %v2577
        %v2615 = vmul.f32 %v2504, %v2578
        %v2616 = vmul.f32 %v2505, %v2579
        %v2617 = vmul.f32 %v2506, %v2580
        %v2618 = vmul.f32 %v2507, %v2581
        %v2619 = vmul.f32 %v2508, %v2582
        %v2620 = vmul.f32 %v2509, %v2583
        %v2621 = vmul.f32 %v2510, %v2584
        %v2622 = vmul.f32 %v2511, %v2585
        %v2623 = vmul.f32 %v2512, %v2586
        %v2624 = vmul.f32 %v2513, %v2587
        %v2625 = vmul.f32 %v2514, %v2588
        %v2626 = vmul.f32 %v2515, %v2589
        %v2627 = vmul.f32 %v2516, %v2590
        %v2628 = vmul.f32 %v2517, %v2591
        %v2629 = vmul.f32 %v2518, %v2592
        %v2630 = vmul.f32 %v2519, %v2593
        %v2631 = vmul.f32 %v2520, %v2594
        %v2632 = vmul.f32 %v2521, %v2595
        %v2633 = vmul.f32 %v2522, %v2596
        %v2634 = vmul.f32 %v2523, %v2597
        %v2635 = vmul.f32 %v2524, %v2598
        %v2636 = vmul.f32 %v2525, %v2599
        %v2637 = vmul.f32 %v2526, %v2600
        %v2638 = vmul.f32 %v2527, %v2601
        %v2639 = vmul.f32 %v2528, %v2602
        %v2640 = vmul.f32 %v2529, %v2603
        %v2641 = vmul.f32 %v2530, %v2604
        %v2642 = vmul.f32 %v1975, %v689
        %v2643 = vmul.f32 %v1978, %v690
        %v2644 = vmul.f32 %v1983, %v691
        %v2645 = vmul.f32 %v1986, %v692
        %v2646 = vmul.f32 %v1991, %v693
        %v2647 = vmul.f32 %v1994, %v694
        %v2648 = vmul.f32 %v1999, %v695
        %v2649 = vmul.f32 %v2002, %v696
        %v2650 = vmul.f32 %v2007, %v697
        %v2651 = vmul.f32 %v2010, %v698
        %v2652 = vmul.f32 %v2015, %v699
        %v2653 = vmul.f32 %v2018, %v700
        %v2654 = vmul.f32 %v2023, %v701
        %v2655 = vmul.f32 %v2026, %v702
        %v2656 = vmul.f32 %v2031, %v703
        %v2657 = vmul.f32 %v2034, %v704
        %v2658 = vmul.f32 %v2039, %v705
        %v2659 = vmul.f32 %v2042, %v706
        %v2660 = vmul.f32 %v2047, %v707
        %v2661 = vmul.f32 %v2050, %v708
        %v2662 = vmul.f32 %v2055, %v709
        %v2663 = vmul.f32 %v2058, %v710
        %v2664 = vmul.f32 %v2063, %v711
        %v2665 = vmul.f32 %v2066, %v712
        %v2666 = vmul.f32 %v2071, %v713
        %v2667 = vmul.f32 %v2074, %v714
        %v2668 = vmul.f32 %v2079, %v715
        %v2669 = vmul.f32 %v2082, %v716
        %v2670 = vmul.f32 %v2087, %v717
        %v2671 = vmul.f32 %v2090, %v718
        %v2672 = vmul.f32 %v2095, %v719
        %v2673 = vmul.f32 %v2098, %v720
        %v2674 = vmul.f32 %v2103, %v721
        %v2675 = vmul.f32 %v2106, %v722
        %v2676 = vmul.f32 %v2111, %v723
        %v2677 = vmul.f32 %v2114, %v724
        %v2678 = vmul.f32 %v2119, %v725
        %v2679 = vsel %vm1110, %v2642, 0.0
        %2680 = vadd.xlane.f32.xlu0 %v2679
        %v2681 = vpop.xlane.xlu0 %2680
        %v2682 = vsel %vm1110, %v2643, 0.0
        %2683 = vadd.xlane.f32.xlu0 %v2682
        %v2684 = vpop.xlane.xlu0 %2683
        %v2685 = vsel %vm1110, %v2644, 0.0
        %2686 = vadd.xlane.f32.xlu0 %v2685
        %v2687 = vpop.xlane.xlu0 %2686
        %v2688 = vsel %vm1110, %v2645, 0.0
        %2689 = vadd.xlane.f32.xlu0 %v2688
        %v2690 = vpop.xlane.xlu0 %2689
        %v2691 = vsel %vm1110, %v2646, 0.0
        %2692 = vadd.xlane.f32.xlu0 %v2691
        %v2693 = vpop.xlane.xlu0 %2692
        %v2694 = vsel %vm1110, %v2647, 0.0
        %2695 = vadd.xlane.f32.xlu0 %v2694
        %v2696 = vpop.xlane.xlu0 %2695
        %v2697 = vsel %vm1110, %v2648, 0.0
        %2698 = vadd.xlane.f32.xlu0 %v2697
        %v2699 = vpop.xlane.xlu0 %2698
        %v2700 = vsel %vm1110, %v2649, 0.0
        %2701 = vadd.xlane.f32.xlu0 %v2700
        %v2702 = vpop.xlane.xlu0 %2701
        %v2703 = vsel %vm1110, %v2650, 0.0
        %2704 = vadd.xlane.f32.xlu0 %v2703
        %v2705 = vpop.xlane.xlu0 %2704
        %v2706 = vsel %vm1110, %v2651, 0.0
        %2707 = vadd.xlane.f32.xlu0 %v2706
        %v2708 = vpop.xlane.xlu0 %2707
        %v2709 = vsel %vm1110, %v2652, 0.0
        %2710 = vadd.xlane.f32.xlu0 %v2709
        %v2711 = vpop.xlane.xlu0 %2710
        %v2712 = vsel %vm1110, %v2653, 0.0
        %2713 = vadd.xlane.f32.xlu0 %v2712
        %v2714 = vpop.xlane.xlu0 %2713
        %v2715 = vsel %vm1110, %v2654, 0.0
        %2716 = vadd.xlane.f32.xlu0 %v2715
        %v2717 = vpop.xlane.xlu0 %2716
        %v2718 = vsel %vm1110, %v2655, 0.0
        %2719 = vadd.xlane.f32.xlu0 %v2718
        %v2720 = vpop.xlane.xlu0 %2719
        %v2721 = vsel %vm1110, %v2656, 0.0
        %2722 = vadd.xlane.f32.xlu0 %v2721
        %v2723 = vpop.xlane.xlu0 %2722
        %v2724 = vsel %vm1110, %v2657, 0.0
        %2725 = vadd.xlane.f32.xlu0 %v2724
        %v2726 = vpop.xlane.xlu0 %2725
        %v2727 = vsel %vm1110, %v2658, 0.0
        %2728 = vadd.xlane.f32.xlu0 %v2727
        %v2729 = vpop.xlane.xlu0 %2728
        %v2730 = vsel %vm1110, %v2659, 0.0
        %2731 = vadd.xlane.f32.xlu0 %v2730
        %v2732 = vpop.xlane.xlu0 %2731
        %v2733 = vsel %vm1110, %v2660, 0.0
        %2734 = vadd.xlane.f32.xlu0 %v2733
        %v2735 = vpop.xlane.xlu0 %2734
        %v2736 = vsel %vm1110, %v2661, 0.0
        %2737 = vadd.xlane.f32.xlu0 %v2736
        %v2738 = vpop.xlane.xlu0 %2737
        %v2739 = vsel %vm1110, %v2662, 0.0
        %2740 = vadd.xlane.f32.xlu0 %v2739
        %v2741 = vpop.xlane.xlu0 %2740
        %v2742 = vsel %vm1110, %v2663, 0.0
        %2743 = vadd.xlane.f32.xlu0 %v2742
        %v2744 = vpop.xlane.xlu0 %2743
        %v2745 = vsel %vm1110, %v2664, 0.0
        %2746 = vadd.xlane.f32.xlu0 %v2745
        %v2747 = vpop.xlane.xlu0 %2746
        %v2748 = vsel %vm1110, %v2665, 0.0
        %2749 = vadd.xlane.f32.xlu0 %v2748
        %v2750 = vpop.xlane.xlu0 %2749
        %v2751 = vsel %vm1110, %v2666, 0.0
        %2752 = vadd.xlane.f32.xlu0 %v2751
        %v2753 = vpop.xlane.xlu0 %2752
        %v2754 = vsel %vm1110, %v2667, 0.0
        %2755 = vadd.xlane.f32.xlu0 %v2754
        %v2756 = vpop.xlane.xlu0 %2755
        %v2757 = vsel %vm1110, %v2668, 0.0
        %2758 = vadd.xlane.f32.xlu0 %v2757
        %v2759 = vpop.xlane.xlu0 %2758
        %v2760 = vsel %vm1110, %v2669, 0.0
        %2761 = vadd.xlane.f32.xlu0 %v2760
        %v2762 = vpop.xlane.xlu0 %2761
        %v2763 = vsel %vm1110, %v2670, 0.0
        %2764 = vadd.xlane.f32.xlu0 %v2763
        %v2765 = vpop.xlane.xlu0 %2764
        %v2766 = vsel %vm1110, %v2671, 0.0
        %2767 = vadd.xlane.f32.xlu0 %v2766
        %v2768 = vpop.xlane.xlu0 %2767
        %v2769 = vsel %vm1110, %v2672, 0.0
        %2770 = vadd.xlane.f32.xlu0 %v2769
        %v2771 = vpop.xlane.xlu0 %2770
        %v2772 = vsel %vm1110, %v2673, 0.0
        %2773 = vadd.xlane.f32.xlu0 %v2772
        %v2774 = vpop.xlane.xlu0 %2773
        %v2775 = vsel %vm1110, %v2674, 0.0
        %2776 = vadd.xlane.f32.xlu0 %v2775
        %v2777 = vpop.xlane.xlu0 %2776
        %v2778 = vsel %vm1110, %v2675, 0.0
        %2779 = vadd.xlane.f32.xlu0 %v2778
        %v2780 = vpop.xlane.xlu0 %2779
        %v2781 = vsel %vm1110, %v2676, 0.0
        %2782 = vadd.xlane.f32.xlu0 %v2781
        %v2783 = vpop.xlane.xlu0 %2782
        %v2784 = vsel %vm1110, %v2677, 0.0
        %2785 = vadd.xlane.f32.xlu0 %v2784
        %v2786 = vpop.xlane.xlu0 %2785
        %v2787 = vsel %vm1110, %v2678, 0.0
        %2788 = vadd.xlane.f32.xlu0 %v2787
        %v2789 = vpop.xlane.xlu0 %2788
        %v2790 = vmul.f32 %v2681, %v2605
        %v2791 = vmul.f32 %v2684, %v2606
        %v2792 = vmul.f32 %v2687, %v2607
        %v2793 = vmul.f32 %v2690, %v2608
        %v2794 = vmul.f32 %v2693, %v2609
        %v2795 = vmul.f32 %v2696, %v2610
        %v2796 = vmul.f32 %v2699, %v2611
        %v2797 = vmul.f32 %v2702, %v2612
        %v2798 = vmul.f32 %v2705, %v2613
        %v2799 = vmul.f32 %v2708, %v2614
        %v2800 = vmul.f32 %v2711, %v2615
        %v2801 = vmul.f32 %v2714, %v2616
        %v2802 = vmul.f32 %v2717, %v2617
        %v2803 = vmul.f32 %v2720, %v2618
        %v2804 = vmul.f32 %v2723, %v2619
        %v2805 = vmul.f32 %v2726, %v2620
        %v2806 = vmul.f32 %v2729, %v2621
        %v2807 = vmul.f32 %v2732, %v2622
        %v2808 = vmul.f32 %v2735, %v2623
        %v2809 = vmul.f32 %v2738, %v2624
        %v2810 = vmul.f32 %v2741, %v2625
        %v2811 = vmul.f32 %v2744, %v2626
        %v2812 = vmul.f32 %v2747, %v2627
        %v2813 = vmul.f32 %v2750, %v2628
        %v2814 = vmul.f32 %v2753, %v2629
        %v2815 = vmul.f32 %v2756, %v2630
        %v2816 = vmul.f32 %v2759, %v2631
        %v2817 = vmul.f32 %v2762, %v2632
        %v2818 = vmul.f32 %v2765, %v2633
        %v2819 = vmul.f32 %v2768, %v2634
        %v2820 = vmul.f32 %v2771, %v2635
        %v2821 = vmul.f32 %v2774, %v2636
        %v2822 = vmul.f32 %v2777, %v2637
        %v2823 = vmul.f32 %v2780, %v2638
        %v2824 = vmul.f32 %v2783, %v2639
        %v2825 = vmul.f32 %v2786, %v2640
        %v2826 = vmul.f32 %v2789, %v2641
        %v2827 = vsub.f32 1.0, %v2790
        %v2828 = vsub.f32 1.0, %v2791
        %v2829 = vsub.f32 1.0, %v2792
        %v2830 = vsub.f32 1.0, %v2793
        %v2831 = vsub.f32 1.0, %v2794
        %v2832 = vsub.f32 1.0, %v2795
        %v2833 = vsub.f32 1.0, %v2796
        %v2834 = vsub.f32 1.0, %v2797
        %v2835 = vsub.f32 1.0, %v2798
        %v2836 = vsub.f32 1.0, %v2799
        %v2837 = vsub.f32 1.0, %v2800
        %v2838 = vsub.f32 1.0, %v2801
        %v2839 = vsub.f32 1.0, %v2802
        %v2840 = vsub.f32 1.0, %v2803
        %v2841 = vsub.f32 1.0, %v2804
        %v2842 = vsub.f32 1.0, %v2805
        %v2843 = vsub.f32 1.0, %v2806
        %v2844 = vsub.f32 1.0, %v2807
        %v2845 = vsub.f32 1.0, %v2808
        %v2846 = vsub.f32 1.0, %v2809
        %v2847 = vsub.f32 1.0, %v2810
        %v2848 = vsub.f32 1.0, %v2811
        %v2849 = vsub.f32 1.0, %v2812
        %v2850 = vsub.f32 1.0, %v2813
        %v2851 = vsub.f32 1.0, %v2814
        %v2852 = vsub.f32 1.0, %v2815
        %v2853 = vsub.f32 1.0, %v2816
        %v2854 = vsub.f32 1.0, %v2817
        %v2855 = vsub.f32 1.0, %v2818
        %v2856 = vsub.f32 1.0, %v2819
        %v2857 = vsub.f32 1.0, %v2820
        %v2858 = vsub.f32 1.0, %v2821
        %v2859 = vsub.f32 1.0, %v2822
        %v2860 = vsub.f32 1.0, %v2823
        %v2861 = vsub.f32 1.0, %v2824
        %v2862 = vsub.f32 1.0, %v2825
        %v2863 = vsub.f32 1.0, %v2826
        %p2864 = scmp.eq.s32.totalorder %s25, 0
        // Predicated region
        $region65: #{tpu_custom_call.1} parent=59 // pred_check
          %p2865 = pneg %p2864
        $region66: #{tpu_custom_call.1} parent=59 // pred_check_branch
          %2867 = sbr.rel (%p2865) target = $region68
        $region67: #{tpu_custom_call.1} parent=59 // pred_region
          %s2868 = scalar_lea.smem [#allocation6], 0
          %2869 = sst [smem:[%s2868]] 0.0
        $region68: #{tpu_custom_call.1} parent=59 // pred_fallthru
          _
        %s2870 = sld [smem:[#allocation6]]
        %v2871 = vmul.f32 %v2827, %v2827
        %v2872 = vmul.f32 %v2828, %v2828
        %v2873 = vmul.f32 %v2829, %v2829
        %v2874 = vmul.f32 %v2830, %v2830
        %v2875 = vmul.f32 %v2831, %v2831
        %v2876 = vmul.f32 %v2832, %v2832
        %v2877 = vmul.f32 %v2833, %v2833
        %v2878 = vmul.f32 %v2834, %v2834
        %v2879 = vmul.f32 %v2835, %v2835
        %v2880 = vmul.f32 %v2836, %v2836
        %v2881 = vmul.f32 %v2837, %v2837
        %v2882 = vmul.f32 %v2838, %v2838
        %v2883 = vmul.f32 %v2839, %v2839
        %v2884 = vmul.f32 %v2840, %v2840
        %v2885 = vmul.f32 %v2841, %v2841
        %v2886 = vmul.f32 %v2842, %v2842
        %v2887 = vmul.f32 %v2843, %v2843
        %v2888 = vmul.f32 %v2844, %v2844
        %v2889 = vmul.f32 %v2845, %v2845
        %v2890 = vmul.f32 %v2846, %v2846
        %v2891 = vmul.f32 %v2847, %v2847
        %v2892 = vmul.f32 %v2848, %v2848
        %v2893 = vmul.f32 %v2849, %v2849
        %v2894 = vmul.f32 %v2850, %v2850
        %v2895 = vmul.f32 %v2851, %v2851
        %v2896 = vmul.f32 %v2852, %v2852
        %v2897 = vmul.f32 %v2853, %v2853
        %v2898 = vmul.f32 %v2854, %v2854
        %v2899 = vmul.f32 %v2855, %v2855
        %v2900 = vmul.f32 %v2856, %v2856
        %v2901 = vmul.f32 %v2857, %v2857
        %v2902 = vmul.f32 %v2858, %v2858
        %v2903 = vmul.f32 %v2859, %v2859
        %v2904 = vmul.f32 %v2860, %v2860
        %v2905 = vmul.f32 %v2861, %v2861
        %v2906 = vmul.f32 %v2862, %v2862
        %v2907 = vmul.f32 %v2863, %v2863
        %v2908 = vmul.f32 %v763, %v2871
        %v2909 = vmul.f32 %v764, %v2872
        %v2910 = vmul.f32 %v765, %v2873
        %v2911 = vmul.f32 %v766, %v2874
        %v2912 = vmul.f32 %v767, %v2875
        %v2913 = vmul.f32 %v768, %v2876
        %v2914 = vmul.f32 %v769, %v2877
        %v2915 = vmul.f32 %v770, %v2878
        %v2916 = vmul.f32 %v771, %v2879
        %v2917 = vmul.f32 %v772, %v2880
        %v2918 = vmul.f32 %v773, %v2881
        %v2919 = vmul.f32 %v774, %v2882
        %v2920 = vmul.f32 %v775, %v2883
        %v2921 = vmul.f32 %v776, %v2884
        %v2922 = vmul.f32 %v777, %v2885
        %v2923 = vmul.f32 %v778, %v2886
        %v2924 = vmul.f32 %v779, %v2887
        %v2925 = vmul.f32 %v780, %v2888
        %v2926 = vmul.f32 %v781, %v2889
        %v2927 = vmul.f32 %v782, %v2890
        %v2928 = vmul.f32 %v783, %v2891
        %v2929 = vmul.f32 %v784, %v2892
        %v2930 = vmul.f32 %v785, %v2893
        %v2931 = vmul.f32 %v786, %v2894
        %v2932 = vmul.f32 %v787, %v2895
        %v2933 = vmul.f32 %v788, %v2896
        %v2934 = vmul.f32 %v789, %v2897
        %v2935 = vmul.f32 %v790, %v2898
        %v2936 = vmul.f32 %v791, %v2899
        %v2937 = vmul.f32 %v792, %v2900
        %v2938 = vmul.f32 %v793, %v2901
        %v2939 = vmul.f32 %v794, %v2902
        %v2940 = vmul.f32 %v795, %v2903
        %v2941 = vmul.f32 %v796, %v2904
        %v2942 = vmul.f32 %v797, %v2905
        %v2943 = vmul.f32 %v798, %v2906
        %v2944 = vmul.f32 %v799, %v2907
        %vm2945 = vcmask 7168
        %v2946 = vsel %vm2945, %v2908, 0.0
        %v2947 = vsel %vm2945, %v2909, 0.0
        %v2948 = vadd.f32 %v2946, %v2947
        %v2949 = vsel %vm2945, %v2910, 0.0
        %v2950 = vadd.f32 %v2948, %v2949
        %v2951 = vsel %vm2945, %v2911, 0.0
        %v2952 = vadd.f32 %v2950, %v2951
        %v2953 = vsel %vm2945, %v2912, 0.0
        %v2954 = vadd.f32 %v2952, %v2953
        %v2955 = vsel %vm2945, %v2913, 0.0
        %v2956 = vadd.f32 %v2954, %v2955
        %v2957 = vsel %vm2945, %v2914, 0.0
        %v2958 = vadd.f32 %v2956, %v2957
        %v2959 = vsel %vm2945, %v2915, 0.0
        %v2960 = vadd.f32 %v2958, %v2959
        %v2961 = vsel %vm2945, %v2916, 0.0
        %v2962 = vadd.f32 %v2960, %v2961
        %v2963 = vsel %vm2945, %v2917, 0.0
        %v2964 = vadd.f32 %v2962, %v2963
        %v2965 = vsel %vm2945, %v2918, 0.0
        %v2966 = vadd.f32 %v2964, %v2965
        %v2967 = vsel %vm2945, %v2919, 0.0
        %v2968 = vadd.f32 %v2966, %v2967
        %v2969 = vsel %vm2945, %v2920, 0.0
        %v2970 = vadd.f32 %v2968, %v2969
        %v2971 = vsel %vm2945, %v2921, 0.0
        %v2972 = vadd.f32 %v2970, %v2971
        %v2973 = vsel %vm2945, %v2922, 0.0
        %v2974 = vadd.f32 %v2972, %v2973
        %v2975 = vsel %vm2945, %v2923, 0.0
        %v2976 = vadd.f32 %v2974, %v2975
        %v2977 = vsel %vm2945, %v2924, 0.0
        %v2978 = vadd.f32 %v2976, %v2977
        %v2979 = vsel %vm2945, %v2925, 0.0
        %v2980 = vadd.f32 %v2978, %v2979
        %v2981 = vsel %vm2945, %v2926, 0.0
        %v2982 = vadd.f32 %v2980, %v2981
        %v2983 = vsel %vm2945, %v2927, 0.0
        %v2984 = vadd.f32 %v2982, %v2983
        %v2985 = vsel %vm2945, %v2928, 0.0
        %v2986 = vadd.f32 %v2984, %v2985
        %v2987 = vsel %vm2945, %v2929, 0.0
        %v2988 = vadd.f32 %v2986, %v2987
        %v2989 = vsel %vm2945, %v2930, 0.0
        %v2990 = vadd.f32 %v2988, %v2989
        %v2991 = vsel %vm2945, %v2931, 0.0
        %v2992 = vadd.f32 %v2990, %v2991
        %v2993 = vsel %vm2945, %v2932, 0.0
        %v2994 = vadd.f32 %v2992, %v2993
        %v2995 = vsel %vm2945, %v2933, 0.0
        %v2996 = vadd.f32 %v2994, %v2995
        %v2997 = vsel %vm2945, %v2934, 0.0
        %v2998 = vadd.f32 %v2996, %v2997
        %v2999 = vsel %vm2945, %v2935, 0.0
        %v3000 = vadd.f32 %v2998, %v2999
        %v3001 = vsel %vm2945, %v2936, 0.0
        %v3002 = vadd.f32 %v3000, %v3001
        %v3003 = vsel %vm2945, %v2937, 0.0
        %v3004 = vadd.f32 %v3002, %v3003
        %v3005 = vsel %vm2945, %v2938, 0.0
        %v3006 = vadd.f32 %v3004, %v3005
        %v3007 = vsel %vm2945, %v2939, 0.0
        %v3008 = vadd.f32 %v3006, %v3007
        %v3009 = vsel %vm2945, %v2940, 0.0
        %v3010 = vadd.f32 %v3008, %v3009
        %v3011 = vsel %vm2945, %v2941, 0.0
        %v3012 = vadd.f32 %v3010, %v3011
        %v3013 = vsel %vm2945, %v2942, 0.0
        %v3014 = vadd.f32 %v3012, %v3013
        %v3015 = vsel %vm2945, %v2943, 0.0
        %v3016 = vadd.f32 %v3014, %v3015
        %v3017 = vsel %vm2945, %v2944, 0.0
        %v3018 = vadd.f32 %v3016, %v3017
        %3019 = vadd.xlane.f32.xlu0 %v3018
        %v3020 = vpop.xlane.xlu0 %3019
        %v3021 = vrot.slane %v3020, 4
        %v3022 = vadd.f32 %v3020, %v3021
        %v3023 = vrot.slane %v3022, 2
        %v3024 = vadd.f32 %v3022, %v3023
        %v3025 = vrot.slane %v3024, 1
        %v3026 = vadd.f32 %v3024, %v3025
        %s3027 = vtos %v3026
        %s3028 = sadd.f32 %s2870, %s3027
        %s3029 = scalar_lea.smem [#allocation6], 0
        %3030 = sst [smem:[%s3029]] %s3028
        %s3031 = sand.u32 %s253, 1
        %s3032 = sand.u32 %s253, 1
        %s3033 = smul.addr %s3032, 296
        %s3034 = scalar_lea.vmem [#allocation5], %s3033
        // Predicated region
        $region69: #{tpu_custom_call.1} parent=59 // pred_check
          %p3035 = pneg %p263
        $region70: #{tpu_custom_call.1} parent=59 // pred_check_branch
          %3037 = sbr.rel (%p3035) target = $region72
        $region71: #{tpu_custom_call.1} parent=59 // pred_region
          %s3038 = smul.u32 37, %s25
          %s3039 = ssub.s32 38, %s3038
          %p3040 = scmp.lt.s32.totalorder %s3039, 37
          %s3041 = scalar_select %p3040, %s3039, 37
          %s3042 = smul.u32 128, %s3041
          %p3043 = scmp.ne.s32.totalorder 0, %s3042
          %s3044 = smul.addr %s3038, 8
          %s3045 = scalar_lea.vmem %s10, %s3044
          // Predicated region
          $region73: #{tpu_custom_call.1} parent=71 // pred_check
            %p3046 = pneg %p3043
          $region74: #{tpu_custom_call.1} parent=71 // pred_check_branch
            %3048 = sbr.rel (%p3046) target = $region76
          $region75: #{tpu_custom_call.1} parent=71 // pred_region
            // Predicated region
            $region77: #{tpu_custom_call.1} parent=75 // pred_check
              _
            $region78: #{tpu_custom_call.1} parent=75 // pred_check_branch
              %3050 = sbr.rel (0) target = $region80
            $region79: #{tpu_custom_call.1} parent=75 // pred_region
              // Predicated region
              $region99: #{tpu_custom_call.1} parent=79 // pred_check
                _
              $region100: #{tpu_custom_call.1} parent=79 // pred_check_branch
                %3173 = sbr.rel (0) target = $region102
              $region101: #{tpu_custom_call.1} parent=79 // pred_region
                %s3174 = sdiv.u32.pop %s3041, 37
                %s3175 = srem.u32.pop %s3041, 37
                // While loop
                $region103: #{tpu_custom_call.1} parent=101 // loop_pre_header
                  _
                $region104: #{tpu_custom_call.1} parent=101 // loop_header
                  %s3177 = sphi 0, %s3179
                  %p3178 = scmp.ge.s32.totalorder %s3177, %s3174
                  %s3182 = sphi 0, %s3261
                  %s3183 = sphi %s3034, %s3264
                  %s3184 = sphi %s3045, %s3265
                $region105: #{tpu_custom_call.1} parent=101 // loop_header_branch
                  %3181 = sbr.rel (%p3178) target = $region109
                $region106: #{tpu_custom_call.1} parent=101 // loop_body
                  %v3185 = vld [vmem:[%s3183] sm:$0xff]
                  %3186 = vst [vmem:[%s3184] sm:$0xff] %v3185
                  %v3187 = vld [vmem:[%s3183 + $0x8] sm:$0xff]
                  %3188 = vst [vmem:[%s3184 + $0x8] sm:$0xff] %v3187
                  %v3189 = vld [vmem:[%s3183 + $0x10] sm:$0xff]
                  %3190 = vst [vmem:[%s3184 + $0x10] sm:$0xff] %v3189
                  %v3191 = vld [vmem:[%s3183 + $0x18] sm:$0xff]
                  %3192 = vst [vmem:[%s3184 + $0x18] sm:$0xff] %v3191
                  %v3193 = vld [vmem:[%s3183 + $0x20] sm:$0xff]
                  %3194 = vst [vmem:[%s3184 + $0x20] sm:$0xff] %v3193
                  %v3195 = vld [vmem:[%s3183 + $0x28] sm:$0xff]
                  %3196 = vst [vmem:[%s3184 + $0x28] sm:$0xff] %v3195
                  %v3197 = vld [vmem:[%s3183 + $0x30] sm:$0xff]
                  %3198 = vst [vmem:[%s3184 + $0x30] sm:$0xff] %v3197
                  %v3199 = vld [vmem:[%s3183 + $0x38] sm:$0xff]
                  %3200 = vst [vmem:[%s3184 + $0x38] sm:$0xff] %v3199
                  %v3201 = vld [vmem:[%s3183 + $0x40] sm:$0xff]
                  %3202 = vst [vmem:[%s3184 + $0x40] sm:$0xff] %v3201
                  %v3203 = vld [vmem:[%s3183 + $0x48] sm:$0xff]
                  %3204 = vst [vmem:[%s3184 + $0x48] sm:$0xff] %v3203
                  %v3205 = vld [vmem:[%s3183 + $0x50] sm:$0xff]
                  %3206 = vst [vmem:[%s3184 + $0x50] sm:$0xff] %v3205
                  %v3207 = vld [vmem:[%s3183 + $0x58] sm:$0xff]
                  %3208 = vst [vmem:[%s3184 + $0x58] sm:$0xff] %v3207
                  %v3209 = vld [vmem:[%s3183 + $0x60] sm:$0xff]
                  %3210 = vst [vmem:[%s3184 + $0x60] sm:$0xff] %v3209
                  %v3211 = vld [vmem:[%s3183 + $0x68] sm:$0xff]
                  %3212 = vst [vmem:[%s3184 + $0x68] sm:$0xff] %v3211
                  %v3213 = vld [vmem:[%s3183 + $0x70] sm:$0xff]
                  %3214 = vst [vmem:[%s3184 + $0x70] sm:$0xff] %v3213
                  %v3215 = vld [vmem:[%s3183 + $0x78] sm:$0xff]
                  %3216 = vst [vmem:[%s3184 + $0x78] sm:$0xff] %v3215
                  %v3217 = vld [vmem:[%s3183 + $0x80] sm:$0xff]
                  %3218 = vst [vmem:[%s3184 + $0x80] sm:$0xff] %v3217
                  %v3219 = vld [vmem:[%s3183 + $0x88] sm:$0xff]
                  %3220 = vst [vmem:[%s3184 + $0x88] sm:$0xff] %v3219
                  %v3221 = vld [vmem:[%s3183 + $0x90] sm:$0xff]
                  %3222 = vst [vmem:[%s3184 + $0x90] sm:$0xff] %v3221
                  %v3223 = vld [vmem:[%s3183 + $0x98] sm:$0xff]
                  %3224 = vst [vmem:[%s3184 + $0x98] sm:$0xff] %v3223
                  %v3225 = vld [vmem:[%s3183 + $0xa0] sm:$0xff]
                  %3226 = vst [vmem:[%s3184 + $0xa0] sm:$0xff] %v3225
                  %v3227 = vld [vmem:[%s3183 + $0xa8] sm:$0xff]
                  %3228 = vst [vmem:[%s3184 + $0xa8] sm:$0xff] %v3227
                  %v3229 = vld [vmem:[%s3183 + $0xb0] sm:$0xff]
                  %3230 = vst [vmem:[%s3184 + $0xb0] sm:$0xff] %v3229
                  %v3231 = vld [vmem:[%s3183 + $0xb8] sm:$0xff]
                  %3232 = vst [vmem:[%s3184 + $0xb8] sm:$0xff] %v3231
                  %v3233 = vld [vmem:[%s3183 + $0xc0] sm:$0xff]
                  %3234 = vst [vmem:[%s3184 + $0xc0] sm:$0xff] %v3233
                  %v3235 = vld [vmem:[%s3183 + $0xc8] sm:$0xff]
                  %3236 = vst [vmem:[%s3184 + $0xc8] sm:$0xff] %v3235
                  %v3237 = vld [vmem:[%s3183 + $0xd0] sm:$0xff]
                  %3238 = vst [vmem:[%s3184 + $0xd0] sm:$0xff] %v3237
                  %v3239 = vld [vmem:[%s3183 + $0xd8] sm:$0xff]
                  %3240 = vst [vmem:[%s3184 + $0xd8] sm:$0xff] %v3239
                  %v3241 = vld [vmem:[%s3183 + $0xe0] sm:$0xff]
                  %3242 = vst [vmem:[%s3184 + $0xe0] sm:$0xff] %v3241
                  %v3243 = vld [vmem:[%s3183 + $0xe8] sm:$0xff]
                  %3244 = vst [vmem:[%s3184 + $0xe8] sm:$0xff] %v3243
                  %v3245 = vld [vmem:[%s3183 + $0xf0] sm:$0xff]
                  %3246 = vst [vmem:[%s3184 + $0xf0] sm:$0xff] %v3245
                  %v3247 = vld [vmem:[%s3183 + $0xf8] sm:$0xff]
                  %3248 = vst [vmem:[%s3184 + $0xf8] sm:$0xff] %v3247
                  %v3249 = vld [vmem:[%s3183 + $0x100] sm:$0xff]
                  %3250 = vst [vmem:[%s3184 + $0x100] sm:$0xff] %v3249
                  %v3251 = vld [vmem:[%s3183 + $0x108] sm:$0xff]
                  %3252 = vst [vmem:[%s3184 + $0x108] sm:$0xff] %v3251
                  %v3253 = vld [vmem:[%s3183 + $0x110] sm:$0xff]
                  %3254 = vst [vmem:[%s3184 + $0x110] sm:$0xff] %v3253
                  %v3255 = vld [vmem:[%s3183 + $0x118] sm:$0xff]
                  %3256 = vst [vmem:[%s3184 + $0x118] sm:$0xff] %v3255
                  %v3257 = vld [vmem:[%s3183 + $0x120] sm:$0xff]
                  %3258 = vst [vmem:[%s3184 + $0x120] sm:$0xff] %v3257
                  %s3259 = sadd.s32 1, %s3182
                  %p3260 = scmp.ge.s32.totalorder %s3259, %s3174
                  %s3261 = scalar_select %p3260, 0, %s3259
                  %s3262 = smul.u32 %s3261, 296
                  %s3263 = smul.u32 %s3261, 296
                  %s3264 = scalar_lea.vmem %s3034, %s3262 [#allocation5]
                  %s3265 = scalar_lea.vmem %s3045, %s3263
                $region107: #{tpu_custom_call.1} parent=101 // loop_footer
                  %s3179 = sadd.s32 %s3177, 1
                $region108: #{tpu_custom_call.1} parent=101 // loop_footer_branch
                  %3176 = sbr.rel target = $region104
                $region109: #{tpu_custom_call.1} parent=101 // loop_exit
                  _
                %s3266 = sdiv.u32.pop %s3041, 37
                %s3267 = srem.u32.pop %s3041, 37
                %s3268 = smul.u32 %s3266, 37
                %s3269 = smul.u32 8, %s3268
                %s3270 = scalar_lea.vmem %s3034, %s3269 [#allocation5]
                %s3271 = smul.u32 8, %s3268
                %s3272 = scalar_lea.vmem %s3045, %s3271
                // While loop
                $region110: #{tpu_custom_call.1} parent=101 // loop_pre_header
                  _
                $region111: #{tpu_custom_call.1} parent=101 // loop_header
                  %s3274 = sphi 0, %s3276
                  %p3275 = scmp.ge.s32.totalorder %s3274, %s3267
                  %s3279 = sphi 0, %s3286
                  %s3280 = sphi %s3270, %s3289
                  %s3281 = sphi %s3272, %s3290
                $region112: #{tpu_custom_call.1} parent=101 // loop_header_branch
                  %3278 = sbr.rel (%p3275) target = $region116
                $region113: #{tpu_custom_call.1} parent=101 // loop_body
                  %v3282 = vld [vmem:[%s3280] sm:$0xff]
                  %3283 = vst [vmem:[%s3281] sm:$0xff] %v3282
                  %s3284 = sadd.s32 1, %s3279
                  %p3285 = scmp.ge.s32.totalorder %s3284, %s3267
                  %s3286 = scalar_select %p3285, 0, %s3284
                  %s3287 = smul.u32 %s3286, 8
                  %s3288 = smul.u32 %s3286, 8
                  %s3289 = scalar_lea.vmem %s3270, %s3287 [#allocation5]
                  %s3290 = scalar_lea.vmem %s3272, %s3288
                $region114: #{tpu_custom_call.1} parent=101 // loop_footer
                  %s3276 = sadd.s32 %s3274, 1
                $region115: #{tpu_custom_call.1} parent=101 // loop_footer_branch
                  %3273 = sbr.rel target = $region111
                $region116: #{tpu_custom_call.1} parent=101 // loop_exit
                  _
              $region102: #{tpu_custom_call.1} parent=79 // pred_fallthru
                _
              // Predicated region
              $region117: #{tpu_custom_call.1} parent=79 // pred_check
                _
              $region118: #{tpu_custom_call.1} parent=79 // pred_check_branch
                %3292 = sbr.rel target = $region120
              $region119: #{tpu_custom_call.1} parent=79 // pred_region
                _
              $region120: #{tpu_custom_call.1} parent=79 // pred_fallthru
                _
            $region80: #{tpu_custom_call.1} parent=75 // pred_fallthru
              _
            // Predicated region
            $region81: #{tpu_custom_call.1} parent=75 // pred_check
              _
            $region82: #{tpu_custom_call.1} parent=75 // pred_check_branch
              %3052 = sbr.rel target = $region84
            $region83: #{tpu_custom_call.1} parent=75 // pred_region
              %s3054 = ssub.s32 256, 1
              %s3055 = sdiv.u32.pop %s3041, 37
              %s3056 = srem.u32.pop %s3041, 37
              // While loop
              $region85: #{tpu_custom_call.1} parent=83 // loop_pre_header
                _
              $region86: #{tpu_custom_call.1} parent=83 // loop_header
                %s3058 = sphi 0, %s3060
                %p3059 = scmp.ge.s32.totalorder %s3058, %s3055
                %s3063 = sphi 0, %s3142
                %s3064 = sphi %s3034, %s3145
                %s3065 = sphi %s3045, %s3146
              $region87: #{tpu_custom_call.1} parent=83 // loop_header_branch
                %3062 = sbr.rel (%p3059) target = $region91
              $region88: #{tpu_custom_call.1} parent=83 // loop_body
                %v3066 = vld [vmem:[%s3064] sm:%s3054]
                %3067 = vst [vmem:[%s3065] sm:%s3054] %v3066
                %v3068 = vld [vmem:[%s3064 + $0x8] sm:%s3054]
                %3069 = vst [vmem:[%s3065 + $0x8] sm:%s3054] %v3068
                %v3070 = vld [vmem:[%s3064 + $0x10] sm:%s3054]
                %3071 = vst [vmem:[%s3065 + $0x10] sm:%s3054] %v3070
                %v3072 = vld [vmem:[%s3064 + $0x18] sm:%s3054]
                %3073 = vst [vmem:[%s3065 + $0x18] sm:%s3054] %v3072
                %v3074 = vld [vmem:[%s3064 + $0x20] sm:%s3054]
                %3075 = vst [vmem:[%s3065 + $0x20] sm:%s3054] %v3074
                %v3076 = vld [vmem:[%s3064 + $0x28] sm:%s3054]
                %3077 = vst [vmem:[%s3065 + $0x28] sm:%s3054] %v3076
                %v3078 = vld [vmem:[%s3064 + $0x30] sm:%s3054]
                %3079 = vst [vmem:[%s3065 + $0x30] sm:%s3054] %v3078
                %v3080 = vld [vmem:[%s3064 + $0x38] sm:%s3054]
                %3081 = vst [vmem:[%s3065 + $0x38] sm:%s3054] %v3080
                %v3082 = vld [vmem:[%s3064 + $0x40] sm:%s3054]
                %3083 = vst [vmem:[%s3065 + $0x40] sm:%s3054] %v3082
                %v3084 = vld [vmem:[%s3064 + $0x48] sm:%s3054]
                %3085 = vst [vmem:[%s3065 + $0x48] sm:%s3054] %v3084
                %v3086 = vld [vmem:[%s3064 + $0x50] sm:%s3054]
                %3087 = vst [vmem:[%s3065 + $0x50] sm:%s3054] %v3086
                %v3088 = vld [vmem:[%s3064 + $0x58] sm:%s3054]
                %3089 = vst [vmem:[%s3065 + $0x58] sm:%s3054] %v3088
                %v3090 = vld [vmem:[%s3064 + $0x60] sm:%s3054]
                %3091 = vst [vmem:[%s3065 + $0x60] sm:%s3054] %v3090
                %v3092 = vld [vmem:[%s3064 + $0x68] sm:%s3054]
                %3093 = vst [vmem:[%s3065 + $0x68] sm:%s3054] %v3092
                %v3094 = vld [vmem:[%s3064 + $0x70] sm:%s3054]
                %3095 = vst [vmem:[%s3065 + $0x70] sm:%s3054] %v3094
                %v3096 = vld [vmem:[%s3064 + $0x78] sm:%s3054]
                %3097 = vst [vmem:[%s3065 + $0x78] sm:%s3054] %v3096
                %v3098 = vld [vmem:[%s3064 + $0x80] sm:%s3054]
                %3099 = vst [vmem:[%s3065 + $0x80] sm:%s3054] %v3098
                %v3100 = vld [vmem:[%s3064 + $0x88] sm:%s3054]
                %3101 = vst [vmem:[%s3065 + $0x88] sm:%s3054] %v3100
                %v3102 = vld [vmem:[%s3064 + $0x90] sm:%s3054]
                %3103 = vst [vmem:[%s3065 + $0x90] sm:%s3054] %v3102
                %v3104 = vld [vmem:[%s3064 + $0x98] sm:%s3054]
                %3105 = vst [vmem:[%s3065 + $0x98] sm:%s3054] %v3104
                %v3106 = vld [vmem:[%s3064 + $0xa0] sm:%s3054]
                %3107 = vst [vmem:[%s3065 + $0xa0] sm:%s3054] %v3106
                %v3108 = vld [vmem:[%s3064 + $0xa8] sm:%s3054]
                %3109 = vst [vmem:[%s3065 + $0xa8] sm:%s3054] %v3108
                %v3110 = vld [vmem:[%s3064 + $0xb0] sm:%s3054]
                %3111 = vst [vmem:[%s3065 + $0xb0] sm:%s3054] %v3110
                %v3112 = vld [vmem:[%s3064 + $0xb8] sm:%s3054]
                %3113 = vst [vmem:[%s3065 + $0xb8] sm:%s3054] %v3112
                %v3114 = vld [vmem:[%s3064 + $0xc0] sm:%s3054]
                %3115 = vst [vmem:[%s3065 + $0xc0] sm:%s3054] %v3114
                %v3116 = vld [vmem:[%s3064 + $0xc8] sm:%s3054]
                %3117 = vst [vmem:[%s3065 + $0xc8] sm:%s3054] %v3116
                %v3118 = vld [vmem:[%s3064 + $0xd0] sm:%s3054]
                %3119 = vst [vmem:[%s3065 + $0xd0] sm:%s3054] %v3118
                %v3120 = vld [vmem:[%s3064 + $0xd8] sm:%s3054]
                %3121 = vst [vmem:[%s3065 + $0xd8] sm:%s3054] %v3120
                %v3122 = vld [vmem:[%s3064 + $0xe0] sm:%s3054]
                %3123 = vst [vmem:[%s3065 + $0xe0] sm:%s3054] %v3122
                %v3124 = vld [vmem:[%s3064 + $0xe8] sm:%s3054]
                %3125 = vst [vmem:[%s3065 + $0xe8] sm:%s3054] %v3124
                %v3126 = vld [vmem:[%s3064 + $0xf0] sm:%s3054]
                %3127 = vst [vmem:[%s3065 + $0xf0] sm:%s3054] %v3126
                %v3128 = vld [vmem:[%s3064 + $0xf8] sm:%s3054]
                %3129 = vst [vmem:[%s3065 + $0xf8] sm:%s3054] %v3128
                %v3130 = vld [vmem:[%s3064 + $0x100] sm:%s3054]
                %3131 = vst [vmem:[%s3065 + $0x100] sm:%s3054] %v3130
                %v3132 = vld [vmem:[%s3064 + $0x108] sm:%s3054]
                %3133 = vst [vmem:[%s3065 + $0x108] sm:%s3054] %v3132
                %v3134 = vld [vmem:[%s3064 + $0x110] sm:%s3054]
                %3135 = vst [vmem:[%s3065 + $0x110] sm:%s3054] %v3134
                %v3136 = vld [vmem:[%s3064 + $0x118] sm:%s3054]
                %3137 = vst [vmem:[%s3065 + $0x118] sm:%s3054] %v3136
                %v3138 = vld [vmem:[%s3064 + $0x120] sm:%s3054]
                %3139 = vst [vmem:[%s3065 + $0x120] sm:%s3054] %v3138
                %s3140 = sadd.s32 1, %s3063
                %p3141 = scmp.ge.s32.totalorder %s3140, %s3055
                %s3142 = scalar_select %p3141, 0, %s3140
                %s3143 = smul.u32 %s3142, 296
                %s3144 = smul.u32 %s3142, 296
                %s3145 = scalar_lea.vmem %s3034, %s3143 [#allocation5]
                %s3146 = scalar_lea.vmem %s3045, %s3144
              $region89: #{tpu_custom_call.1} parent=83 // loop_footer
                %s3060 = sadd.s32 %s3058, 1
              $region90: #{tpu_custom_call.1} parent=83 // loop_footer_branch
                %3057 = sbr.rel target = $region86
              $region91: #{tpu_custom_call.1} parent=83 // loop_exit
                _
              %s3147 = sdiv.u32.pop %s3041, 37
              %s3148 = srem.u32.pop %s3041, 37
              %s3149 = smul.u32 %s3147, 37
              %s3150 = smul.u32 8, %s3149
              %s3151 = scalar_lea.vmem %s3034, %s3150 [#allocation5]
              %s3152 = smul.u32 8, %s3149
              %s3153 = scalar_lea.vmem %s3045, %s3152
              // While loop
              $region92: #{tpu_custom_call.1} parent=83 // loop_pre_header
                _
              $region93: #{tpu_custom_call.1} parent=83 // loop_header
                %s3155 = sphi 0, %s3157
                %p3156 = scmp.ge.s32.totalorder %s3155, %s3148
                %s3160 = sphi 0, %s3167
                %s3161 = sphi %s3151, %s3170
                %s3162 = sphi %s3153, %s3171
              $region94: #{tpu_custom_call.1} parent=83 // loop_header_branch
                %3159 = sbr.rel (%p3156) target = $region98
              $region95: #{tpu_custom_call.1} parent=83 // loop_body
                %v3163 = vld [vmem:[%s3161] sm:%s3054]
                %3164 = vst [vmem:[%s3162] sm:%s3054] %v3163
                %s3165 = sadd.s32 1, %s3160
                %p3166 = scmp.ge.s32.totalorder %s3165, %s3148
                %s3167 = scalar_select %p3166, 0, %s3165
                %s3168 = smul.u32 %s3167, 8
                %s3169 = smul.u32 %s3167, 8
                %s3170 = scalar_lea.vmem %s3151, %s3168 [#allocation5]
                %s3171 = scalar_lea.vmem %s3153, %s3169
              $region96: #{tpu_custom_call.1} parent=83 // loop_footer
                %s3157 = sadd.s32 %s3155, 1
              $region97: #{tpu_custom_call.1} parent=83 // loop_footer_branch
                %3154 = sbr.rel target = $region93
              $region98: #{tpu_custom_call.1} parent=83 // loop_exit
                _
            $region84: #{tpu_custom_call.1} parent=75 // pred_fallthru
              _
          $region76: #{tpu_custom_call.1} parent=71 // pred_fallthru
            _
          %3293 = vnop
        $region72: #{tpu_custom_call.1} parent=59 // pred_fallthru
          _
        // Predicated region
        $region121: #{tpu_custom_call.1} parent=59 // pred_check
          %p3294 = pneg %p284
        $region122: #{tpu_custom_call.1} parent=59 // pred_check_branch
          %3296 = sbr.rel (%p3294) target = $region124
        $region123: #{tpu_custom_call.1} parent=59 // pred_region
          %s3298 = ssub.s32 16, 16
          %3299 = vsyncadd [#allocation3], %s3298
          %3302 = dma.smem_to_hbm [#allocation6], 16, %s11, [#allocation3]
        $region124: #{tpu_custom_call.1} parent=59 // pred_fallthru
          _
        // Predicated region
        $region125: #{tpu_custom_call.1} parent=59 // pred_check
          %p3303 = pneg %p284
        $region126: #{tpu_custom_call.1} parent=59 // pred_check_branch
          %3305 = sbr.rel (%p3303) target = $region128
        $region127: #{tpu_custom_call.1} parent=59 // pred_region
          %3306 = dma.done [#allocation3], 16
        $region128: #{tpu_custom_call.1} parent=59 // pred_fallthru
          _
        %3307 = sfence
      $region60: #{tpu_custom_call.1} parent=5 // pred_fallthru
        _
      %p3308 = scmp.le.s32.totalorder 2, %s20
      // Predicated region
      $region129: #{tpu_custom_call.1} parent=5 // pred_check
        %p3309 = pneg %p3308
      $region130: #{tpu_custom_call.1} parent=5 // pred_check_branch
        %3311 = sbr.rel (%p3309) target = $region132
      $region131: #{tpu_custom_call.1} parent=5 // pred_region
        %s3312 = ssub.s32 %s20, 2
        // Predicated region
        $region133: #{tpu_custom_call.1} parent=131 // pred_check
          %p3313 = pneg %p269
        $region134: #{tpu_custom_call.1} parent=131 // pred_check_branch
          %3315 = sbr.rel (%p3313) target = $region136
        $region135: #{tpu_custom_call.1} parent=131 // pred_region
          %s3316 = sand.u32 %s254, 1
          %s3317 = sand.u32 %s254, 1
          %s3318 = smul.addr %s3317, 296
          %s3319 = scalar_lea.vmem [#allocation5], %s3318
        $region136: #{tpu_custom_call.1} parent=131 // pred_fallthru
          _
      $region132: #{tpu_custom_call.1} parent=5 // pred_fallthru
        _
    $region6: #{tpu_custom_call.1} parent=1 // loop_footer
      %s24 = sadd.s32 1, %s20
    $region7: #{tpu_custom_call.1} parent=1 // loop_footer_branch
      %19 = sbr.rel target = $region3
    $region8: #{tpu_custom_call.1} parent=1 // loop_exit
      _
    %3320 = vsyncpa [#allocation3], 1
    %s3321 = scalar_lea.sflag [#allocation3], 1
    %3322 = vsyncpa %s3321, 1
    %3323 = vsyncpa [#allocation4], 1
    %s3324 = scalar_lea.sflag [#allocation4], 1
    %3325 = vsyncpa %s3324, 1

</llo_original>
